<compile_context>
chip_gen: v6e
topology: v6e:2x2x1
jax: 0.10.0
libtpu: 0.0.40
codegen_flags: <defaults>
</compile_context>

<pallas_src>
import functools

import jax
import jax.numpy as jnp
from jax import lax
from jax.experimental import pallas as pl
from jax.experimental.pallas import tpu as pltpu

LANE = 128


def _ceil_to(x, m):
    return ((x + m - 1) // m) * m


def _pick_batch_tile(n):
    """n is a multiple of 8.  Prefer MXU-wide tiles and >=2 grid steps."""
    if n % 256 == 0 and n >= 512:
        return 256
    if n % 128 == 0 and n >= 256:
        return 128
    return n


# ----------------------------------------------------------------------------
# Fused Pallas kernel: embedding + stacked GRU layers + gather-at-idx + decoder
# ----------------------------------------------------------------------------
def fused_gru_decode_kernel(word_ref, idx_ref, embed_ref, wih_ref, whh_ref,
                            bih_ref, bhn_ref, wdec_ref, bdec_ref, y_ref,
                            seq_ref, gi_ref):
    """
    word_ref : (T, BN, 1)    i32   time-major token ids
    idx_ref  : (BN, 1)       i32   per-row gather time index (before_rnn)
    embed_ref: (Vp, Hp)      bf16  embedding table (lane/row padded)
    wih_ref  : (L, Hp, 3Hp)  bf16  input->hidden weights, gate order (r, z, n)
    whh_ref  : (L, Hp, 3Hp)  bf16  hidden->hidden weights
    bih_ref  : (L, 1, 3Hp)   f32   b_ih with (b_hr, b_hz, 0) folded in
    bhn_ref  : (L, 1, Hp)    f32   b_hn (stays inside r * (W_hn h + b_hn))
    wdec_ref : (Hp, Op)      bf16
    bdec_ref : (1, Op)       f32
    y_ref    : (BN, Op)      f32   decoder logits (lane-padded)
    seq_ref  : (T*BN, Hp)    bf16  scratch: layer input/output sequence
    gi_ref   : (T*BN, 3Hp)   f32   scratch: hoisted input projection
    """
    T, BN, _ = word_ref.shape
    Hp = seq_ref.shape[1]
    Vp = embed_ref.shape[0]
    L = wih_ref.shape[0]

    idx_vec = idx_ref[...]                                   # (BN, 1) int32

    # ---- In-kernel embedding lookup: one-hot @ table on the MXU -------------
    lane_ids = lax.broadcasted_iota(jnp.int32, (BN, Vp), 1)
    embed_tbl = embed_ref[...]                               # (Vp, Hp) bf16
    for t in range(T):                                       # static, small
        onehot_t = (lane_ids == word_ref[t]).astype(jnp.bfloat16)   # (BN, Vp)
        x_t = jnp.dot(onehot_t, embed_tbl,
                      preferred_element_type=jnp.float32)    # (BN, Hp)
        seq_ref[pl.ds(t * BN, BN), :] = x_t.astype(jnp.bfloat16)

    unroll = True if BN <= 64 else 2
    gath = jnp.zeros((BN, Hp), jnp.float32)

    for l in range(L):                                       # static -> unrolled
        is_last = (l == L - 1)

        # -- Hoisted input projection: ONE big matmul for the whole sequence --
        # (bias already contains b_ih + folded b_hr / b_hz)
        gi_ref[...] = jnp.dot(seq_ref[...], wih_ref[l],
                              preferred_element_type=jnp.float32) + bih_ref[l]

        whh_l = whh_ref[l]                                   # (Hp, 3Hp) bf16
        bhn_l = bhn_ref[l]                                   # (1, Hp)  f32

        def cell(t, h, whh_l=whh_l, bhn_l=bhn_l):
            row0 = pl.multiple_of(t * BN, BN)
            gi_t = gi_ref[pl.ds(row0, BN), :]                # (BN, 3Hp)
            gh = jnp.dot(h.astype(jnp.bfloat16), whh_l,
                         preferred_element_type=jnp.float32)  # (BN, 3Hp)
            r = jax.nn.sigmoid(gi_t[:, :Hp] + gh[:, :Hp])
            z = jax.nn.sigmoid(gi_t[:, Hp:2 * Hp] + gh[:, Hp:2 * Hp])
            n = jnp.tanh(gi_t[:, 2 * Hp:] + r * (gh[:, 2 * Hp:] + bhn_l))
            return n + z * (h - n)                           # == (1-z)*n + z*h

        if is_last:
            # Gather out[:, idx, :] on the fly, carried in registers; the full
            # last-layer (T, BN, Hp) output is never materialized.
            def step(t, carry):
                h, g = carry
                h_new = cell(t, h)
                g = jnp.where(idx_vec == t, h_new, g)
                return (h_new, g)
            h0 = jnp.zeros((BN, Hp), jnp.float32)
            _, gath = lax.fori_loop(0, T, step, (h0, gath), unroll=unroll)
        else:
            def step(t, h):
                h_new = cell(t, h)
                row0 = pl.multiple_of(t * BN, BN)
                seq_ref[pl.ds(row0, BN), :] = h_new.astype(jnp.bfloat16)
                return h_new
            lax.fori_loop(0, T, step, jnp.zeros((BN, Hp), jnp.float32),
                          unroll=unroll)

    # ---- Decoder linear on the gathered hidden state -------------------------
    y = jnp.dot(gath.astype(jnp.bfloat16), wdec_ref[...],
                preferred_element_type=jnp.float32) + bdec_ref[...]
    y_ref[...] = y.astype(y_ref.dtype)


# ----------------------------------------------------------------------------
# Pallas wrapper
# ----------------------------------------------------------------------------
def fused_gru_decode(word_tm, idx, embed, wih, whh, bih, bhn, wdec, bdec):
    T, N, _ = word_tm.shape
    Vp, Hp = embed.shape
    L, _, G3 = wih.shape
    Op = wdec.shape[1]

    BN = _pick_batch_tile(N)
    grid = (N // BN,)
    wfull = lambda b: (0, 0, 0)

    return pl.pallas_call(
        fused_gru_decode_kernel,
        out_shape=jax.ShapeDtypeStruct((N, Op), jnp.float32),
        grid=grid,
        in_specs=[
            pl.BlockSpec((T, BN, 1), lambda b: (0, b, 0)),   # token ids
            pl.BlockSpec((BN, 1), lambda b: (b, 0)),         # gather index
            pl.BlockSpec((Vp, Hp), lambda b: (0, 0)),        # embedding table
            pl.BlockSpec((L, Hp, G3), wfull),                # W_ih (stacked)
            pl.BlockSpec((L, Hp, G3), wfull),                # W_hh (stacked)
            pl.BlockSpec((L, 1, G3), wfull),                 # b_ih (+b_hr,+b_hz)
            pl.BlockSpec((L, 1, Hp), wfull),                 # b_hn
            pl.BlockSpec((Hp, Op), lambda b: (0, 0)),        # W_dec
            pl.BlockSpec((1, Op), lambda b: (0, 0)),         # b_dec
        ],
        out_specs=pl.BlockSpec((BN, Op), lambda b: (b, 0)),
        scratch_shapes=[
            pltpu.VMEM((T * BN, Hp), jnp.bfloat16),          # seq_ref
            pltpu.VMEM((T * BN, 3 * Hp), jnp.float32),       # gi_ref
        ],
        compiler_params=pltpu.CompilerParams(
            dimension_semantics=("parallel",),
            vmem_limit_bytes=48 * 1024 * 1024),
    )(word_tm, idx, embed, wih, whh, bih, bhn, wdec, bdec)


# ----------------------------------------------------------------------------
# Full forward pass (only tiny int32 glue stays in XLA)
# ----------------------------------------------------------------------------
def before_rnn_idx(word):
    """Vectorized Seq2SeqCond.before_rnn: first t in [0, T-2] with
    word[i,t] != 0 and word[i,t+1] == 0, else T-1."""
    N, T = word.shape
    cond = (word[:, :-1] != 0) & (word[:, 1:] == 0)
    has = jnp.any(cond, axis=1)
    first = jnp.argmax(cond, axis=1)
    return jnp.where(has, first, T - 1).astype(jnp.int32)


@functools.partial(jax.jit, static_argnames=("output_size",))
def seq2seq_cond_forward(word, kp, output_size):
    N, T = word.shape
    Np = _ceil_to(max(N, 8), 8)                              # explicit batch pad
    word_p = jnp.pad(word, ((0, Np - N), (0, 0))).astype(jnp.int32)
    idx = before_rnn_idx(word_p).reshape(Np, 1)              # (Np, 1)
    word_tm = jnp.transpose(word_p, (1, 0))[:, :, None]      # (T, Np, 1) ids only

    y_pad = fused_gru_decode(word_tm, idx, kp["embed"], kp["wih"], kp["whh"],
                             kp["bih"], kp["bhn"], kp["wdec"], kp["bdec"])
    return y_pad[:N, :output_size]


# ----------------------------------------------------------------------------
# Parameters: real-sized (for reference) + packed/padded/stacked (for kernel)
# ----------------------------------------------------------------------------
def init_params(key, q_token_count, embed_size, hidden_size, num_layers,
                output_size):
    keys = jax.random.split(key, 3 + 4 * num_layers)
    scale = 0.1
    params = {}
    params["embed"] = scale * jax.random.normal(
        keys[0], (q_token_count, embed_size), jnp.float32)

    wih, whh, bih, bhh = [], [], [], []
    for l in range(num_layers):
        d_in = embed_size if l == 0 else hidden_size
        k0, k1, k2, k3 = keys[1 + 4 * l: 5 + 4 * l]
        wih.append(scale * jax.random.normal(k0, (d_in, 3 * hidden_size), jnp.float32))
        whh.append(scale * jax.random.normal(k1, (hidden_size, 3 * hidden_size), jnp.float32))
        bih.append(scale * jax.random.normal(k2, (1, 3 * hidden_size), jnp.float32))
        bhh.append(scale * jax.random.normal(k3, (1, 3 * hidden_size), jnp.float32))
    params["wih"], params["whh"], params["bih"], params["bhh"] = wih, whh, bih, bhh

    params["wdec"] = scale * jax.random.normal(
        keys[-2], (hidden_size, output_size), jnp.float32)
    params["bdec"] = scale * jax.random.normal(
        keys[-1], (1, output_size), jnp.float32)
    return params


def pack_params(params):
    """Zero-pad lane dims to multiples of 128, stack layers, cast weights bf16,
    fold b_hr/b_hz into the input-projection bias (exact, done in f32)."""
    embed = params["embed"]
    wdec, bdec = params["wdec"], params["bdec"]
    H = params["whh"][0].shape[0]
    V, E = embed.shape
    O = wdec.shape[1]
    Hp = _ceil_to(max(H, E), LANE)      # shared padded width for x and h
    Op = _ceil_to(O, LANE)
    Vp = _ceil_to(V, LANE)

    def pad_gates(w, rows_to):          # (rows, 3H) -> (rows_to, 3*Hp)
        rows = w.shape[0]
        w3 = w.reshape(rows, 3, H)
        w3 = jnp.pad(w3, ((0, rows_to - rows), (0, 0), (0, Hp - H)))
        return w3.reshape(rows_to, 3 * Hp)

    bih_comb, bhn = [], []
    for bi, bh in zip(params["bih"], params["bhh"]):
        bih_comb.append(bi.at[:, :2 * H].add(bh[:, :2 * H]))     # fold b_hr, b_hz
        bhn.append(jnp.pad(bh[:, 2 * H:], ((0, 0), (0, Hp - H))))

    kp = {
        "embed": jnp.pad(embed, ((0, Vp - V), (0, Hp - E))).astype(jnp.bfloat16),
        "wih": jnp.stack([pad_gates(w, Hp) for w in params["wih"]]).astype(jnp.bfloat16),
        "whh": jnp.stack([pad_gates(w, Hp) for w in params["whh"]]).astype(jnp.bfloat16),
        "bih": jnp.stack([pad_gates(b, 1) for b in bih_comb]).astype(jnp.float32),
        "bhn": jnp.stack(bhn).astype(jnp.float32),               # (L, 1, Hp)
        "wdec": jnp.pad(wdec, ((0, Hp - H), (0, Op - O))).astype(jnp.bfloat16),
        "bdec": jnp.pad(bdec, ((0, 0), (0, Op - O))).astype(jnp.float32),
    }
    return kp


# ----------------------------------------------------------------------------
# Pure-JAX reference (f32, unpadded) for a correctness check
# ----------------------------------------------------------------------------
def reference_forward(word, params):
    N, T = word.shape
    H = params["whh"][0].shape[0]
    idx = before_rnn_idx(word)
    x = jnp.take(params["embed"], word, axis=0)          # (N, T, E)
    seq = jnp.transpose(x, (1, 0, 2))                    # (T, N, E)
    for l in range(len(params["wih"])):
        wih, whh = params["wih"][l], params["whh"][l]
        bih, bhh = params["bih"][l], params["bhh"][l]

        def step(h, x_t):
            gi = x_t @ wih + bih
            gh = h @ whh + bhh
            r = jax.nn.sigmoid(gi[:, :H] + gh[:, :H])
            z = jax.nn.sigmoid(gi[:, H:2 * H] + gh[:, H:2 * H])
            n = jnp.tanh(gi[:, 2 * H:] + r * gh[:, 2 * H:])
            h_new = (1.0 - z) * n + z * h
            return h_new, h_new

        _, seq = lax.scan(step, jnp.zeros((N, H), jnp.float32), seq)
    out = jnp.transpose(seq, (1, 0, 2))                  # (N, T, H)
    gathered = out[jnp.arange(N), idx]                   # (N, H)
    return gathered @ params["wdec"] + params["bdec"]


# ----------------------------------------------------------------------------
if __name__ == "__main__":
    Q_TOKENS, EMBED, HIDDEN, NUM_LAYERS, OUTPUT = 50, 32, 32, 2, 16
    N, T = 8, 8

    key = jax.random.PRNGKey(0)
    k_param, k_tok = jax.random.split(key)

    params = init_params(k_param, Q_TOKENS, EMBED, HIDDEN, NUM_LAYERS, OUTPUT)
    kp = pack_params(params)

    # Deterministic padded token sequences: nonzero tokens followed by 0s.
    tokens = jax.random.randint(k_tok, (N, T), 1, Q_TOKENS)
    lens = jnp.array([8, 3, 5, 8, 1, 6, 2, 7], dtype=jnp.int32)
    mask = jnp.arange(T)[None, :] < lens[:, None]
    word = (tokens * mask).astype(jnp.int32)             # (N, T)

    logits = seq2seq_cond_forward(word, kp, output_size=OUTPUT)
    logits = jax.block_until_ready(logits)

    ref = reference_forward(word, params)

    assert logits.shape == (N, OUTPUT)
    assert bool(jnp.all(jnp.isfinite(logits)))
    assert bool(jnp.allclose(logits, ref, atol=2e-2, rtol=2e-2)), (
        float(jnp.max(jnp.abs(logits - ref))))
    print("KERNEL_OK")
</pallas_src>

<mosaic_0001>
module attributes {stable_mosaic.version = 11 : i64} {
  func.func @fused_gru_decode_kernel(%arg0: i32, %arg1: memref<8x8x1xi32, #tpu.memory_space<vmem>>, %arg2: memref<8x1xi32, #tpu.memory_space<vmem>>, %arg3: memref<128x128xbf16, #tpu.memory_space<vmem>>, %arg4: memref<2x128x384xbf16, #tpu.memory_space<vmem>>, %arg5: memref<2x128x384xbf16, #tpu.memory_space<vmem>>, %arg6: memref<2x1x384xf32, #tpu.memory_space<vmem>>, %arg7: memref<2x1x128xf32, #tpu.memory_space<vmem>>, %arg8: memref<128x128xbf16, #tpu.memory_space<vmem>>, %arg9: memref<1x128xf32, #tpu.memory_space<vmem>>, %arg10: memref<8x128xf32, #tpu.memory_space<vmem>>, %arg11: memref<64x128xbf16, #tpu.memory_space<vmem>>, %arg12: memref<64x384xf32, #tpu.memory_space<vmem>>) attributes {dimension_semantics = [#tpu.dimension_semantics<parallel>], iteration_bounds = array<i64: 1>, scalar_prefetch = 0 : i64, scratch_operands = 2 : i64, tpu.core_type = #tpu.core_type<tc>, window_params = [{transform_indices = @transform_0, window_bounds = array<i64: 8, 8, 1>}, {transform_indices = @transform_1, window_bounds = array<i64: 8, 1>}, {pipeline_mode = #tpu.pipeline_mode<synchronous>, transform_indices = @transform_2, window_bounds = array<i64: 128, 128>}, {pipeline_mode = #tpu.pipeline_mode<synchronous>, transform_indices = @transform_3, window_bounds = array<i64: 2, 128, 384>}, {pipeline_mode = #tpu.pipeline_mode<synchronous>, transform_indices = @transform_4, window_bounds = array<i64: 2, 128, 384>}, {pipeline_mode = #tpu.pipeline_mode<synchronous>, transform_indices = @transform_5, window_bounds = array<i64: 2, 1, 384>}, {pipeline_mode = #tpu.pipeline_mode<synchronous>, transform_indices = @transform_6, window_bounds = array<i64: 2, 1, 128>}, {pipeline_mode = #tpu.pipeline_mode<synchronous>, transform_indices = @transform_7, window_bounds = array<i64: 128, 128>}, {pipeline_mode = #tpu.pipeline_mode<synchronous>, transform_indices = @transform_8, window_bounds = array<i64: 1, 128>}, {transform_indices = @transform_9, window_bounds = array<i64: 8, 128>}]} {
    %c0 = arith.constant 0 : index
    %c0_0 = arith.constant 0 : index
    %0 = vector.load %arg2[%c0, %c0_0] : memref<8x1xi32, #tpu.memory_space<vmem>>, vector<8x1xi32>
    %1 = tpu.iota {dimensions = array<i32: 1>} : vector<8x128xi32>
    %c0_1 = arith.constant 0 : index
    %c0_2 = arith.constant 0 : index
    %2 = vector.load %arg3[%c0_1, %c0_2] : memref<128x128xbf16, #tpu.memory_space<vmem>>, vector<128x128xbf16>
    %c0_3 = arith.constant 0 : index
    %c0_4 = arith.constant 0 : index
    %c0_5 = arith.constant 0 : index
    %3 = vector.load %arg1[%c0_3, %c0_4, %c0_5] : memref<8x8x1xi32, #tpu.memory_space<vmem>>, vector<1x8x1xi32>
    %4 = vector.shape_cast %3 : vector<1x8x1xi32> to vector<8x1xi32>
    %5 = vector.broadcast %4 : vector<8x1xi32> to vector<8x128xi32>
    %6 = arith.cmpi eq, %1, %5 : vector<8x128xi32>
    %7 = arith.extui %6 : vector<8x128xi1> to vector<8x128xi32>
    %8 = arith.sitofp %7 : vector<8x128xi32> to vector<8x128xf32>
    %9 = arith.truncf %8 : vector<8x128xf32> to vector<8x128xbf16>
    %cst = arith.constant dense<0.000000e+00> : vector<8x128xf32>
    %10 = tpu.matmul %9, %2, %cst {dimension_numbers = #tpu.dot_dimension_numbers<[1], [0], [0], [1], [0, 0, 1, 1], [], []>} : vector<8x128xbf16>, vector<128x128xbf16>, vector<8x128xf32> -> vector<8x128xf32>
    %11 = arith.truncf %10 : vector<8x128xf32> to vector<8x128xbf16>
    %c0_6 = arith.constant 0 : index
    %c0_7 = arith.constant 0 : index
    %12 = vector.load %arg11[%c0_6, %c0_7] : memref<64x128xbf16, #tpu.memory_space<vmem>>, vector<8x128xbf16>
    tpu.vector_store %arg11[%c0_6, %c0_7], %11 {strides = array<i32>} : memref<64x128xbf16, #tpu.memory_space<vmem>>, vector<8x128xbf16>,
    %c1 = arith.constant 1 : index
    %c0_8 = arith.constant 0 : index
    %c0_9 = arith.constant 0 : index
    %13 = vector.load %arg1[%c1, %c0_8, %c0_9] : memref<8x8x1xi32, #tpu.memory_space<vmem>>, vector<1x8x1xi32>
    %14 = vector.shape_cast %13 : vector<1x8x1xi32> to vector<8x1xi32>
    %15 = vector.broadcast %14 : vector<8x1xi32> to vector<8x128xi32>
    %16 = arith.cmpi eq, %1, %15 : vector<8x128xi32>
    %17 = arith.extui %16 : vector<8x128xi1> to vector<8x128xi32>
    %18 = arith.sitofp %17 : vector<8x128xi32> to vector<8x128xf32>
    %19 = arith.truncf %18 : vector<8x128xf32> to vector<8x128xbf16>
    %cst_10 = arith.constant dense<0.000000e+00> : vector<8x128xf32>
    %20 = tpu.matmul %19, %2, %cst_10 {dimension_numbers = #tpu.dot_dimension_numbers<[1], [0], [0], [1], [0, 0, 1, 1], [], []>} : vector<8x128xbf16>, vector<128x128xbf16>, vector<8x128xf32> -> vector<8x128xf32>
    %21 = arith.truncf %20 : vector<8x128xf32> to vector<8x128xbf16>
    %c8 = arith.constant 8 : index
    %c0_11 = arith.constant 0 : index
    %22 = vector.load %arg11[%c8, %c0_11] : memref<64x128xbf16, #tpu.memory_space<vmem>>, vector<8x128xbf16>
    tpu.vector_store %arg11[%c8, %c0_11], %21 {strides = array<i32>} : memref<64x128xbf16, #tpu.memory_space<vmem>>, vector<8x128xbf16>,
    %c2 = arith.constant 2 : index
    %c0_12 = arith.constant 0 : index
    %c0_13 = arith.constant 0 : index
    %23 = vector.load %arg1[%c2, %c0_12, %c0_13] : memref<8x8x1xi32, #tpu.memory_space<vmem>>, vector<1x8x1xi32>
    %24 = vector.shape_cast %23 : vector<1x8x1xi32> to vector<8x1xi32>
    %25 = vector.broadcast %24 : vector<8x1xi32> to vector<8x128xi32>
    %26 = arith.cmpi eq, %1, %25 : vector<8x128xi32>
    %27 = arith.extui %26 : vector<8x128xi1> to vector<8x128xi32>
    %28 = arith.sitofp %27 : vector<8x128xi32> to vector<8x128xf32>
    %29 = arith.truncf %28 : vector<8x128xf32> to vector<8x128xbf16>
    %cst_14 = arith.constant dense<0.000000e+00> : vector<8x128xf32>
    %30 = tpu.matmul %29, %2, %cst_14 {dimension_numbers = #tpu.dot_dimension_numbers<[1], [0], [0], [1], [0, 0, 1, 1], [], []>} : vector<8x128xbf16>, vector<128x128xbf16>, vector<8x128xf32> -> vector<8x128xf32>
    %31 = arith.truncf %30 : vector<8x128xf32> to vector<8x128xbf16>
    %c16 = arith.constant 16 : index
    %c0_15 = arith.constant 0 : index
    %32 = vector.load %arg11[%c16, %c0_15] : memref<64x128xbf16, #tpu.memory_space<vmem>>, vector<8x128xbf16>
    tpu.vector_store %arg11[%c16, %c0_15], %31 {strides = array<i32>} : memref<64x128xbf16, #tpu.memory_space<vmem>>, vector<8x128xbf16>,
    %c3 = arith.constant 3 : index
    %c0_16 = arith.constant 0 : index
    %c0_17 = arith.constant 0 : index
    %33 = vector.load %arg1[%c3, %c0_16, %c0_17] : memref<8x8x1xi32, #tpu.memory_space<vmem>>, vector<1x8x1xi32>
    %34 = vector.shape_cast %33 : vector<1x8x1xi32> to vector<8x1xi32>
    %35 = vector.broadcast %34 : vector<8x1xi32> to vector<8x128xi32>
    %36 = arith.cmpi eq, %1, %35 : vector<8x128xi32>
    %37 = arith.extui %36 : vector<8x128xi1> to vector<8x128xi32>
    %38 = arith.sitofp %37 : vector<8x128xi32> to vector<8x128xf32>
    %39 = arith.truncf %38 : vector<8x128xf32> to vector<8x128xbf16>
    %cst_18 = arith.constant dense<0.000000e+00> : vector<8x128xf32>
    %40 = tpu.matmul %39, %2, %cst_18 {dimension_numbers = #tpu.dot_dimension_numbers<[1], [0], [0], [1], [0, 0, 1, 1], [], []>} : vector<8x128xbf16>, vector<128x128xbf16>, vector<8x128xf32> -> vector<8x128xf32>
    %41 = arith.truncf %40 : vector<8x128xf32> to vector<8x128xbf16>
    %c24 = arith.constant 24 : index
    %c0_19 = arith.constant 0 : index
    %42 = vector.load %arg11[%c24, %c0_19] : memref<64x128xbf16, #tpu.memory_space<vmem>>, vector<8x128xbf16>
    tpu.vector_store %arg11[%c24, %c0_19], %41 {strides = array<i32>} : memref<64x128xbf16, #tpu.memory_space<vmem>>, vector<8x128xbf16>,
    %c4 = arith.constant 4 : index
    %c0_20 = arith.constant 0 : index
    %c0_21 = arith.constant 0 : index
    %43 = vector.load %arg1[%c4, %c0_20, %c0_21] : memref<8x8x1xi32, #tpu.memory_space<vmem>>, vector<1x8x1xi32>
    %44 = vector.shape_cast %43 : vector<1x8x1xi32> to vector<8x1xi32>
    %45 = vector.broadcast %44 : vector<8x1xi32> to vector<8x128xi32>
    %46 = arith.cmpi eq, %1, %45 : vector<8x128xi32>
    %47 = arith.extui %46 : vector<8x128xi1> to vector<8x128xi32>
    %48 = arith.sitofp %47 : vector<8x128xi32> to vector<8x128xf32>
    %49 = arith.truncf %48 : vector<8x128xf32> to vector<8x128xbf16>
    %cst_22 = arith.constant dense<0.000000e+00> : vector<8x128xf32>
    %50 = tpu.matmul %49, %2, %cst_22 {dimension_numbers = #tpu.dot_dimension_numbers<[1], [0], [0], [1], [0, 0, 1, 1], [], []>} : vector<8x128xbf16>, vector<128x128xbf16>, vector<8x128xf32> -> vector<8x128xf32>
    %51 = arith.truncf %50 : vector<8x128xf32> to vector<8x128xbf16>
    %c32 = arith.constant 32 : index
    %c0_23 = arith.constant 0 : index
    %52 = vector.load %arg11[%c32, %c0_23] : memref<64x128xbf16, #tpu.memory_space<vmem>>, vector<8x128xbf16>
    tpu.vector_store %arg11[%c32, %c0_23], %51 {strides = array<i32>} : memref<64x128xbf16, #tpu.memory_space<vmem>>, vector<8x128xbf16>,
    %c5 = arith.constant 5 : index
    %c0_24 = arith.constant 0 : index
    %c0_25 = arith.constant 0 : index
    %53 = vector.load %arg1[%c5, %c0_24, %c0_25] : memref<8x8x1xi32, #tpu.memory_space<vmem>>, vector<1x8x1xi32>
    %54 = vector.shape_cast %53 : vector<1x8x1xi32> to vector<8x1xi32>
    %55 = vector.broadcast %54 : vector<8x1xi32> to vector<8x128xi32>
    %56 = arith.cmpi eq, %1, %55 : vector<8x128xi32>
    %57 = arith.extui %56 : vector<8x128xi1> to vector<8x128xi32>
    %58 = arith.sitofp %57 : vector<8x128xi32> to vector<8x128xf32>
    %59 = arith.truncf %58 : vector<8x128xf32> to vector<8x128xbf16>
    %cst_26 = arith.constant dense<0.000000e+00> : vector<8x128xf32>
    %60 = tpu.matmul %59, %2, %cst_26 {dimension_numbers = #tpu.dot_dimension_numbers<[1], [0], [0], [1], [0, 0, 1, 1], [], []>} : vector<8x128xbf16>, vector<128x128xbf16>, vector<8x128xf32> -> vector<8x128xf32>
    %61 = arith.truncf %60 : vector<8x128xf32> to vector<8x128xbf16>
    %c40 = arith.constant 40 : index
    %c0_27 = arith.constant 0 : index
    %62 = vector.load %arg11[%c40, %c0_27] : memref<64x128xbf16, #tpu.memory_space<vmem>>, vector<8x128xbf16>
    tpu.vector_store %arg11[%c40, %c0_27], %61 {strides = array<i32>} : memref<64x128xbf16, #tpu.memory_space<vmem>>, vector<8x128xbf16>,
    %c6 = arith.constant 6 : index
    %c0_28 = arith.constant 0 : index
    %c0_29 = arith.constant 0 : index
    %63 = vector.load %arg1[%c6, %c0_28, %c0_29] : memref<8x8x1xi32, #tpu.memory_space<vmem>>, vector<1x8x1xi32>
    %64 = vector.shape_cast %63 : vector<1x8x1xi32> to vector<8x1xi32>
    %65 = vector.broadcast %64 : vector<8x1xi32> to vector<8x128xi32>
    %66 = arith.cmpi eq, %1, %65 : vector<8x128xi32>
    %67 = arith.extui %66 : vector<8x128xi1> to vector<8x128xi32>
    %68 = arith.sitofp %67 : vector<8x128xi32> to vector<8x128xf32>
    %69 = arith.truncf %68 : vector<8x128xf32> to vector<8x128xbf16>
    %cst_30 = arith.constant dense<0.000000e+00> : vector<8x128xf32>
    %70 = tpu.matmul %69, %2, %cst_30 {dimension_numbers = #tpu.dot_dimension_numbers<[1], [0], [0], [1], [0, 0, 1, 1], [], []>} : vector<8x128xbf16>, vector<128x128xbf16>, vector<8x128xf32> -> vector<8x128xf32>
    %71 = arith.truncf %70 : vector<8x128xf32> to vector<8x128xbf16>
    %c48 = arith.constant 48 : index
    %c0_31 = arith.constant 0 : index
    %72 = vector.load %arg11[%c48, %c0_31] : memref<64x128xbf16, #tpu.memory_space<vmem>>, vector<8x128xbf16>
    tpu.vector_store %arg11[%c48, %c0_31], %71 {strides = array<i32>} : memref<64x128xbf16, #tpu.memory_space<vmem>>, vector<8x128xbf16>,
    %c7 = arith.constant 7 : index
    %c0_32 = arith.constant 0 : index
    %c0_33 = arith.constant 0 : index
    %73 = vector.load %arg1[%c7, %c0_32, %c0_33] : memref<8x8x1xi32, #tpu.memory_space<vmem>>, vector<1x8x1xi32>
    %74 = vector.shape_cast %73 : vector<1x8x1xi32> to vector<8x1xi32>
    %75 = vector.broadcast %74 : vector<8x1xi32> to vector<8x128xi32>
    %76 = arith.cmpi eq, %1, %75 : vector<8x128xi32>
    %77 = arith.extui %76 : vector<8x128xi1> to vector<8x128xi32>
    %78 = arith.sitofp %77 : vector<8x128xi32> to vector<8x128xf32>
    %79 = arith.truncf %78 : vector<8x128xf32> to vector<8x128xbf16>
    %cst_34 = arith.constant dense<0.000000e+00> : vector<8x128xf32>
    %80 = tpu.matmul %79, %2, %cst_34 {dimension_numbers = #tpu.dot_dimension_numbers<[1], [0], [0], [1], [0, 0, 1, 1], [], []>} : vector<8x128xbf16>, vector<128x128xbf16>, vector<8x128xf32> -> vector<8x128xf32>
    %81 = arith.truncf %80 : vector<8x128xf32> to vector<8x128xbf16>
    %c56 = arith.constant 56 : index
    %c0_35 = arith.constant 0 : index
    %82 = vector.load %arg11[%c56, %c0_35] : memref<64x128xbf16, #tpu.memory_space<vmem>>, vector<8x128xbf16>
    tpu.vector_store %arg11[%c56, %c0_35], %81 {strides = array<i32>} : memref<64x128xbf16, #tpu.memory_space<vmem>>, vector<8x128xbf16>,
    %cst_36 = arith.constant 0.000000e+00 : f32
    %83 = vector.broadcast %cst_36 : f32 to vector<8x128xf32>
    %c0_37 = arith.constant 0 : index
    %c0_38 = arith.constant 0 : index
    %84 = vector.load %arg11[%c0_37, %c0_38] : memref<64x128xbf16, #tpu.memory_space<vmem>>, vector<64x128xbf16>
    %c0_39 = arith.constant 0 : index
    %c0_40 = arith.constant 0 : index
    %c0_41 = arith.constant 0 : index
    %85 = vector.load %arg4[%c0_39, %c0_40, %c0_41] : memref<2x128x384xbf16, #tpu.memory_space<vmem>>, vector<1x128x384xbf16>
    %86 = vector.shape_cast %85 : vector<1x128x384xbf16> to vector<128x384xbf16>
    %cst_42 = arith.constant dense<0.000000e+00> : vector<64x384xf32>
    %87 = tpu.matmul %84, %86, %cst_42 {dimension_numbers = #tpu.dot_dimension_numbers<[1], [0], [0], [1], [0, 0, 1, 1], [], []>} : vector<64x128xbf16>, vector<128x384xbf16>, vector<64x384xf32> -> vector<64x384xf32>
    %c0_43 = arith.constant 0 : index
    %c0_44 = arith.constant 0 : index
    %c0_45 = arith.constant 0 : index
    %88 = vector.load %arg6[%c0_43, %c0_44, %c0_45] : memref<2x1x384xf32, #tpu.memory_space<vmem>>, vector<1x1x384xf32>
    %89 = vector.shape_cast %88 : vector<1x1x384xf32> to vector<1x384xf32>
    %90 = vector.broadcast %89 : vector<1x384xf32> to vector<64x384xf32>
    %91 = arith.addf %87, %90 : vector<64x384xf32>
    %c0_46 = arith.constant 0 : index
    %c0_47 = arith.constant 0 : index
    %92 = vector.load %arg12[%c0_46, %c0_47] : memref<64x384xf32, #tpu.memory_space<vmem>>, vector<64x384xf32>
    tpu.vector_store %arg12[%c0_46, %c0_47], %91 {strides = array<i32>} : memref<64x384xf32, #tpu.memory_space<vmem>>, vector<64x384xf32>,
    %c0_48 = arith.constant 0 : index
    %c0_49 = arith.constant 0 : index
    %c0_50 = arith.constant 0 : index
    %93 = vector.load %arg5[%c0_48, %c0_49, %c0_50] : memref<2x128x384xbf16, #tpu.memory_space<vmem>>, vector<1x128x384xbf16>
    %94 = vector.shape_cast %93 : vector<1x128x384xbf16> to vector<128x384xbf16>
    %c0_51 = arith.constant 0 : index
    %c0_52 = arith.constant 0 : index
    %c0_53 = arith.constant 0 : index
    %95 = vector.load %arg7[%c0_51, %c0_52, %c0_53] : memref<2x1x128xf32, #tpu.memory_space<vmem>>, vector<1x1x128xf32>
    %96 = vector.shape_cast %95 : vector<1x1x128xf32> to vector<1x128xf32>
    %cst_54 = arith.constant 0.000000e+00 : f32
    %97 = vector.broadcast %cst_54 : f32 to vector<8x128xf32>
    %c0_i32 = arith.constant 0 : i32
    %c8_i32 = arith.constant 8 : i32
    %98 = arith.muli %c0_i32, %c8_i32 : i32
    %99 = tpu.assume_multiple %98, 8 : i32
    %100 = arith.index_cast %99 : i32 to index
    %c0_55 = arith.constant 0 : index
    %101 = vector.load %arg12[%100, %c0_55] : memref<64x384xf32, #tpu.memory_space<vmem>>, vector<8x384xf32>
    %102 = arith.truncf %97 : vector<8x128xf32> to vector<8x128xbf16>
    %cst_56 = arith.constant dense<0.000000e+00> : vector<8x384xf32>
    %103 = tpu.matmul %102, %94, %cst_56 {dimension_numbers = #tpu.dot_dimension_numbers<[1], [0], [0], [1], [0, 0, 1, 1], [], []>} : vector<8x128xbf16>, vector<128x384xbf16>, vector<8x384xf32> -> vector<8x384xf32>
    %104 = vector.extract_strided_slice %101 {offsets = [0, 0], sizes = [8, 128], strides = [1, 1]} : vector<8x384xf32> to vector<8x128xf32>
    %105 = vector.extract_strided_slice %103 {offsets = [0, 0], sizes = [8, 128], strides = [1, 1]} : vector<8x384xf32> to vector<8x128xf32>
    %106 = arith.addf %104, %105 : vector<8x128xf32>
    %107 = arith.negf %106 : vector<8x128xf32>
    %108 = math.exp %107 : vector<8x128xf32>
    %cst_57 = arith.constant 1.000000e+00 : f32
    %109 = vector.broadcast %cst_57 : f32 to vector<8x128xf32>
    %110 = arith.addf %109, %108 : vector<8x128xf32>
    %111 = arith.divf %109, %110 : vector<8x128xf32>
    %112 = vector.extract_strided_slice %101 {offsets = [0, 128], sizes = [8, 128], strides = [1, 1]} : vector<8x384xf32> to vector<8x128xf32>
    %113 = vector.extract_strided_slice %103 {offsets = [0, 128], sizes = [8, 128], strides = [1, 1]} : vector<8x384xf32> to vector<8x128xf32>
    %114 = arith.addf %112, %113 : vector<8x128xf32>
    %115 = arith.negf %114 : vector<8x128xf32>
    %116 = math.exp %115 : vector<8x128xf32>
    %cst_58 = arith.constant 1.000000e+00 : f32
    %117 = vector.broadcast %cst_58 : f32 to vector<8x128xf32>
    %118 = arith.addf %117, %116 : vector<8x128xf32>
    %119 = arith.divf %117, %118 : vector<8x128xf32>
    %120 = vector.extract_strided_slice %101 {offsets = [0, 256], sizes = [8, 128], strides = [1, 1]} : vector<8x384xf32> to vector<8x128xf32>
    %121 = vector.extract_strided_slice %103 {offsets = [0, 256], sizes = [8, 128], strides = [1, 1]} : vector<8x384xf32> to vector<8x128xf32>
    %122 = vector.broadcast %96 : vector<1x128xf32> to vector<8x128xf32>
    %123 = arith.addf %121, %122 : vector<8x128xf32>
    %124 = arith.mulf %111, %123 : vector<8x128xf32>
    %125 = arith.addf %120, %124 : vector<8x128xf32>
    %126 = math.tanh %125 : vector<8x128xf32>
    %127 = arith.subf %97, %126 : vector<8x128xf32>
    %128 = arith.mulf %119, %127 : vector<8x128xf32>
    %129 = arith.addf %126, %128 : vector<8x128xf32>
    %c8_i32_59 = arith.constant 8 : i32
    %130 = arith.muli %c0_i32, %c8_i32_59 : i32
    %131 = tpu.assume_multiple %130, 8 : i32
    %132 = arith.truncf %129 : vector<8x128xf32> to vector<8x128xbf16>
    %133 = arith.index_cast %131 : i32 to index
    %c0_60 = arith.constant 0 : index
    %134 = vector.load %arg11[%133, %c0_60] : memref<64x128xbf16, #tpu.memory_space<vmem>>, vector<8x128xbf16>
    tpu.vector_store %arg11[%133, %c0_60], %132 {strides = array<i32>} : memref<64x128xbf16, #tpu.memory_space<vmem>>, vector<8x128xbf16>,
    %c1_i32 = arith.constant 1 : i32
    %c8_i32_61 = arith.constant 8 : i32
    %135 = arith.muli %c1_i32, %c8_i32_61 : i32
    %136 = tpu.assume_multiple %135, 8 : i32
    %137 = arith.index_cast %136 : i32 to index
    %c0_62 = arith.constant 0 : index
    %138 = vector.load %arg12[%137, %c0_62] : memref<64x384xf32, #tpu.memory_space<vmem>>, vector<8x384xf32>
    %139 = arith.truncf %129 : vector<8x128xf32> to vector<8x128xbf16>
    %cst_63 = arith.constant dense<0.000000e+00> : vector<8x384xf32>
    %140 = tpu.matmul %139, %94, %cst_63 {dimension_numbers = #tpu.dot_dimension_numbers<[1], [0], [0], [1], [0, 0, 1, 1], [], []>} : vector<8x128xbf16>, vector<128x384xbf16>, vector<8x384xf32> -> vector<8x384xf32>
    %141 = vector.extract_strided_slice %138 {offsets = [0, 0], sizes = [8, 128], strides = [1, 1]} : vector<8x384xf32> to vector<8x128xf32>
    %142 = vector.extract_strided_slice %140 {offsets = [0, 0], sizes = [8, 128], strides = [1, 1]} : vector<8x384xf32> to vector<8x128xf32>
    %143 = arith.addf %141, %142 : vector<8x128xf32>
    %144 = arith.negf %143 : vector<8x128xf32>
    %145 = math.exp %144 : vector<8x128xf32>
    %cst_64 = arith.constant 1.000000e+00 : f32
    %146 = vector.broadcast %cst_64 : f32 to vector<8x128xf32>
    %147 = arith.addf %146, %145 : vector<8x128xf32>
    %148 = arith.divf %146, %147 : vector<8x128xf32>
    %149 = vector.extract_strided_slice %138 {offsets = [0, 128], sizes = [8, 128], strides = [1, 1]} : vector<8x384xf32> to vector<8x128xf32>
    %150 = vector.extract_strided_slice %140 {offsets = [0, 128], sizes = [8, 128], strides = [1, 1]} : vector<8x384xf32> to vector<8x128xf32>
    %151 = arith.addf %149, %150 : vector<8x128xf32>
    %152 = arith.negf %151 : vector<8x128xf32>
    %153 = math.exp %152 : vector<8x128xf32>
    %cst_65 = arith.constant 1.000000e+00 : f32
    %154 = vector.broadcast %cst_65 : f32 to vector<8x128xf32>
    %155 = arith.addf %154, %153 : vector<8x128xf32>
    %156 = arith.divf %154, %155 : vector<8x128xf32>
    %157 = vector.extract_strided_slice %138 {offsets = [0, 256], sizes = [8, 128], strides = [1, 1]} : vector<8x384xf32> to vector<8x128xf32>
    %158 = vector.extract_strided_slice %140 {offsets = [0, 256], sizes = [8, 128], strides = [1, 1]} : vector<8x384xf32> to vector<8x128xf32>
    %159 = vector.broadcast %96 : vector<1x128xf32> to vector<8x128xf32>
    %160 = arith.addf %158, %159 : vector<8x128xf32>
    %161 = arith.mulf %148, %160 : vector<8x128xf32>
    %162 = arith.addf %157, %161 : vector<8x128xf32>
    %163 = math.tanh %162 : vector<8x128xf32>
    %164 = arith.subf %129, %163 : vector<8x128xf32>
    %165 = arith.mulf %156, %164 : vector<8x128xf32>
    %166 = arith.addf %163, %165 : vector<8x128xf32>
    %c8_i32_66 = arith.constant 8 : i32
    %167 = arith.muli %c1_i32, %c8_i32_66 : i32
    %168 = tpu.assume_multiple %167, 8 : i32
    %169 = arith.truncf %166 : vector<8x128xf32> to vector<8x128xbf16>
    %170 = arith.index_cast %168 : i32 to index
    %c0_67 = arith.constant 0 : index
    %171 = vector.load %arg11[%170, %c0_67] : memref<64x128xbf16, #tpu.memory_space<vmem>>, vector<8x128xbf16>
    tpu.vector_store %arg11[%170, %c0_67], %169 {strides = array<i32>} : memref<64x128xbf16, #tpu.memory_space<vmem>>, vector<8x128xbf16>,
    %c2_i32 = arith.constant 2 : i32
    %c8_i32_68 = arith.constant 8 : i32
    %172 = arith.muli %c2_i32, %c8_i32_68 : i32
    %173 = tpu.assume_multiple %172, 8 : i32
    %174 = arith.index_cast %173 : i32 to index
    %c0_69 = arith.constant 0 : index
    %175 = vector.load %arg12[%174, %c0_69] : memref<64x384xf32, #tpu.memory_space<vmem>>, vector<8x384xf32>
    %176 = arith.truncf %166 : vector<8x128xf32> to vector<8x128xbf16>
    %cst_70 = arith.constant dense<0.000000e+00> : vector<8x384xf32>
    %177 = tpu.matmul %176, %94, %cst_70 {dimension_numbers = #tpu.dot_dimension_numbers<[1], [0], [0], [1], [0, 0, 1, 1], [], []>} : vector<8x128xbf16>, vector<128x384xbf16>, vector<8x384xf32> -> vector<8x384xf32>
    %178 = vector.extract_strided_slice %175 {offsets = [0, 0], sizes = [8, 128], strides = [1, 1]} : vector<8x384xf32> to vector<8x128xf32>
    %179 = vector.extract_strided_slice %177 {offsets = [0, 0], sizes = [8, 128], strides = [1, 1]} : vector<8x384xf32> to vector<8x128xf32>
    %180 = arith.addf %178, %179 : vector<8x128xf32>
    %181 = arith.negf %180 : vector<8x128xf32>
    %182 = math.exp %181 : vector<8x128xf32>
    %cst_71 = arith.constant 1.000000e+00 : f32
    %183 = vector.broadcast %cst_71 : f32 to vector<8x128xf32>
    %184 = arith.addf %183, %182 : vector<8x128xf32>
    %185 = arith.divf %183, %184 : vector<8x128xf32>
    %186 = vector.extract_strided_slice %175 {offsets = [0, 128], sizes = [8, 128], strides = [1, 1]} : vector<8x384xf32> to vector<8x128xf32>
    %187 = vector.extract_strided_slice %177 {offsets = [0, 128], sizes = [8, 128], strides = [1, 1]} : vector<8x384xf32> to vector<8x128xf32>
    %188 = arith.addf %186, %187 : vector<8x128xf32>
    %189 = arith.negf %188 : vector<8x128xf32>
    %190 = math.exp %189 : vector<8x128xf32>
    %cst_72 = arith.constant 1.000000e+00 : f32
    %191 = vector.broadcast %cst_72 : f32 to vector<8x128xf32>
    %192 = arith.addf %191, %190 : vector<8x128xf32>
    %193 = arith.divf %191, %192 : vector<8x128xf32>
    %194 = vector.extract_strided_slice %175 {offsets = [0, 256], sizes = [8, 128], strides = [1, 1]} : vector<8x384xf32> to vector<8x128xf32>
    %195 = vector.extract_strided_slice %177 {offsets = [0, 256], sizes = [8, 128], strides = [1, 1]} : vector<8x384xf32> to vector<8x128xf32>
    %196 = vector.broadcast %96 : vector<1x128xf32> to vector<8x128xf32>
    %197 = arith.addf %195, %196 : vector<8x128xf32>
    %198 = arith.mulf %185, %197 : vector<8x128xf32>
    %199 = arith.addf %194, %198 : vector<8x128xf32>
    %200 = math.tanh %199 : vector<8x128xf32>
    %201 = arith.subf %166, %200 : vector<8x128xf32>
    %202 = arith.mulf %193, %201 : vector<8x128xf32>
    %203 = arith.addf %200, %202 : vector<8x128xf32>
    %c8_i32_73 = arith.constant 8 : i32
    %204 = arith.muli %c2_i32, %c8_i32_73 : i32
    %205 = tpu.assume_multiple %204, 8 : i32
    %206 = arith.truncf %203 : vector<8x128xf32> to vector<8x128xbf16>
    %207 = arith.index_cast %205 : i32 to index
    %c0_74 = arith.constant 0 : index
    %208 = vector.load %arg11[%207, %c0_74] : memref<64x128xbf16, #tpu.memory_space<vmem>>, vector<8x128xbf16>
    tpu.vector_store %arg11[%207, %c0_74], %206 {strides = array<i32>} : memref<64x128xbf16, #tpu.memory_space<vmem>>, vector<8x128xbf16>,
    %c3_i32 = arith.constant 3 : i32
    %c8_i32_75 = arith.constant 8 : i32
    %209 = arith.muli %c3_i32, %c8_i32_75 : i32
    %210 = tpu.assume_multiple %209, 8 : i32
    %211 = arith.index_cast %210 : i32 to index
    %c0_76 = arith.constant 0 : index
    %212 = vector.load %arg12[%211, %c0_76] : memref<64x384xf32, #tpu.memory_space<vmem>>, vector<8x384xf32>
    %213 = arith.truncf %203 : vector<8x128xf32> to vector<8x128xbf16>
    %cst_77 = arith.constant dense<0.000000e+00> : vector<8x384xf32>
    %214 = tpu.matmul %213, %94, %cst_77 {dimension_numbers = #tpu.dot_dimension_numbers<[1], [0], [0], [1], [0, 0, 1, 1], [], []>} : vector<8x128xbf16>, vector<128x384xbf16>, vector<8x384xf32> -> vector<8x384xf32>
    %215 = vector.extract_strided_slice %212 {offsets = [0, 0], sizes = [8, 128], strides = [1, 1]} : vector<8x384xf32> to vector<8x128xf32>
    %216 = vector.extract_strided_slice %214 {offsets = [0, 0], sizes = [8, 128], strides = [1, 1]} : vector<8x384xf32> to vector<8x128xf32>
    %217 = arith.addf %215, %216 : vector<8x128xf32>
    %218 = arith.negf %217 : vector<8x128xf32>
    %219 = math.exp %218 : vector<8x128xf32>
    %cst_78 = arith.constant 1.000000e+00 : f32
    %220 = vector.broadcast %cst_78 : f32 to vector<8x128xf32>
    %221 = arith.addf %220, %219 : vector<8x128xf32>
    %222 = arith.divf %220, %221 : vector<8x128xf32>
    %223 = vector.extract_strided_slice %212 {offsets = [0, 128], sizes = [8, 128], strides = [1, 1]} : vector<8x384xf32> to vector<8x128xf32>
    %224 = vector.extract_strided_slice %214 {offsets = [0, 128], sizes = [8, 128], strides = [1, 1]} : vector<8x384xf32> to vector<8x128xf32>
    %225 = arith.addf %223, %224 : vector<8x128xf32>
    %226 = arith.negf %225 : vector<8x128xf32>
    %227 = math.exp %226 : vector<8x128xf32>
    %cst_79 = arith.constant 1.000000e+00 : f32
    %228 = vector.broadcast %cst_79 : f32 to vector<8x128xf32>
    %229 = arith.addf %228, %227 : vector<8x128xf32>
    %230 = arith.divf %228, %229 : vector<8x128xf32>
    %231 = vector.extract_strided_slice %212 {offsets = [0, 256], sizes = [8, 128], strides = [1, 1]} : vector<8x384xf32> to vector<8x128xf32>
    %232 = vector.extract_strided_slice %214 {offsets = [0, 256], sizes = [8, 128], strides = [1, 1]} : vector<8x384xf32> to vector<8x128xf32>
    %233 = vector.broadcast %96 : vector<1x128xf32> to vector<8x128xf32>
    %234 = arith.addf %232, %233 : vector<8x128xf32>
    %235 = arith.mulf %222, %234 : vector<8x128xf32>
    %236 = arith.addf %231, %235 : vector<8x128xf32>
    %237 = math.tanh %236 : vector<8x128xf32>
    %238 = arith.subf %203, %237 : vector<8x128xf32>
    %239 = arith.mulf %230, %238 : vector<8x128xf32>
    %240 = arith.addf %237, %239 : vector<8x128xf32>
    %c8_i32_80 = arith.constant 8 : i32
    %241 = arith.muli %c3_i32, %c8_i32_80 : i32
    %242 = tpu.assume_multiple %241, 8 : i32
    %243 = arith.truncf %240 : vector<8x128xf32> to vector<8x128xbf16>
    %244 = arith.index_cast %242 : i32 to index
    %c0_81 = arith.constant 0 : index
    %245 = vector.load %arg11[%244, %c0_81] : memref<64x128xbf16, #tpu.memory_space<vmem>>, vector<8x128xbf16>
    tpu.vector_store %arg11[%244, %c0_81], %243 {strides = array<i32>} : memref<64x128xbf16, #tpu.memory_space<vmem>>, vector<8x128xbf16>,
    %c4_i32 = arith.constant 4 : i32
    %c8_i32_82 = arith.constant 8 : i32
    %246 = arith.muli %c4_i32, %c8_i32_82 : i32
    %247 = tpu.assume_multiple %246, 8 : i32
    %248 = arith.index_cast %247 : i32 to index
    %c0_83 = arith.constant 0 : index
    %249 = vector.load %arg12[%248, %c0_83] : memref<64x384xf32, #tpu.memory_space<vmem>>, vector<8x384xf32>
    %250 = arith.truncf %240 : vector<8x128xf32> to vector<8x128xbf16>
    %cst_84 = arith.constant dense<0.000000e+00> : vector<8x384xf32>
    %251 = tpu.matmul %250, %94, %cst_84 {dimension_numbers = #tpu.dot_dimension_numbers<[1], [0], [0], [1], [0, 0, 1, 1], [], []>} : vector<8x128xbf16>, vector<128x384xbf16>, vector<8x384xf32> -> vector<8x384xf32>
    %252 = vector.extract_strided_slice %249 {offsets = [0, 0], sizes = [8, 128], strides = [1, 1]} : vector<8x384xf32> to vector<8x128xf32>
    %253 = vector.extract_strided_slice %251 {offsets = [0, 0], sizes = [8, 128], strides = [1, 1]} : vector<8x384xf32> to vector<8x128xf32>
    %254 = arith.addf %252, %253 : vector<8x128xf32>
    %255 = arith.negf %254 : vector<8x128xf32>
    %256 = math.exp %255 : vector<8x128xf32>
    %cst_85 = arith.constant 1.000000e+00 : f32
    %257 = vector.broadcast %cst_85 : f32 to vector<8x128xf32>
    %258 = arith.addf %257, %256 : vector<8x128xf32>
    %259 = arith.divf %257, %258 : vector<8x128xf32>
    %260 = vector.extract_strided_slice %249 {offsets = [0, 128], sizes = [8, 128], strides = [1, 1]} : vector<8x384xf32> to vector<8x128xf32>
    %261 = vector.extract_strided_slice %251 {offsets = [0, 128], sizes = [8, 128], strides = [1, 1]} : vector<8x384xf32> to vector<8x128xf32>
    %262 = arith.addf %260, %261 : vector<8x128xf32>
    %263 = arith.negf %262 : vector<8x128xf32>
    %264 = math.exp %263 : vector<8x128xf32>
    %cst_86 = arith.constant 1.000000e+00 : f32
    %265 = vector.broadcast %cst_86 : f32 to vector<8x128xf32>
    %266 = arith.addf %265, %264 : vector<8x128xf32>
    %267 = arith.divf %265, %266 : vector<8x128xf32>
    %268 = vector.extract_strided_slice %249 {offsets = [0, 256], sizes = [8, 128], strides = [1, 1]} : vector<8x384xf32> to vector<8x128xf32>
    %269 = vector.extract_strided_slice %251 {offsets = [0, 256], sizes = [8, 128], strides = [1, 1]} : vector<8x384xf32> to vector<8x128xf32>
    %270 = vector.broadcast %96 : vector<1x128xf32> to vector<8x128xf32>
    %271 = arith.addf %269, %270 : vector<8x128xf32>
    %272 = arith.mulf %259, %271 : vector<8x128xf32>
    %273 = arith.addf %268, %272 : vector<8x128xf32>
    %274 = math.tanh %273 : vector<8x128xf32>
    %275 = arith.subf %240, %274 : vector<8x128xf32>
    %276 = arith.mulf %267, %275 : vector<8x128xf32>
    %277 = arith.addf %274, %276 : vector<8x128xf32>
    %c8_i32_87 = arith.constant 8 : i32
    %278 = arith.muli %c4_i32, %c8_i32_87 : i32
    %279 = tpu.assume_multiple %278, 8 : i32
    %280 = arith.truncf %277 : vector<8x128xf32> to vector<8x128xbf16>
    %281 = arith.index_cast %279 : i32 to index
    %c0_88 = arith.constant 0 : index
    %282 = vector.load %arg11[%281, %c0_88] : memref<64x128xbf16, #tpu.memory_space<vmem>>, vector<8x128xbf16>
    tpu.vector_store %arg11[%281, %c0_88], %280 {strides = array<i32>} : memref<64x128xbf16, #tpu.memory_space<vmem>>, vector<8x128xbf16>,
    %c5_i32 = arith.constant 5 : i32
    %c8_i32_89 = arith.constant 8 : i32
    %283 = arith.muli %c5_i32, %c8_i32_89 : i32
    %284 = tpu.assume_multiple %283, 8 : i32
    %285 = arith.index_cast %284 : i32 to index
    %c0_90 = arith.constant 0 : index
    %286 = vector.load %arg12[%285, %c0_90] : memref<64x384xf32, #tpu.memory_space<vmem>>, vector<8x384xf32>
    %287 = arith.truncf %277 : vector<8x128xf32> to vector<8x128xbf16>
    %cst_91 = arith.constant dense<0.000000e+00> : vector<8x384xf32>
    %288 = tpu.matmul %287, %94, %cst_91 {dimension_numbers = #tpu.dot_dimension_numbers<[1], [0], [0], [1], [0, 0, 1, 1], [], []>} : vector<8x128xbf16>, vector<128x384xbf16>, vector<8x384xf32> -> vector<8x384xf32>
    %289 = vector.extract_strided_slice %286 {offsets = [0, 0], sizes = [8, 128], strides = [1, 1]} : vector<8x384xf32> to vector<8x128xf32>
    %290 = vector.extract_strided_slice %288 {offsets = [0, 0], sizes = [8, 128], strides = [1, 1]} : vector<8x384xf32> to vector<8x128xf32>
    %291 = arith.addf %289, %290 : vector<8x128xf32>
    %292 = arith.negf %291 : vector<8x128xf32>
    %293 = math.exp %292 : vector<8x128xf32>
    %cst_92 = arith.constant 1.000000e+00 : f32
    %294 = vector.broadcast %cst_92 : f32 to vector<8x128xf32>
    %295 = arith.addf %294, %293 : vector<8x128xf32>
    %296 = arith.divf %294, %295 : vector<8x128xf32>
    %297 = vector.extract_strided_slice %286 {offsets = [0, 128], sizes = [8, 128], strides = [1, 1]} : vector<8x384xf32> to vector<8x128xf32>
    %298 = vector.extract_strided_slice %288 {offsets = [0, 128], sizes = [8, 128], strides = [1, 1]} : vector<8x384xf32> to vector<8x128xf32>
    %299 = arith.addf %297, %298 : vector<8x128xf32>
    %300 = arith.negf %299 : vector<8x128xf32>
    %301 = math.exp %300 : vector<8x128xf32>
    %cst_93 = arith.constant 1.000000e+00 : f32
    %302 = vector.broadcast %cst_93 : f32 to vector<8x128xf32>
    %303 = arith.addf %302, %301 : vector<8x128xf32>
    %304 = arith.divf %302, %303 : vector<8x128xf32>
    %305 = vector.extract_strided_slice %286 {offsets = [0, 256], sizes = [8, 128], strides = [1, 1]} : vector<8x384xf32> to vector<8x128xf32>
    %306 = vector.extract_strided_slice %288 {offsets = [0, 256], sizes = [8, 128], strides = [1, 1]} : vector<8x384xf32> to vector<8x128xf32>
    %307 = vector.broadcast %96 : vector<1x128xf32> to vector<8x128xf32>
    %308 = arith.addf %306, %307 : vector<8x128xf32>
    %309 = arith.mulf %296, %308 : vector<8x128xf32>
    %310 = arith.addf %305, %309 : vector<8x128xf32>
    %311 = math.tanh %310 : vector<8x128xf32>
    %312 = arith.subf %277, %311 : vector<8x128xf32>
    %313 = arith.mulf %304, %312 : vector<8x128xf32>
    %314 = arith.addf %311, %313 : vector<8x128xf32>
    %c8_i32_94 = arith.constant 8 : i32
    %315 = arith.muli %c5_i32, %c8_i32_94 : i32
    %316 = tpu.assume_multiple %315, 8 : i32
    %317 = arith.truncf %314 : vector<8x128xf32> to vector<8x128xbf16>
    %318 = arith.index_cast %316 : i32 to index
    %c0_95 = arith.constant 0 : index
    %319 = vector.load %arg11[%318, %c0_95] : memref<64x128xbf16, #tpu.memory_space<vmem>>, vector<8x128xbf16>
    tpu.vector_store %arg11[%318, %c0_95], %317 {strides = array<i32>} : memref<64x128xbf16, #tpu.memory_space<vmem>>, vector<8x128xbf16>,
    %c6_i32 = arith.constant 6 : i32
    %c8_i32_96 = arith.constant 8 : i32
    %320 = arith.muli %c6_i32, %c8_i32_96 : i32
    %321 = tpu.assume_multiple %320, 8 : i32
    %322 = arith.index_cast %321 : i32 to index
    %c0_97 = arith.constant 0 : index
    %323 = vector.load %arg12[%322, %c0_97] : memref<64x384xf32, #tpu.memory_space<vmem>>, vector<8x384xf32>
    %324 = arith.truncf %314 : vector<8x128xf32> to vector<8x128xbf16>
    %cst_98 = arith.constant dense<0.000000e+00> : vector<8x384xf32>
    %325 = tpu.matmul %324, %94, %cst_98 {dimension_numbers = #tpu.dot_dimension_numbers<[1], [0], [0], [1], [0, 0, 1, 1], [], []>} : vector<8x128xbf16>, vector<128x384xbf16>, vector<8x384xf32> -> vector<8x384xf32>
    %326 = vector.extract_strided_slice %323 {offsets = [0, 0], sizes = [8, 128], strides = [1, 1]} : vector<8x384xf32> to vector<8x128xf32>
    %327 = vector.extract_strided_slice %325 {offsets = [0, 0], sizes = [8, 128], strides = [1, 1]} : vector<8x384xf32> to vector<8x128xf32>
    %328 = arith.addf %326, %327 : vector<8x128xf32>
    %329 = arith.negf %328 : vector<8x128xf32>
    %330 = math.exp %329 : vector<8x128xf32>
    %cst_99 = arith.constant 1.000000e+00 : f32
    %331 = vector.broadcast %cst_99 : f32 to vector<8x128xf32>
    %332 = arith.addf %331, %330 : vector<8x128xf32>
    %333 = arith.divf %331, %332 : vector<8x128xf32>
    %334 = vector.extract_strided_slice %323 {offsets = [0, 128], sizes = [8, 128], strides = [1, 1]} : vector<8x384xf32> to vector<8x128xf32>
    %335 = vector.extract_strided_slice %325 {offsets = [0, 128], sizes = [8, 128], strides = [1, 1]} : vector<8x384xf32> to vector<8x128xf32>
    %336 = arith.addf %334, %335 : vector<8x128xf32>
    %337 = arith.negf %336 : vector<8x128xf32>
    %338 = math.exp %337 : vector<8x128xf32>
    %cst_100 = arith.constant 1.000000e+00 : f32
    %339 = vector.broadcast %cst_100 : f32 to vector<8x128xf32>
    %340 = arith.addf %339, %338 : vector<8x128xf32>
    %341 = arith.divf %339, %340 : vector<8x128xf32>
    %342 = vector.extract_strided_slice %323 {offsets = [0, 256], sizes = [8, 128], strides = [1, 1]} : vector<8x384xf32> to vector<8x128xf32>
    %343 = vector.extract_strided_slice %325 {offsets = [0, 256], sizes = [8, 128], strides = [1, 1]} : vector<8x384xf32> to vector<8x128xf32>
    %344 = vector.broadcast %96 : vector<1x128xf32> to vector<8x128xf32>
    %345 = arith.addf %343, %344 : vector<8x128xf32>
    %346 = arith.mulf %333, %345 : vector<8x128xf32>
    %347 = arith.addf %342, %346 : vector<8x128xf32>
    %348 = math.tanh %347 : vector<8x128xf32>
    %349 = arith.subf %314, %348 : vector<8x128xf32>
    %350 = arith.mulf %341, %349 : vector<8x128xf32>
    %351 = arith.addf %348, %350 : vector<8x128xf32>
    %c8_i32_101 = arith.constant 8 : i32
    %352 = arith.muli %c6_i32, %c8_i32_101 : i32
    %353 = tpu.assume_multiple %352, 8 : i32
    %354 = arith.truncf %351 : vector<8x128xf32> to vector<8x128xbf16>
    %355 = arith.index_cast %353 : i32 to index
    %c0_102 = arith.constant 0 : index
    %356 = vector.load %arg11[%355, %c0_102] : memref<64x128xbf16, #tpu.memory_space<vmem>>, vector<8x128xbf16>
    tpu.vector_store %arg11[%355, %c0_102], %354 {strides = array<i32>} : memref<64x128xbf16, #tpu.memory_space<vmem>>, vector<8x128xbf16>,
    %c7_i32 = arith.constant 7 : i32
    %c8_i32_103 = arith.constant 8 : i32
    %357 = arith.muli %c7_i32, %c8_i32_103 : i32
    %358 = tpu.assume_multiple %357, 8 : i32
    %359 = arith.index_cast %358 : i32 to index
    %c0_104 = arith.constant 0 : index
    %360 = vector.load %arg12[%359, %c0_104] : memref<64x384xf32, #tpu.memory_space<vmem>>, vector<8x384xf32>
    %361 = arith.truncf %351 : vector<8x128xf32> to vector<8x128xbf16>
    %cst_105 = arith.constant dense<0.000000e+00> : vector<8x384xf32>
    %362 = tpu.matmul %361, %94, %cst_105 {dimension_numbers = #tpu.dot_dimension_numbers<[1], [0], [0], [1], [0, 0, 1, 1], [], []>} : vector<8x128xbf16>, vector<128x384xbf16>, vector<8x384xf32> -> vector<8x384xf32>
    %363 = vector.extract_strided_slice %360 {offsets = [0, 0], sizes = [8, 128], strides = [1, 1]} : vector<8x384xf32> to vector<8x128xf32>
    %364 = vector.extract_strided_slice %362 {offsets = [0, 0], sizes = [8, 128], strides = [1, 1]} : vector<8x384xf32> to vector<8x128xf32>
    %365 = arith.addf %363, %364 : vector<8x128xf32>
    %366 = arith.negf %365 : vector<8x128xf32>
    %367 = math.exp %366 : vector<8x128xf32>
    %cst_106 = arith.constant 1.000000e+00 : f32
    %368 = vector.broadcast %cst_106 : f32 to vector<8x128xf32>
    %369 = arith.addf %368, %367 : vector<8x128xf32>
    %370 = arith.divf %368, %369 : vector<8x128xf32>
    %371 = vector.extract_strided_slice %360 {offsets = [0, 128], sizes = [8, 128], strides = [1, 1]} : vector<8x384xf32> to vector<8x128xf32>
    %372 = vector.extract_strided_slice %362 {offsets = [0, 128], sizes = [8, 128], strides = [1, 1]} : vector<8x384xf32> to vector<8x128xf32>
    %373 = arith.addf %371, %372 : vector<8x128xf32>
    %374 = arith.negf %373 : vector<8x128xf32>
    %375 = math.exp %374 : vector<8x128xf32>
    %cst_107 = arith.constant 1.000000e+00 : f32
    %376 = vector.broadcast %cst_107 : f32 to vector<8x128xf32>
    %377 = arith.addf %376, %375 : vector<8x128xf32>
    %378 = arith.divf %376, %377 : vector<8x128xf32>
    %379 = vector.extract_strided_slice %360 {offsets = [0, 256], sizes = [8, 128], strides = [1, 1]} : vector<8x384xf32> to vector<8x128xf32>
    %380 = vector.extract_strided_slice %362 {offsets = [0, 256], sizes = [8, 128], strides = [1, 1]} : vector<8x384xf32> to vector<8x128xf32>
    %381 = vector.broadcast %96 : vector<1x128xf32> to vector<8x128xf32>
    %382 = arith.addf %380, %381 : vector<8x128xf32>
    %383 = arith.mulf %370, %382 : vector<8x128xf32>
    %384 = arith.addf %379, %383 : vector<8x128xf32>
    %385 = math.tanh %384 : vector<8x128xf32>
    %386 = arith.subf %351, %385 : vector<8x128xf32>
    %387 = arith.mulf %378, %386 : vector<8x128xf32>
    %388 = arith.addf %385, %387 : vector<8x128xf32>
    %c8_i32_108 = arith.constant 8 : i32
    %389 = arith.muli %c7_i32, %c8_i32_108 : i32
    %390 = tpu.assume_multiple %389, 8 : i32
    %391 = arith.truncf %388 : vector<8x128xf32> to vector<8x128xbf16>
    %392 = arith.index_cast %390 : i32 to index
    %c0_109 = arith.constant 0 : index
    %393 = vector.load %arg11[%392, %c0_109] : memref<64x128xbf16, #tpu.memory_space<vmem>>, vector<8x128xbf16>
    tpu.vector_store %arg11[%392, %c0_109], %391 {strides = array<i32>} : memref<64x128xbf16, #tpu.memory_space<vmem>>, vector<8x128xbf16>,
    %c8_i32_110 = arith.constant 8 : i32
    %c0_111 = arith.constant 0 : index
    %c0_112 = arith.constant 0 : index
    %394 = vector.load %arg11[%c0_111, %c0_112] : memref<64x128xbf16, #tpu.memory_space<vmem>>, vector<64x128xbf16>
    %c1_113 = arith.constant 1 : index
    %c0_114 = arith.constant 0 : index
    %c0_115 = arith.constant 0 : index
    %395 = vector.load %arg4[%c1_113, %c0_114, %c0_115] : memref<2x128x384xbf16, #tpu.memory_space<vmem>>, vector<1x128x384xbf16>
    %396 = vector.shape_cast %395 : vector<1x128x384xbf16> to vector<128x384xbf16>
    %cst_116 = arith.constant dense<0.000000e+00> : vector<64x384xf32>
    %397 = tpu.matmul %394, %396, %cst_116 {dimension_numbers = #tpu.dot_dimension_numbers<[1], [0], [0], [1], [0, 0, 1, 1], [], []>} : vector<64x128xbf16>, vector<128x384xbf16>, vector<64x384xf32> -> vector<64x384xf32>
    %c1_117 = arith.constant 1 : index
    %c0_118 = arith.constant 0 : index
    %c0_119 = arith.constant 0 : index
    %398 = vector.load %arg6[%c1_117, %c0_118, %c0_119] : memref<2x1x384xf32, #tpu.memory_space<vmem>>, vector<1x1x384xf32>
    %399 = vector.shape_cast %398 : vector<1x1x384xf32> to vector<1x384xf32>
    %400 = vector.broadcast %399 : vector<1x384xf32> to vector<64x384xf32>
    %401 = arith.addf %397, %400 : vector<64x384xf32>
    %c0_120 = arith.constant 0 : index
    %c0_121 = arith.constant 0 : index
    %402 = vector.load %arg12[%c0_120, %c0_121] : memref<64x384xf32, #tpu.memory_space<vmem>>, vector<64x384xf32>
    tpu.vector_store %arg12[%c0_120, %c0_121], %401 {strides = array<i32>} : memref<64x384xf32, #tpu.memory_space<vmem>>, vector<64x384xf32>,
    %c1_122 = arith.constant 1 : index
    %c0_123 = arith.constant 0 : index
    %c0_124 = arith.constant 0 : index
    %403 = vector.load %arg5[%c1_122, %c0_123, %c0_124] : memref<2x128x384xbf16, #tpu.memory_space<vmem>>, vector<1x128x384xbf16>
    %404 = vector.shape_cast %403 : vector<1x128x384xbf16> to vector<128x384xbf16>
    %c1_125 = arith.constant 1 : index
    %c0_126 = arith.constant 0 : index
    %c0_127 = arith.constant 0 : index
    %405 = vector.load %arg7[%c1_125, %c0_126, %c0_127] : memref<2x1x128xf32, #tpu.memory_space<vmem>>, vector<1x1x128xf32>
    %406 = vector.shape_cast %405 : vector<1x1x128xf32> to vector<1x128xf32>
    %cst_128 = arith.constant 0.000000e+00 : f32
    %407 = vector.broadcast %cst_128 : f32 to vector<8x128xf32>
    %c0_i32_129 = arith.constant 0 : i32
    %c8_i32_130 = arith.constant 8 : i32
    %408 = arith.muli %c0_i32_129, %c8_i32_130 : i32
    %409 = tpu.assume_multiple %408, 8 : i32
    %410 = arith.index_cast %409 : i32 to index
    %c0_131 = arith.constant 0 : index
    %411 = vector.load %arg12[%410, %c0_131] : memref<64x384xf32, #tpu.memory_space<vmem>>, vector<8x384xf32>
    %412 = arith.truncf %407 : vector<8x128xf32> to vector<8x128xbf16>
    %cst_132 = arith.constant dense<0.000000e+00> : vector<8x384xf32>
    %413 = tpu.matmul %412, %404, %cst_132 {dimension_numbers = #tpu.dot_dimension_numbers<[1], [0], [0], [1], [0, 0, 1, 1], [], []>} : vector<8x128xbf16>, vector<128x384xbf16>, vector<8x384xf32> -> vector<8x384xf32>
    %414 = vector.extract_strided_slice %411 {offsets = [0, 0], sizes = [8, 128], strides = [1, 1]} : vector<8x384xf32> to vector<8x128xf32>
    %415 = vector.extract_strided_slice %413 {offsets = [0, 0], sizes = [8, 128], strides = [1, 1]} : vector<8x384xf32> to vector<8x128xf32>
    %416 = arith.addf %414, %415 : vector<8x128xf32>
    %417 = arith.negf %416 : vector<8x128xf32>
    %418 = math.exp %417 : vector<8x128xf32>
    %cst_133 = arith.constant 1.000000e+00 : f32
    %419 = vector.broadcast %cst_133 : f32 to vector<8x128xf32>
    %420 = arith.addf %419, %418 : vector<8x128xf32>
    %421 = arith.divf %419, %420 : vector<8x128xf32>
    %422 = vector.extract_strided_slice %411 {offsets = [0, 128], sizes = [8, 128], strides = [1, 1]} : vector<8x384xf32> to vector<8x128xf32>
    %423 = vector.extract_strided_slice %413 {offsets = [0, 128], sizes = [8, 128], strides = [1, 1]} : vector<8x384xf32> to vector<8x128xf32>
    %424 = arith.addf %422, %423 : vector<8x128xf32>
    %425 = arith.negf %424 : vector<8x128xf32>
    %426 = math.exp %425 : vector<8x128xf32>
    %cst_134 = arith.constant 1.000000e+00 : f32
    %427 = vector.broadcast %cst_134 : f32 to vector<8x128xf32>
    %428 = arith.addf %427, %426 : vector<8x128xf32>
    %429 = arith.divf %427, %428 : vector<8x128xf32>
    %430 = vector.extract_strided_slice %411 {offsets = [0, 256], sizes = [8, 128], strides = [1, 1]} : vector<8x384xf32> to vector<8x128xf32>
    %431 = vector.extract_strided_slice %413 {offsets = [0, 256], sizes = [8, 128], strides = [1, 1]} : vector<8x384xf32> to vector<8x128xf32>
    %432 = vector.broadcast %406 : vector<1x128xf32> to vector<8x128xf32>
    %433 = arith.addf %431, %432 : vector<8x128xf32>
    %434 = arith.mulf %421, %433 : vector<8x128xf32>
    %435 = arith.addf %430, %434 : vector<8x128xf32>
    %436 = math.tanh %435 : vector<8x128xf32>
    %437 = arith.subf %407, %436 : vector<8x128xf32>
    %438 = arith.mulf %429, %437 : vector<8x128xf32>
    %439 = arith.addf %436, %438 : vector<8x128xf32>
    %440 = vector.broadcast %c0_i32_129 : i32 to vector<8x1xi32>
    %441 = arith.cmpi eq, %0, %440 : vector<8x1xi32>
    %442 = vector.shape_cast %441 : vector<8x1xi1> to vector<8x1xi1>
    %443 = vector.broadcast %442 : vector<8x1xi1> to vector<8x128xi1>
    %444 = arith.select %443, %439, %83 : vector<8x128xi1>, vector<8x128xf32>
    %c1_i32_135 = arith.constant 1 : i32
    %c8_i32_136 = arith.constant 8 : i32
    %445 = arith.muli %c1_i32_135, %c8_i32_136 : i32
    %446 = tpu.assume_multiple %445, 8 : i32
    %447 = arith.index_cast %446 : i32 to index
    %c0_137 = arith.constant 0 : index
    %448 = vector.load %arg12[%447, %c0_137] : memref<64x384xf32, #tpu.memory_space<vmem>>, vector<8x384xf32>
    %449 = arith.truncf %439 : vector<8x128xf32> to vector<8x128xbf16>
    %cst_138 = arith.constant dense<0.000000e+00> : vector<8x384xf32>
    %450 = tpu.matmul %449, %404, %cst_138 {dimension_numbers = #tpu.dot_dimension_numbers<[1], [0], [0], [1], [0, 0, 1, 1], [], []>} : vector<8x128xbf16>, vector<128x384xbf16>, vector<8x384xf32> -> vector<8x384xf32>
    %451 = vector.extract_strided_slice %448 {offsets = [0, 0], sizes = [8, 128], strides = [1, 1]} : vector<8x384xf32> to vector<8x128xf32>
    %452 = vector.extract_strided_slice %450 {offsets = [0, 0], sizes = [8, 128], strides = [1, 1]} : vector<8x384xf32> to vector<8x128xf32>
    %453 = arith.addf %451, %452 : vector<8x128xf32>
    %454 = arith.negf %453 : vector<8x128xf32>
    %455 = math.exp %454 : vector<8x128xf32>
    %cst_139 = arith.constant 1.000000e+00 : f32
    %456 = vector.broadcast %cst_139 : f32 to vector<8x128xf32>
    %457 = arith.addf %456, %455 : vector<8x128xf32>
    %458 = arith.divf %456, %457 : vector<8x128xf32>
    %459 = vector.extract_strided_slice %448 {offsets = [0, 128], sizes = [8, 128], strides = [1, 1]} : vector<8x384xf32> to vector<8x128xf32>
    %460 = vector.extract_strided_slice %450 {offsets = [0, 128], sizes = [8, 128], strides = [1, 1]} : vector<8x384xf32> to vector<8x128xf32>
    %461 = arith.addf %459, %460 : vector<8x128xf32>
    %462 = arith.negf %461 : vector<8x128xf32>
    %463 = math.exp %462 : vector<8x128xf32>
    %cst_140 = arith.constant 1.000000e+00 : f32
    %464 = vector.broadcast %cst_140 : f32 to vector<8x128xf32>
    %465 = arith.addf %464, %463 : vector<8x128xf32>
    %466 = arith.divf %464, %465 : vector<8x128xf32>
    %467 = vector.extract_strided_slice %448 {offsets = [0, 256], sizes = [8, 128], strides = [1, 1]} : vector<8x384xf32> to vector<8x128xf32>
    %468 = vector.extract_strided_slice %450 {offsets = [0, 256], sizes = [8, 128], strides = [1, 1]} : vector<8x384xf32> to vector<8x128xf32>
    %469 = vector.broadcast %406 : vector<1x128xf32> to vector<8x128xf32>
    %470 = arith.addf %468, %469 : vector<8x128xf32>
    %471 = arith.mulf %458, %470 : vector<8x128xf32>
    %472 = arith.addf %467, %471 : vector<8x128xf32>
    %473 = math.tanh %472 : vector<8x128xf32>
    %474 = arith.subf %439, %473 : vector<8x128xf32>
    %475 = arith.mulf %466, %474 : vector<8x128xf32>
    %476 = arith.addf %473, %475 : vector<8x128xf32>
    %477 = vector.broadcast %c1_i32_135 : i32 to vector<8x1xi32>
    %478 = arith.cmpi eq, %0, %477 : vector<8x1xi32>
    %479 = vector.shape_cast %478 : vector<8x1xi1> to vector<8x1xi1>
    %480 = vector.broadcast %479 : vector<8x1xi1> to vector<8x128xi1>
    %481 = arith.select %480, %476, %444 : vector<8x128xi1>, vector<8x128xf32>
    %c2_i32_141 = arith.constant 2 : i32
    %c8_i32_142 = arith.constant 8 : i32
    %482 = arith.muli %c2_i32_141, %c8_i32_142 : i32
    %483 = tpu.assume_multiple %482, 8 : i32
    %484 = arith.index_cast %483 : i32 to index
    %c0_143 = arith.constant 0 : index
    %485 = vector.load %arg12[%484, %c0_143] : memref<64x384xf32, #tpu.memory_space<vmem>>, vector<8x384xf32>
    %486 = arith.truncf %476 : vector<8x128xf32> to vector<8x128xbf16>
    %cst_144 = arith.constant dense<0.000000e+00> : vector<8x384xf32>
    %487 = tpu.matmul %486, %404, %cst_144 {dimension_numbers = #tpu.dot_dimension_numbers<[1], [0], [0], [1], [0, 0, 1, 1], [], []>} : vector<8x128xbf16>, vector<128x384xbf16>, vector<8x384xf32> -> vector<8x384xf32>
    %488 = vector.extract_strided_slice %485 {offsets = [0, 0], sizes = [8, 128], strides = [1, 1]} : vector<8x384xf32> to vector<8x128xf32>
    %489 = vector.extract_strided_slice %487 {offsets = [0, 0], sizes = [8, 128], strides = [1, 1]} : vector<8x384xf32> to vector<8x128xf32>
    %490 = arith.addf %488, %489 : vector<8x128xf32>
    %491 = arith.negf %490 : vector<8x128xf32>
    %492 = math.exp %491 : vector<8x128xf32>
    %cst_145 = arith.constant 1.000000e+00 : f32
    %493 = vector.broadcast %cst_145 : f32 to vector<8x128xf32>
    %494 = arith.addf %493, %492 : vector<8x128xf32>
    %495 = arith.divf %493, %494 : vector<8x128xf32>
    %496 = vector.extract_strided_slice %485 {offsets = [0, 128], sizes = [8, 128], strides = [1, 1]} : vector<8x384xf32> to vector<8x128xf32>
    %497 = vector.extract_strided_slice %487 {offsets = [0, 128], sizes = [8, 128], strides = [1, 1]} : vector<8x384xf32> to vector<8x128xf32>
    %498 = arith.addf %496, %497 : vector<8x128xf32>
    %499 = arith.negf %498 : vector<8x128xf32>
    %500 = math.exp %499 : vector<8x128xf32>
    %cst_146 = arith.constant 1.000000e+00 : f32
    %501 = vector.broadcast %cst_146 : f32 to vector<8x128xf32>
    %502 = arith.addf %501, %500 : vector<8x128xf32>
    %503 = arith.divf %501, %502 : vector<8x128xf32>
    %504 = vector.extract_strided_slice %485 {offsets = [0, 256], sizes = [8, 128], strides = [1, 1]} : vector<8x384xf32> to vector<8x128xf32>
    %505 = vector.extract_strided_slice %487 {offsets = [0, 256], sizes = [8, 128], strides = [1, 1]} : vector<8x384xf32> to vector<8x128xf32>
    %506 = vector.broadcast %406 : vector<1x128xf32> to vector<8x128xf32>
    %507 = arith.addf %505, %506 : vector<8x128xf32>
    %508 = arith.mulf %495, %507 : vector<8x128xf32>
    %509 = arith.addf %504, %508 : vector<8x128xf32>
    %510 = math.tanh %509 : vector<8x128xf32>
    %511 = arith.subf %476, %510 : vector<8x128xf32>
    %512 = arith.mulf %503, %511 : vector<8x128xf32>
    %513 = arith.addf %510, %512 : vector<8x128xf32>
    %514 = vector.broadcast %c2_i32_141 : i32 to vector<8x1xi32>
    %515 = arith.cmpi eq, %0, %514 : vector<8x1xi32>
    %516 = vector.shape_cast %515 : vector<8x1xi1> to vector<8x1xi1>
    %517 = vector.broadcast %516 : vector<8x1xi1> to vector<8x128xi1>
    %518 = arith.select %517, %513, %481 : vector<8x128xi1>, vector<8x128xf32>
    %c3_i32_147 = arith.constant 3 : i32
    %c8_i32_148 = arith.constant 8 : i32
    %519 = arith.muli %c3_i32_147, %c8_i32_148 : i32
    %520 = tpu.assume_multiple %519, 8 : i32
    %521 = arith.index_cast %520 : i32 to index
    %c0_149 = arith.constant 0 : index
    %522 = vector.load %arg12[%521, %c0_149] : memref<64x384xf32, #tpu.memory_space<vmem>>, vector<8x384xf32>
    %523 = arith.truncf %513 : vector<8x128xf32> to vector<8x128xbf16>
    %cst_150 = arith.constant dense<0.000000e+00> : vector<8x384xf32>
    %524 = tpu.matmul %523, %404, %cst_150 {dimension_numbers = #tpu.dot_dimension_numbers<[1], [0], [0], [1], [0, 0, 1, 1], [], []>} : vector<8x128xbf16>, vector<128x384xbf16>, vector<8x384xf32> -> vector<8x384xf32>
    %525 = vector.extract_strided_slice %522 {offsets = [0, 0], sizes = [8, 128], strides = [1, 1]} : vector<8x384xf32> to vector<8x128xf32>
    %526 = vector.extract_strided_slice %524 {offsets = [0, 0], sizes = [8, 128], strides = [1, 1]} : vector<8x384xf32> to vector<8x128xf32>
    %527 = arith.addf %525, %526 : vector<8x128xf32>
    %528 = arith.negf %527 : vector<8x128xf32>
    %529 = math.exp %528 : vector<8x128xf32>
    %cst_151 = arith.constant 1.000000e+00 : f32
    %530 = vector.broadcast %cst_151 : f32 to vector<8x128xf32>
    %531 = arith.addf %530, %529 : vector<8x128xf32>
    %532 = arith.divf %530, %531 : vector<8x128xf32>
    %533 = vector.extract_strided_slice %522 {offsets = [0, 128], sizes = [8, 128], strides = [1, 1]} : vector<8x384xf32> to vector<8x128xf32>
    %534 = vector.extract_strided_slice %524 {offsets = [0, 128], sizes = [8, 128], strides = [1, 1]} : vector<8x384xf32> to vector<8x128xf32>
    %535 = arith.addf %533, %534 : vector<8x128xf32>
    %536 = arith.negf %535 : vector<8x128xf32>
    %537 = math.exp %536 : vector<8x128xf32>
    %cst_152 = arith.constant 1.000000e+00 : f32
    %538 = vector.broadcast %cst_152 : f32 to vector<8x128xf32>
    %539 = arith.addf %538, %537 : vector<8x128xf32>
    %540 = arith.divf %538, %539 : vector<8x128xf32>
    %541 = vector.extract_strided_slice %522 {offsets = [0, 256], sizes = [8, 128], strides = [1, 1]} : vector<8x384xf32> to vector<8x128xf32>
    %542 = vector.extract_strided_slice %524 {offsets = [0, 256], sizes = [8, 128], strides = [1, 1]} : vector<8x384xf32> to vector<8x128xf32>
    %543 = vector.broadcast %406 : vector<1x128xf32> to vector<8x128xf32>
    %544 = arith.addf %542, %543 : vector<8x128xf32>
    %545 = arith.mulf %532, %544 : vector<8x128xf32>
    %546 = arith.addf %541, %545 : vector<8x128xf32>
    %547 = math.tanh %546 : vector<8x128xf32>
    %548 = arith.subf %513, %547 : vector<8x128xf32>
    %549 = arith.mulf %540, %548 : vector<8x128xf32>
    %550 = arith.addf %547, %549 : vector<8x128xf32>
    %551 = vector.broadcast %c3_i32_147 : i32 to vector<8x1xi32>
    %552 = arith.cmpi eq, %0, %551 : vector<8x1xi32>
    %553 = vector.shape_cast %552 : vector<8x1xi1> to vector<8x1xi1>
    %554 = vector.broadcast %553 : vector<8x1xi1> to vector<8x128xi1>
    %555 = arith.select %554, %550, %518 : vector<8x128xi1>, vector<8x128xf32>
    %c4_i32_153 = arith.constant 4 : i32
    %c8_i32_154 = arith.constant 8 : i32
    %556 = arith.muli %c4_i32_153, %c8_i32_154 : i32
    %557 = tpu.assume_multiple %556, 8 : i32
    %558 = arith.index_cast %557 : i32 to index
    %c0_155 = arith.constant 0 : index
    %559 = vector.load %arg12[%558, %c0_155] : memref<64x384xf32, #tpu.memory_space<vmem>>, vector<8x384xf32>
    %560 = arith.truncf %550 : vector<8x128xf32> to vector<8x128xbf16>
    %cst_156 = arith.constant dense<0.000000e+00> : vector<8x384xf32>
    %561 = tpu.matmul %560, %404, %cst_156 {dimension_numbers = #tpu.dot_dimension_numbers<[1], [0], [0], [1], [0, 0, 1, 1], [], []>} : vector<8x128xbf16>, vector<128x384xbf16>, vector<8x384xf32> -> vector<8x384xf32>
    %562 = vector.extract_strided_slice %559 {offsets = [0, 0], sizes = [8, 128], strides = [1, 1]} : vector<8x384xf32> to vector<8x128xf32>
    %563 = vector.extract_strided_slice %561 {offsets = [0, 0], sizes = [8, 128], strides = [1, 1]} : vector<8x384xf32> to vector<8x128xf32>
    %564 = arith.addf %562, %563 : vector<8x128xf32>
    %565 = arith.negf %564 : vector<8x128xf32>
    %566 = math.exp %565 : vector<8x128xf32>
    %cst_157 = arith.constant 1.000000e+00 : f32
    %567 = vector.broadcast %cst_157 : f32 to vector<8x128xf32>
    %568 = arith.addf %567, %566 : vector<8x128xf32>
    %569 = arith.divf %567, %568 : vector<8x128xf32>
    %570 = vector.extract_strided_slice %559 {offsets = [0, 128], sizes = [8, 128], strides = [1, 1]} : vector<8x384xf32> to vector<8x128xf32>
    %571 = vector.extract_strided_slice %561 {offsets = [0, 128], sizes = [8, 128], strides = [1, 1]} : vector<8x384xf32> to vector<8x128xf32>
    %572 = arith.addf %570, %571 : vector<8x128xf32>
    %573 = arith.negf %572 : vector<8x128xf32>
    %574 = math.exp %573 : vector<8x128xf32>
    %cst_158 = arith.constant 1.000000e+00 : f32
    %575 = vector.broadcast %cst_158 : f32 to vector<8x128xf32>
    %576 = arith.addf %575, %574 : vector<8x128xf32>
    %577 = arith.divf %575, %576 : vector<8x128xf32>
    %578 = vector.extract_strided_slice %559 {offsets = [0, 256], sizes = [8, 128], strides = [1, 1]} : vector<8x384xf32> to vector<8x128xf32>
    %579 = vector.extract_strided_slice %561 {offsets = [0, 256], sizes = [8, 128], strides = [1, 1]} : vector<8x384xf32> to vector<8x128xf32>
    %580 = vector.broadcast %406 : vector<1x128xf32> to vector<8x128xf32>
    %581 = arith.addf %579, %580 : vector<8x128xf32>
    %582 = arith.mulf %569, %581 : vector<8x128xf32>
    %583 = arith.addf %578, %582 : vector<8x128xf32>
    %584 = math.tanh %583 : vector<8x128xf32>
    %585 = arith.subf %550, %584 : vector<8x128xf32>
    %586 = arith.mulf %577, %585 : vector<8x128xf32>
    %587 = arith.addf %584, %586 : vector<8x128xf32>
    %588 = vector.broadcast %c4_i32_153 : i32 to vector<8x1xi32>
    %589 = arith.cmpi eq, %0, %588 : vector<8x1xi32>
    %590 = vector.shape_cast %589 : vector<8x1xi1> to vector<8x1xi1>
    %591 = vector.broadcast %590 : vector<8x1xi1> to vector<8x128xi1>
    %592 = arith.select %591, %587, %555 : vector<8x128xi1>, vector<8x128xf32>
    %c5_i32_159 = arith.constant 5 : i32
    %c8_i32_160 = arith.constant 8 : i32
    %593 = arith.muli %c5_i32_159, %c8_i32_160 : i32
    %594 = tpu.assume_multiple %593, 8 : i32
    %595 = arith.index_cast %594 : i32 to index
    %c0_161 = arith.constant 0 : index
    %596 = vector.load %arg12[%595, %c0_161] : memref<64x384xf32, #tpu.memory_space<vmem>>, vector<8x384xf32>
    %597 = arith.truncf %587 : vector<8x128xf32> to vector<8x128xbf16>
    %cst_162 = arith.constant dense<0.000000e+00> : vector<8x384xf32>
    %598 = tpu.matmul %597, %404, %cst_162 {dimension_numbers = #tpu.dot_dimension_numbers<[1], [0], [0], [1], [0, 0, 1, 1], [], []>} : vector<8x128xbf16>, vector<128x384xbf16>, vector<8x384xf32> -> vector<8x384xf32>
    %599 = vector.extract_strided_slice %596 {offsets = [0, 0], sizes = [8, 128], strides = [1, 1]} : vector<8x384xf32> to vector<8x128xf32>
    %600 = vector.extract_strided_slice %598 {offsets = [0, 0], sizes = [8, 128], strides = [1, 1]} : vector<8x384xf32> to vector<8x128xf32>
    %601 = arith.addf %599, %600 : vector<8x128xf32>
    %602 = arith.negf %601 : vector<8x128xf32>
    %603 = math.exp %602 : vector<8x128xf32>
    %cst_163 = arith.constant 1.000000e+00 : f32
    %604 = vector.broadcast %cst_163 : f32 to vector<8x128xf32>
    %605 = arith.addf %604, %603 : vector<8x128xf32>
    %606 = arith.divf %604, %605 : vector<8x128xf32>
    %607 = vector.extract_strided_slice %596 {offsets = [0, 128], sizes = [8, 128], strides = [1, 1]} : vector<8x384xf32> to vector<8x128xf32>
    %608 = vector.extract_strided_slice %598 {offsets = [0, 128], sizes = [8, 128], strides = [1, 1]} : vector<8x384xf32> to vector<8x128xf32>
    %609 = arith.addf %607, %608 : vector<8x128xf32>
    %610 = arith.negf %609 : vector<8x128xf32>
    %611 = math.exp %610 : vector<8x128xf32>
    %cst_164 = arith.constant 1.000000e+00 : f32
    %612 = vector.broadcast %cst_164 : f32 to vector<8x128xf32>
    %613 = arith.addf %612, %611 : vector<8x128xf32>
    %614 = arith.divf %612, %613 : vector<8x128xf32>
    %615 = vector.extract_strided_slice %596 {offsets = [0, 256], sizes = [8, 128], strides = [1, 1]} : vector<8x384xf32> to vector<8x128xf32>
    %616 = vector.extract_strided_slice %598 {offsets = [0, 256], sizes = [8, 128], strides = [1, 1]} : vector<8x384xf32> to vector<8x128xf32>
    %617 = vector.broadcast %406 : vector<1x128xf32> to vector<8x128xf32>
    %618 = arith.addf %616, %617 : vector<8x128xf32>
    %619 = arith.mulf %606, %618 : vector<8x128xf32>
    %620 = arith.addf %615, %619 : vector<8x128xf32>
    %621 = math.tanh %620 : vector<8x128xf32>
    %622 = arith.subf %587, %621 : vector<8x128xf32>
    %623 = arith.mulf %614, %622 : vector<8x128xf32>
    %624 = arith.addf %621, %623 : vector<8x128xf32>
    %625 = vector.broadcast %c5_i32_159 : i32 to vector<8x1xi32>
    %626 = arith.cmpi eq, %0, %625 : vector<8x1xi32>
    %627 = vector.shape_cast %626 : vector<8x1xi1> to vector<8x1xi1>
    %628 = vector.broadcast %627 : vector<8x1xi1> to vector<8x128xi1>
    %629 = arith.select %628, %624, %592 : vector<8x128xi1>, vector<8x128xf32>
    %c6_i32_165 = arith.constant 6 : i32
    %c8_i32_166 = arith.constant 8 : i32
    %630 = arith.muli %c6_i32_165, %c8_i32_166 : i32
    %631 = tpu.assume_multiple %630, 8 : i32
    %632 = arith.index_cast %631 : i32 to index
    %c0_167 = arith.constant 0 : index
    %633 = vector.load %arg12[%632, %c0_167] : memref<64x384xf32, #tpu.memory_space<vmem>>, vector<8x384xf32>
    %634 = arith.truncf %624 : vector<8x128xf32> to vector<8x128xbf16>
    %cst_168 = arith.constant dense<0.000000e+00> : vector<8x384xf32>
    %635 = tpu.matmul %634, %404, %cst_168 {dimension_numbers = #tpu.dot_dimension_numbers<[1], [0], [0], [1], [0, 0, 1, 1], [], []>} : vector<8x128xbf16>, vector<128x384xbf16>, vector<8x384xf32> -> vector<8x384xf32>
    %636 = vector.extract_strided_slice %633 {offsets = [0, 0], sizes = [8, 128], strides = [1, 1]} : vector<8x384xf32> to vector<8x128xf32>
    %637 = vector.extract_strided_slice %635 {offsets = [0, 0], sizes = [8, 128], strides = [1, 1]} : vector<8x384xf32> to vector<8x128xf32>
    %638 = arith.addf %636, %637 : vector<8x128xf32>
    %639 = arith.negf %638 : vector<8x128xf32>
    %640 = math.exp %639 : vector<8x128xf32>
    %cst_169 = arith.constant 1.000000e+00 : f32
    %641 = vector.broadcast %cst_169 : f32 to vector<8x128xf32>
    %642 = arith.addf %641, %640 : vector<8x128xf32>
    %643 = arith.divf %641, %642 : vector<8x128xf32>
    %644 = vector.extract_strided_slice %633 {offsets = [0, 128], sizes = [8, 128], strides = [1, 1]} : vector<8x384xf32> to vector<8x128xf32>
    %645 = vector.extract_strided_slice %635 {offsets = [0, 128], sizes = [8, 128], strides = [1, 1]} : vector<8x384xf32> to vector<8x128xf32>
    %646 = arith.addf %644, %645 : vector<8x128xf32>
    %647 = arith.negf %646 : vector<8x128xf32>
    %648 = math.exp %647 : vector<8x128xf32>
    %cst_170 = arith.constant 1.000000e+00 : f32
    %649 = vector.broadcast %cst_170 : f32 to vector<8x128xf32>
    %650 = arith.addf %649, %648 : vector<8x128xf32>
    %651 = arith.divf %649, %650 : vector<8x128xf32>
    %652 = vector.extract_strided_slice %633 {offsets = [0, 256], sizes = [8, 128], strides = [1, 1]} : vector<8x384xf32> to vector<8x128xf32>
    %653 = vector.extract_strided_slice %635 {offsets = [0, 256], sizes = [8, 128], strides = [1, 1]} : vector<8x384xf32> to vector<8x128xf32>
    %654 = vector.broadcast %406 : vector<1x128xf32> to vector<8x128xf32>
    %655 = arith.addf %653, %654 : vector<8x128xf32>
    %656 = arith.mulf %643, %655 : vector<8x128xf32>
    %657 = arith.addf %652, %656 : vector<8x128xf32>
    %658 = math.tanh %657 : vector<8x128xf32>
    %659 = arith.subf %624, %658 : vector<8x128xf32>
    %660 = arith.mulf %651, %659 : vector<8x128xf32>
    %661 = arith.addf %658, %660 : vector<8x128xf32>
    %662 = vector.broadcast %c6_i32_165 : i32 to vector<8x1xi32>
    %663 = arith.cmpi eq, %0, %662 : vector<8x1xi32>
    %664 = vector.shape_cast %663 : vector<8x1xi1> to vector<8x1xi1>
    %665 = vector.broadcast %664 : vector<8x1xi1> to vector<8x128xi1>
    %666 = arith.select %665, %661, %629 : vector<8x128xi1>, vector<8x128xf32>
    %c7_i32_171 = arith.constant 7 : i32
    %c8_i32_172 = arith.constant 8 : i32
    %667 = arith.muli %c7_i32_171, %c8_i32_172 : i32
    %668 = tpu.assume_multiple %667, 8 : i32
    %669 = arith.index_cast %668 : i32 to index
    %c0_173 = arith.constant 0 : index
    %670 = vector.load %arg12[%669, %c0_173] : memref<64x384xf32, #tpu.memory_space<vmem>>, vector<8x384xf32>
    %671 = arith.truncf %661 : vector<8x128xf32> to vector<8x128xbf16>
    %cst_174 = arith.constant dense<0.000000e+00> : vector<8x384xf32>
    %672 = tpu.matmul %671, %404, %cst_174 {dimension_numbers = #tpu.dot_dimension_numbers<[1], [0], [0], [1], [0, 0, 1, 1], [], []>} : vector<8x128xbf16>, vector<128x384xbf16>, vector<8x384xf32> -> vector<8x384xf32>
    %673 = vector.extract_strided_slice %670 {offsets = [0, 0], sizes = [8, 128], strides = [1, 1]} : vector<8x384xf32> to vector<8x128xf32>
    %674 = vector.extract_strided_slice %672 {offsets = [0, 0], sizes = [8, 128], strides = [1, 1]} : vector<8x384xf32> to vector<8x128xf32>
    %675 = arith.addf %673, %674 : vector<8x128xf32>
    %676 = arith.negf %675 : vector<8x128xf32>
    %677 = math.exp %676 : vector<8x128xf32>
    %cst_175 = arith.constant 1.000000e+00 : f32
    %678 = vector.broadcast %cst_175 : f32 to vector<8x128xf32>
    %679 = arith.addf %678, %677 : vector<8x128xf32>
    %680 = arith.divf %678, %679 : vector<8x128xf32>
    %681 = vector.extract_strided_slice %670 {offsets = [0, 128], sizes = [8, 128], strides = [1, 1]} : vector<8x384xf32> to vector<8x128xf32>
    %682 = vector.extract_strided_slice %672 {offsets = [0, 128], sizes = [8, 128], strides = [1, 1]} : vector<8x384xf32> to vector<8x128xf32>
    %683 = arith.addf %681, %682 : vector<8x128xf32>
    %684 = arith.negf %683 : vector<8x128xf32>
    %685 = math.exp %684 : vector<8x128xf32>
    %cst_176 = arith.constant 1.000000e+00 : f32
    %686 = vector.broadcast %cst_176 : f32 to vector<8x128xf32>
    %687 = arith.addf %686, %685 : vector<8x128xf32>
    %688 = arith.divf %686, %687 : vector<8x128xf32>
    %689 = vector.extract_strided_slice %670 {offsets = [0, 256], sizes = [8, 128], strides = [1, 1]} : vector<8x384xf32> to vector<8x128xf32>
    %690 = vector.extract_strided_slice %672 {offsets = [0, 256], sizes = [8, 128], strides = [1, 1]} : vector<8x384xf32> to vector<8x128xf32>
    %691 = vector.broadcast %406 : vector<1x128xf32> to vector<8x128xf32>
    %692 = arith.addf %690, %691 : vector<8x128xf32>
    %693 = arith.mulf %680, %692 : vector<8x128xf32>
    %694 = arith.addf %689, %693 : vector<8x128xf32>
    %695 = math.tanh %694 : vector<8x128xf32>
    %696 = arith.subf %661, %695 : vector<8x128xf32>
    %697 = arith.mulf %688, %696 : vector<8x128xf32>
    %698 = arith.addf %695, %697 : vector<8x128xf32>
    %699 = vector.broadcast %c7_i32_171 : i32 to vector<8x1xi32>
    %700 = arith.cmpi eq, %0, %699 : vector<8x1xi32>
    %701 = vector.shape_cast %700 : vector<8x1xi1> to vector<8x1xi1>
    %702 = vector.broadcast %701 : vector<8x1xi1> to vector<8x128xi1>
    %703 = arith.select %702, %698, %666 : vector<8x128xi1>, vector<8x128xf32>
    %c8_i32_177 = arith.constant 8 : i32
    %704 = arith.truncf %703 : vector<8x128xf32> to vector<8x128xbf16>
    %c0_178 = arith.constant 0 : index
    %c0_179 = arith.constant 0 : index
    %705 = vector.load %arg8[%c0_178, %c0_179] : memref<128x128xbf16, #tpu.memory_space<vmem>>, vector<128x128xbf16>
    %cst_180 = arith.constant dense<0.000000e+00> : vector<8x128xf32>
    %706 = tpu.matmul %704, %705, %cst_180 {dimension_numbers = #tpu.dot_dimension_numbers<[1], [0], [0], [1], [0, 0, 1, 1], [], []>} : vector<8x128xbf16>, vector<128x128xbf16>, vector<8x128xf32> -> vector<8x128xf32>
    %c0_181 = arith.constant 0 : index
    %c0_182 = arith.constant 0 : index
    %707 = vector.load %arg9[%c0_181, %c0_182] : memref<1x128xf32, #tpu.memory_space<vmem>>, vector<1x128xf32>
    %708 = vector.broadcast %707 : vector<1x128xf32> to vector<8x128xf32>
    %709 = arith.addf %706, %708 : vector<8x128xf32>
    %c0_183 = arith.constant 0 : index
    %c0_184 = arith.constant 0 : index
    %710 = vector.load %arg10[%c0_183, %c0_184] : memref<8x128xf32, #tpu.memory_space<vmem>>, vector<8x128xf32>
    tpu.vector_store %arg10[%c0_183, %c0_184], %709 {strides = array<i32>} : memref<8x128xf32, #tpu.memory_space<vmem>>, vector<8x128xf32>,
    return
  }
  func.func @transform_0(%arg0: i32) -> (i32, i32, i32) {
    %c0_i32 = arith.constant 0 : i32
    %c0_i32_0 = arith.constant 0 : i32
    %c0_i32_1 = arith.constant 0 : i32
    return %c0_i32, %arg0, %c0_i32_0 : i32, i32, i32
  }
  func.func @transform_1(%arg0: i32) -> (i32, i32) {
    %c0_i32 = arith.constant 0 : i32
    %c0_i32_0 = arith.constant 0 : i32
    return %arg0, %c0_i32 : i32, i32
  }
  func.func @transform_2(%arg0: i32) -> (i32, i32) {
    %c0_i32 = arith.constant 0 : i32
    %c0_i32_0 = arith.constant 0 : i32
    %c0_i32_1 = arith.constant 0 : i32
    return %c0_i32, %c0_i32_0 : i32, i32
  }
  func.func @transform_3(%arg0: i32) -> (i32, i32, i32) {
    %c0_i32 = arith.constant 0 : i32
    %c0_i32_0 = arith.constant 0 : i32
    %c0_i32_1 = arith.constant 0 : i32
    %c0_i32_2 = arith.constant 0 : i32
    return %c0_i32, %c0_i32_0, %c0_i32_1 : i32, i32, i32
  }
  func.func @transform_4(%arg0: i32) -> (i32, i32, i32) {
    %c0_i32 = arith.constant 0 : i32
    %c0_i32_0 = arith.constant 0 : i32
    %c0_i32_1 = arith.constant 0 : i32
    %c0_i32_2 = arith.constant 0 : i32
    return %c0_i32, %c0_i32_0, %c0_i32_1 : i32, i32, i32
  }
  func.func @transform_5(%arg0: i32) -> (i32, i32, i32) {
    %c0_i32 = arith.constant 0 : i32
    %c0_i32_0 = arith.constant 0 : i32
    %c0_i32_1 = arith.constant 0 : i32
    %c0_i32_2 = arith.constant 0 : i32
    return %c0_i32, %c0_i32_0, %c0_i32_1 : i32, i32, i32
  }
  func.func @transform_6(%arg0: i32) -> (i32, i32, i32) {
    %c0_i32 = arith.constant 0 : i32
    %c0_i32_0 = arith.constant 0 : i32
    %c0_i32_1 = arith.constant 0 : i32
    %c0_i32_2 = arith.constant 0 : i32
    return %c0_i32, %c0_i32_0, %c0_i32_1 : i32, i32, i32
  }
  func.func @transform_7(%arg0: i32) -> (i32, i32) {
    %c0_i32 = arith.constant 0 : i32
    %c0_i32_0 = arith.constant 0 : i32
    %c0_i32_1 = arith.constant 0 : i32
    return %c0_i32, %c0_i32_0 : i32, i32
  }
  func.func @transform_8(%arg0: i32) -> (i32, i32) {
    %c0_i32 = arith.constant 0 : i32
    %c0_i32_0 = arith.constant 0 : i32
    %c0_i32_1 = arith.constant 0 : i32
    return %c0_i32, %c0_i32_0 : i32, i32
  }
  func.func @transform_9(%arg0: i32) -> (i32, i32) {
    %c0_i32 = arith.constant 0 : i32
    %c0_i32_0 = arith.constant 0 : i32
    return %arg0, %c0_i32 : i32, i32
  }
}

</mosaic_0001>

<llo_original>
// kernel: seq2seq_cond_forward.1
$region0: #{seq2seq_cond_forward.1}
  #allocation0 [shape = 'u32[]', space=smem, size = 0x4, offset = 0x4, fixed_abs, tag = 'smem constant byte address 0x4 - core index']
  #allocation1 [shape = 'u32[144,128]{1,0:T(1,128)}', space=vmem, size = 0x12000, scoped, tag = 'internal scratch']
  #allocation2 [shape = 'bf16[64,128]{1,0:T(8,128)(2,1)}', space=vmem, size = 0x4000, scoped, tag = 'scratch operand']
  #allocation3 [shape = 'f32[64,384]{1,0:T(8,128)}', space=vmem, size = 0x18000, scoped, tag = 'scratch operand']
  %s0 = inlined_call_operand.vmem [shape: s32[8,8,1], index: 0, kind: input, shape index: {}]
  %s1 = inlined_call_operand.vmem [shape: s32[8,1], index: 1, kind: input, shape index: {}]
  %s2 = inlined_call_operand.vmem [shape: bf16[128,128], index: 2, kind: input, shape index: {}]
  %s3 = inlined_call_operand.hbm [shape: bf16[2,128,384], index: 3, kind: input, shape index: {}]
  %s4 = inlined_call_operand.hbm [shape: bf16[2,128,384], index: 4, kind: input, shape index: {}]
  %s5 = inlined_call_operand.hbm [shape: f32[2,1,384], index: 5, kind: input, shape index: {}]
  %s6 = inlined_call_operand.vmem [shape: f32[2,1,128], index: 6, kind: input, shape index: {}]
  %s7 = inlined_call_operand.vmem [shape: bf16[128,128], index: 7, kind: input, shape index: {}]
  %s8 = inlined_call_operand.hbm [shape: f32[1,128], index: 8, kind: input, shape index: {}]
  %s9 = inlined_call_operand.hbm [shape: f32[8,128], index: 9, kind: output, shape index: {}]
  %s10 = sld [smem:[#allocation0]]
  $region62: #{seq2seq_cond_forward.1} parent=0
    _
  %s12 = ssub.s32 1, %s10
  %s13 = scalar_select 0, %s12, %s10
  $region1: #{seq2seq_cond_forward.1} parent=0
    #allocation4 [shape = 'u8[196608]{0}', space=vmem, size = 0x30000, scoped, tag = 'input window, operand 3, single buffered']
    #allocation5 [shape = 's32[1]{0}', space=sflag, size = 0x4, scoped, tag = 'scoped memory for seq2seq_cond_forward.1']
    #allocation6 [shape = 's32[1]{0}', space=sflag, size = 0x4, scoped, tag = 'scoped memory for seq2seq_cond_forward.1']
    #allocation7 [shape = 'u8[196608]{0}', space=vmem, size = 0x30000, scoped, tag = 'input window, operand 4, single buffered']
    #allocation8 [shape = 's32[1]{0}', space=sflag, size = 0x4, scoped, tag = 'scoped memory for seq2seq_cond_forward.1']
    #allocation9 [shape = 'u8[3072]{0}', space=vmem, size = 0xc00, scoped, tag = 'input window, operand 5, single buffered']
    #allocation10 [shape = 'u8[512]{0}', space=vmem, size = 0x400, scoped, tag = 'input window, operand 8, single buffered']
    #allocation11 [shape = 's32[1]{0}', space=sflag, size = 0x4, scoped, tag = 'scoped memory for seq2seq_cond_forward.1']
    #allocation12 [shape = 'u8[4096]{0}', space=vmem, size = 0x1000, scoped, tag = 'output window, operand 0, single buffered']
    %14 = vsyncpa [#allocation5], 0
    %15 = vsyncpa [#allocation8], 0
    %16 = vsyncpa [#allocation11], 0
    %17 = vsyncpa [#allocation6], 0
    // Predicated region
    $region2: #{seq2seq_cond_forward.1} parent=1 // pred_check
      _
    $region3: #{seq2seq_cond_forward.1} parent=1 // pred_check_branch
      %19 = sbr.rel (0) target = $region5
    $region4: #{seq2seq_cond_forward.1} parent=1 // pred_region
      _
    $region5: #{seq2seq_cond_forward.1} parent=1 // pred_fallthru
      _
    // Predicated region
    $region6: #{seq2seq_cond_forward.1} parent=1 // pred_check
      _
    $region7: #{seq2seq_cond_forward.1} parent=1 // pred_check_branch
      %21 = sbr.rel (0) target = $region9
    $region8: #{seq2seq_cond_forward.1} parent=1 // pred_region
      _
    $region9: #{seq2seq_cond_forward.1} parent=1 // pred_fallthru
      _
    // Predicated region
    $region10: #{seq2seq_cond_forward.1} parent=1 // pred_check
      _
    $region11: #{seq2seq_cond_forward.1} parent=1 // pred_check_branch
      %23 = sbr.rel (0) target = $region13
    $region12: #{seq2seq_cond_forward.1} parent=1 // pred_region
      _
    $region13: #{seq2seq_cond_forward.1} parent=1 // pred_fallthru
      _
    // Predicated region
    $region14: #{seq2seq_cond_forward.1} parent=1 // pred_check
      _
    $region15: #{seq2seq_cond_forward.1} parent=1 // pred_check_branch
      %25 = sbr.rel (0) target = $region17
    $region16: #{seq2seq_cond_forward.1} parent=1 // pred_region
      %s27 = ssub.s32 6144, 6144
      %28 = vsyncadd [#allocation5], %s27
      %s29 = sshll.u32 [#allocation4], 4
      %s30 = int_to_ptr.vmem [resolvable:$true] %s29
      %35 = dma.hbm_to_vmem [thread:$0]  %s3, 6144, %s30, [#allocation5], 192, 192, 12
    $region17: #{seq2seq_cond_forward.1} parent=1 // pred_fallthru
      _
    // Predicated region
    $region18: #{seq2seq_cond_forward.1} parent=1 // pred_check
      _
    $region19: #{seq2seq_cond_forward.1} parent=1 // pred_check_branch
      %37 = sbr.rel (0) target = $region21
    $region20: #{seq2seq_cond_forward.1} parent=1 // pred_region
      %s39 = ssub.s32 6144, 6144
      %40 = vsyncadd [#allocation8], %s39
      %s41 = sshll.u32 [#allocation7], 4
      %s42 = int_to_ptr.vmem [resolvable:$true] %s41
      %47 = dma.hbm_to_vmem [thread:$0]  %s4, 6144, %s42, [#allocation8], 192, 192, 12
    $region21: #{seq2seq_cond_forward.1} parent=1 // pred_fallthru
      _
    // Predicated region
    $region22: #{seq2seq_cond_forward.1} parent=1 // pred_check
      _
    $region23: #{seq2seq_cond_forward.1} parent=1 // pred_check_branch
      %49 = sbr.rel (0) target = $region25
    $region24: #{seq2seq_cond_forward.1} parent=1 // pred_region
      %s51 = ssub.s32 96, 96
      %52 = vsyncadd [#allocation8], %s51
      %s53 = sshll.u32 [#allocation9], 4
      %s54 = int_to_ptr.vmem [resolvable:$true] %s53
      %59 = dma.hbm_to_vmem [thread:$0]  %s5, 96, %s54, [#allocation8], 48, 48, 3
    $region25: #{seq2seq_cond_forward.1} parent=1 // pred_fallthru
      _
    // Predicated region
    $region26: #{seq2seq_cond_forward.1} parent=1 // pred_check
      _
    $region27: #{seq2seq_cond_forward.1} parent=1 // pred_check_branch
      %61 = sbr.rel (0) target = $region29
    $region28: #{seq2seq_cond_forward.1} parent=1 // pred_region
      _
    $region29: #{seq2seq_cond_forward.1} parent=1 // pred_fallthru
      _
    // Predicated region
    $region30: #{seq2seq_cond_forward.1} parent=1 // pred_check
      _
    $region31: #{seq2seq_cond_forward.1} parent=1 // pred_check_branch
      %63 = sbr.rel (0) target = $region33
    $region32: #{seq2seq_cond_forward.1} parent=1 // pred_region
      _
    $region33: #{seq2seq_cond_forward.1} parent=1 // pred_fallthru
      _
    // Predicated region
    $region34: #{seq2seq_cond_forward.1} parent=1 // pred_check
      _
    $region35: #{seq2seq_cond_forward.1} parent=1 // pred_check_branch
      %65 = sbr.rel (0) target = $region37
    $region36: #{seq2seq_cond_forward.1} parent=1 // pred_region
      %s67 = ssub.s32 16, 16
      %68 = vsyncadd [#allocation11], %s67
      %s70 = sshll.u32 [#allocation10], 4
      %s71 = int_to_ptr.vmem [resolvable:$true] %s70
      %73 = dma.hbm_to_vmem [thread:$0]  %s8, 16, %s71, [#allocation11]
    $region37: #{seq2seq_cond_forward.1} parent=1 // pred_fallthru
      _
    // Predicated region
    $region38: #{seq2seq_cond_forward.1} parent=1 // pred_check
      _
    $region39: #{seq2seq_cond_forward.1} parent=1 // pred_check_branch
      %75 = sbr.rel (0) target = $region41
    $region40: #{seq2seq_cond_forward.1} parent=1 // pred_region
      %76 = dma.done [#allocation5], 6144
    $region41: #{seq2seq_cond_forward.1} parent=1 // pred_fallthru
      _
    // Predicated region
    $region42: #{seq2seq_cond_forward.1} parent=1 // pred_check
      _
    $region43: #{seq2seq_cond_forward.1} parent=1 // pred_check_branch
      %78 = sbr.rel (0) target = $region45
    $region44: #{seq2seq_cond_forward.1} parent=1 // pred_region
      %79 = dma.done [#allocation8], 6144
    $region45: #{seq2seq_cond_forward.1} parent=1 // pred_fallthru
      _
    // Predicated region
    $region46: #{seq2seq_cond_forward.1} parent=1 // pred_check
      _
    $region47: #{seq2seq_cond_forward.1} parent=1 // pred_check_branch
      %81 = sbr.rel (0) target = $region49
    $region48: #{seq2seq_cond_forward.1} parent=1 // pred_region
      %82 = dma.done [#allocation8], 96
    $region49: #{seq2seq_cond_forward.1} parent=1 // pred_fallthru
      _
    // Predicated region
    $region50: #{seq2seq_cond_forward.1} parent=1 // pred_check
      _
    $region51: #{seq2seq_cond_forward.1} parent=1 // pred_check_branch
      %84 = sbr.rel (0) target = $region53
    $region52: #{seq2seq_cond_forward.1} parent=1 // pred_region
      %85 = dma.done [#allocation11], 16
    $region53: #{seq2seq_cond_forward.1} parent=1 // pred_fallthru
      _
    %v87 = vld [vmem:[%s1] sm:$0xff]
    %v88 = vlaneseq
    %v89 = vand.u32 %v88, 127
    %v90 = vld [vmem:[%s2] sm:$0xf]
    %v91 = vld [vmem:[%s2 + $0x4] sm:$0xf]
    %v92 = vld [vmem:[%s2 + $0x8] sm:$0xf]
    %v93 = vld [vmem:[%s2 + $0xc] sm:$0xf]
    %v94 = vld [vmem:[%s2 + $0x10] sm:$0xf]
    %v95 = vld [vmem:[%s2 + $0x14] sm:$0xf]
    %v96 = vld [vmem:[%s2 + $0x18] sm:$0xf]
    %v97 = vld [vmem:[%s2 + $0x1c] sm:$0xf]
    %v98 = vld [vmem:[%s2 + $0x20] sm:$0xf]
    %v99 = vld [vmem:[%s2 + $0x24] sm:$0xf]
    %v100 = vld [vmem:[%s2 + $0x28] sm:$0xf]
    %v101 = vld [vmem:[%s2 + $0x2c] sm:$0xf]
    %v102 = vld [vmem:[%s2 + $0x30] sm:$0xf]
    %v103 = vld [vmem:[%s2 + $0x34] sm:$0xf]
    %v104 = vld [vmem:[%s2 + $0x38] sm:$0xf]
    %v105 = vld [vmem:[%s2 + $0x3c] sm:$0xf]
    %v106 = vld [vmem:[%s0] sm:$0xff]
    %107 = vset.pattern.permute.xlu0 0
    %108 = vperm.xlu0 %107, %v106
    %v109 = vpop.permute.xlu0 %108
    %vm110 = vcmp.eq.s32.totalorder %v89, %v109
    %v111 = vsel %vm110, 1, 0
    %v112 = vcvt.s32.f32 %v111
    %v113 = vpack.c.bf16 %v112, %v112
    %v130 = vunpack.c.l.b16 %v90
    %v131 = vunpack.c.l.b16 %v91
    %v132 = vunpack.c.l.b16 %v92
    %v133 = vunpack.c.l.b16 %v93
    %v134 = vunpack.c.l.b16 %v94
    %v135 = vunpack.c.l.b16 %v95
    %v136 = vunpack.c.l.b16 %v96
    %v137 = vunpack.c.l.b16 %v97
    %v138 = vunpack.c.l.b16 %v98
    %v139 = vunpack.c.l.b16 %v99
    %v140 = vunpack.c.l.b16 %v100
    %v141 = vunpack.c.l.b16 %v101
    %v142 = vunpack.c.l.b16 %v102
    %v143 = vunpack.c.l.b16 %v103
    %v144 = vunpack.c.l.b16 %v104
    %v145 = vunpack.c.l.b16 %v105
    %v146 = vpack.c.b16 %v131, %v130
    %v147 = vpack.c.b16 %v133, %v132
    %v148 = vpack.c.b16 %v135, %v134
    %v149 = vpack.c.b16 %v137, %v136
    %v150 = vpack.c.b16 %v139, %v138
    %v151 = vpack.c.b16 %v141, %v140
    %v152 = vpack.c.b16 %v143, %v142
    %v153 = vpack.c.b16 %v145, %v144
    %162 = vmatprep.subr.bf16.mxu0 0
    %163 = vmatpush1.bf16.msra.mxu0 %v153
    %164 = vmatprep.subr.bf16.mxu0 0
    %165 = vmatpush1.bf16.msra.mxu0 %v152
    %166 = vmatprep.subr.bf16.mxu0 0
    %167 = vmatpush1.bf16.msra.mxu0 %v151
    %168 = vmatprep.subr.bf16.mxu0 0
    %169 = vmatpush1.bf16.msra.mxu0 %v150
    %170 = vmatprep.subr.bf16.mxu0 0
    %171 = vmatpush1.bf16.msra.mxu0 %v149
    %172 = vmatprep.subr.bf16.mxu0 0
    %173 = vmatpush1.bf16.msra.mxu0 %v148
    %174 = vmatprep.subr.bf16.mxu0 0
    %175 = vmatpush1.bf16.msra.mxu0 %v147
    %176 = vmatprep.subr.bf16.mxu0 0
    %177 = vmatpush1.bf16.msra.mxu0 %v146
    %178 = vmatprep.subr.bf16.mxu0 0
    %179 = vmatpush2.bf16.msra.mxu0 0
    %180 = vmatprep.subr.bf16.mxu0 0
    %181 = vmatpush2.bf16.msra.mxu0 0
    %182 = vmatprep.subr.bf16.mxu0 0
    %183 = vmatpush2.bf16.msra.mxu0 0
    %184 = vmatprep.subr.bf16.mxu0 0
    %185 = vmatpush2.bf16.msra.mxu0 0
    %186 = vmatprep.subr.bf16.mxu0 0
    %187 = vmatpush2.bf16.msra.mxu0 0
    %188 = vmatprep.subr.bf16.mxu0 0
    %189 = vmatpush2.bf16.msra.mxu0 0
    %190 = vmatprep.subr.bf16.mxu0 0
    %191 = vmatpush2.bf16.msra.mxu0 0
    %192 = vmatprep.subr.bf16.mxu0 0
    %193 = vmatpush2.bf16.msra.mxu0 0
    %194 = vmatprep.mubr.bf16.mxu0 0
    %195 = vmatmul.mubr.bf16.gmra.mxu0 %v113
    %v196 = vpop.f32.mrf.mxu0
    %v197 = vadd.f32 0.0, %v196
    %v198 = vpop.f32.mrf.mxu0
    %v199 = vpop.f32.mrf.mxu0
    %v200 = vpop.f32.mrf.mxu0
    %201 = vdwg.mxu0
    %v202 = vpack.c.bf16 %v197, %v197
    %203 = vst [vmem:[#allocation2] sm:$0xf] %v202
    %s204 = scalar_lea.vmem %s0, 8
    %v205 = vld [vmem:[%s204] sm:$0xff]
    %206 = vset.pattern.permute.xlu0 0
    %207 = vperm.xlu0 %206, %v205
    %v208 = vpop.permute.xlu0 %207
    %vm209 = vcmp.eq.s32.totalorder %v89, %v208
    %v210 = vsel %vm209, 1, 0
    %v211 = vcvt.s32.f32 %v210
    %v212 = vpack.c.bf16 %v211, %v211
    %213 = vmatprep.subr.bf16.mxu0 0
    %214 = vmatpush1.bf16.msra.mxu0 %v153
    %215 = vmatprep.subr.bf16.mxu0 0
    %216 = vmatpush1.bf16.msra.mxu0 %v152
    %217 = vmatprep.subr.bf16.mxu0 0
    %218 = vmatpush1.bf16.msra.mxu0 %v151
    %219 = vmatprep.subr.bf16.mxu0 0
    %220 = vmatpush1.bf16.msra.mxu0 %v150
    %221 = vmatprep.subr.bf16.mxu0 0
    %222 = vmatpush1.bf16.msra.mxu0 %v149
    %223 = vmatprep.subr.bf16.mxu0 0
    %224 = vmatpush1.bf16.msra.mxu0 %v148
    %225 = vmatprep.subr.bf16.mxu0 0
    %226 = vmatpush1.bf16.msra.mxu0 %v147
    %227 = vmatprep.subr.bf16.mxu0 0
    %228 = vmatpush1.bf16.msra.mxu0 %v146
    %229 = vmatprep.subr.bf16.mxu0 0
    %230 = vmatpush2.bf16.msra.mxu0 0
    %231 = vmatprep.subr.bf16.mxu0 0
    %232 = vmatpush2.bf16.msra.mxu0 0
    %233 = vmatprep.subr.bf16.mxu0 0
    %234 = vmatpush2.bf16.msra.mxu0 0
    %235 = vmatprep.subr.bf16.mxu0 0
    %236 = vmatpush2.bf16.msra.mxu0 0
    %237 = vmatprep.subr.bf16.mxu0 0
    %238 = vmatpush2.bf16.msra.mxu0 0
    %239 = vmatprep.subr.bf16.mxu0 0
    %240 = vmatpush2.bf16.msra.mxu0 0
    %241 = vmatprep.subr.bf16.mxu0 0
    %242 = vmatpush2.bf16.msra.mxu0 0
    %243 = vmatprep.subr.bf16.mxu0 0
    %244 = vmatpush2.bf16.msra.mxu0 0
    %245 = vmatprep.mubr.bf16.mxu0 0
    %246 = vmatmul.mubr.bf16.gmra.mxu0 %v212
    %v247 = vpop.f32.mrf.mxu0
    %v248 = vadd.f32 0.0, %v247
    %v249 = vpop.f32.mrf.mxu0
    %v250 = vpop.f32.mrf.mxu0
    %v251 = vpop.f32.mrf.mxu0
    %252 = vdwg.mxu0
    %v253 = vpack.c.bf16 %v248, %v248
    %254 = vst [vmem:[#allocation2 + $0x4] sm:$0xf] %v253
    %s255 = scalar_lea.vmem %s0, 16
    %v256 = vld [vmem:[%s255] sm:$0xff]
    %257 = vset.pattern.permute.xlu0 0
    %258 = vperm.xlu0 %257, %v256
    %v259 = vpop.permute.xlu0 %258
    %vm260 = vcmp.eq.s32.totalorder %v89, %v259
    %v261 = vsel %vm260, 1, 0
    %v262 = vcvt.s32.f32 %v261
    %v263 = vpack.c.bf16 %v262, %v262
    %264 = vmatprep.subr.bf16.mxu0 0
    %265 = vmatpush1.bf16.msra.mxu0 %v153
    %266 = vmatprep.subr.bf16.mxu0 0
    %267 = vmatpush1.bf16.msra.mxu0 %v152
    %268 = vmatprep.subr.bf16.mxu0 0
    %269 = vmatpush1.bf16.msra.mxu0 %v151
    %270 = vmatprep.subr.bf16.mxu0 0
    %271 = vmatpush1.bf16.msra.mxu0 %v150
    %272 = vmatprep.subr.bf16.mxu0 0
    %273 = vmatpush1.bf16.msra.mxu0 %v149
    %274 = vmatprep.subr.bf16.mxu0 0
    %275 = vmatpush1.bf16.msra.mxu0 %v148
    %276 = vmatprep.subr.bf16.mxu0 0
    %277 = vmatpush1.bf16.msra.mxu0 %v147
    %278 = vmatprep.subr.bf16.mxu0 0
    %279 = vmatpush1.bf16.msra.mxu0 %v146
    %280 = vmatprep.subr.bf16.mxu0 0
    %281 = vmatpush2.bf16.msra.mxu0 0
    %282 = vmatprep.subr.bf16.mxu0 0
    %283 = vmatpush2.bf16.msra.mxu0 0
    %284 = vmatprep.subr.bf16.mxu0 0
    %285 = vmatpush2.bf16.msra.mxu0 0
    %286 = vmatprep.subr.bf16.mxu0 0
    %287 = vmatpush2.bf16.msra.mxu0 0
    %288 = vmatprep.subr.bf16.mxu0 0
    %289 = vmatpush2.bf16.msra.mxu0 0
    %290 = vmatprep.subr.bf16.mxu0 0
    %291 = vmatpush2.bf16.msra.mxu0 0
    %292 = vmatprep.subr.bf16.mxu0 0
    %293 = vmatpush2.bf16.msra.mxu0 0
    %294 = vmatprep.subr.bf16.mxu0 0
    %295 = vmatpush2.bf16.msra.mxu0 0
    %296 = vmatprep.mubr.bf16.mxu0 0
    %297 = vmatmul.mubr.bf16.gmra.mxu0 %v263
    %v298 = vpop.f32.mrf.mxu0
    %v299 = vadd.f32 0.0, %v298
    %v300 = vpop.f32.mrf.mxu0
    %v301 = vpop.f32.mrf.mxu0
    %v302 = vpop.f32.mrf.mxu0
    %303 = vdwg.mxu0
    %v304 = vpack.c.bf16 %v299, %v299
    %305 = vst [vmem:[#allocation2 + $0x8] sm:$0xf] %v304
    %s306 = scalar_lea.vmem %s0, 24
    %v307 = vld [vmem:[%s306] sm:$0xff]
    %308 = vset.pattern.permute.xlu0 0
    %309 = vperm.xlu0 %308, %v307
    %v310 = vpop.permute.xlu0 %309
    %vm311 = vcmp.eq.s32.totalorder %v89, %v310
    %v312 = vsel %vm311, 1, 0
    %v313 = vcvt.s32.f32 %v312
    %v314 = vpack.c.bf16 %v313, %v313
    %315 = vmatprep.subr.bf16.mxu0 0
    %316 = vmatpush1.bf16.msra.mxu0 %v153
    %317 = vmatprep.subr.bf16.mxu0 0
    %318 = vmatpush1.bf16.msra.mxu0 %v152
    %319 = vmatprep.subr.bf16.mxu0 0
    %320 = vmatpush1.bf16.msra.mxu0 %v151
    %321 = vmatprep.subr.bf16.mxu0 0
    %322 = vmatpush1.bf16.msra.mxu0 %v150
    %323 = vmatprep.subr.bf16.mxu0 0
    %324 = vmatpush1.bf16.msra.mxu0 %v149
    %325 = vmatprep.subr.bf16.mxu0 0
    %326 = vmatpush1.bf16.msra.mxu0 %v148
    %327 = vmatprep.subr.bf16.mxu0 0
    %328 = vmatpush1.bf16.msra.mxu0 %v147
    %329 = vmatprep.subr.bf16.mxu0 0
    %330 = vmatpush1.bf16.msra.mxu0 %v146
    %331 = vmatprep.subr.bf16.mxu0 0
    %332 = vmatpush2.bf16.msra.mxu0 0
    %333 = vmatprep.subr.bf16.mxu0 0
    %334 = vmatpush2.bf16.msra.mxu0 0
    %335 = vmatprep.subr.bf16.mxu0 0
    %336 = vmatpush2.bf16.msra.mxu0 0
    %337 = vmatprep.subr.bf16.mxu0 0
    %338 = vmatpush2.bf16.msra.mxu0 0
    %339 = vmatprep.subr.bf16.mxu0 0
    %340 = vmatpush2.bf16.msra.mxu0 0
    %341 = vmatprep.subr.bf16.mxu0 0
    %342 = vmatpush2.bf16.msra.mxu0 0
    %343 = vmatprep.subr.bf16.mxu0 0
    %344 = vmatpush2.bf16.msra.mxu0 0
    %345 = vmatprep.subr.bf16.mxu0 0
    %346 = vmatpush2.bf16.msra.mxu0 0
    %347 = vmatprep.mubr.bf16.mxu0 0
    %348 = vmatmul.mubr.bf16.gmra.mxu0 %v314
    %v349 = vpop.f32.mrf.mxu0
    %v350 = vadd.f32 0.0, %v349
    %v351 = vpop.f32.mrf.mxu0
    %v352 = vpop.f32.mrf.mxu0
    %v353 = vpop.f32.mrf.mxu0
    %354 = vdwg.mxu0
    %v355 = vpack.c.bf16 %v350, %v350
    %356 = vst [vmem:[#allocation2 + $0xc] sm:$0xf] %v355
    %s357 = scalar_lea.vmem %s0, 32
    %v358 = vld [vmem:[%s357] sm:$0xff]
    %359 = vset.pattern.permute.xlu0 0
    %360 = vperm.xlu0 %359, %v358
    %v361 = vpop.permute.xlu0 %360
    %vm362 = vcmp.eq.s32.totalorder %v89, %v361
    %v363 = vsel %vm362, 1, 0
    %v364 = vcvt.s32.f32 %v363
    %v365 = vpack.c.bf16 %v364, %v364
    %366 = vmatprep.subr.bf16.mxu0 0
    %367 = vmatpush1.bf16.msra.mxu0 %v153
    %368 = vmatprep.subr.bf16.mxu0 0
    %369 = vmatpush1.bf16.msra.mxu0 %v152
    %370 = vmatprep.subr.bf16.mxu0 0
    %371 = vmatpush1.bf16.msra.mxu0 %v151
    %372 = vmatprep.subr.bf16.mxu0 0
    %373 = vmatpush1.bf16.msra.mxu0 %v150
    %374 = vmatprep.subr.bf16.mxu0 0
    %375 = vmatpush1.bf16.msra.mxu0 %v149
    %376 = vmatprep.subr.bf16.mxu0 0
    %377 = vmatpush1.bf16.msra.mxu0 %v148
    %378 = vmatprep.subr.bf16.mxu0 0
    %379 = vmatpush1.bf16.msra.mxu0 %v147
    %380 = vmatprep.subr.bf16.mxu0 0
    %381 = vmatpush1.bf16.msra.mxu0 %v146
    %382 = vmatprep.subr.bf16.mxu0 0
    %383 = vmatpush2.bf16.msra.mxu0 0
    %384 = vmatprep.subr.bf16.mxu0 0
    %385 = vmatpush2.bf16.msra.mxu0 0
    %386 = vmatprep.subr.bf16.mxu0 0
    %387 = vmatpush2.bf16.msra.mxu0 0
    %388 = vmatprep.subr.bf16.mxu0 0
    %389 = vmatpush2.bf16.msra.mxu0 0
    %390 = vmatprep.subr.bf16.mxu0 0
    %391 = vmatpush2.bf16.msra.mxu0 0
    %392 = vmatprep.subr.bf16.mxu0 0
    %393 = vmatpush2.bf16.msra.mxu0 0
    %394 = vmatprep.subr.bf16.mxu0 0
    %395 = vmatpush2.bf16.msra.mxu0 0
    %396 = vmatprep.subr.bf16.mxu0 0
    %397 = vmatpush2.bf16.msra.mxu0 0
    %398 = vmatprep.mubr.bf16.mxu0 0
    %399 = vmatmul.mubr.bf16.gmra.mxu0 %v365
    %v400 = vpop.f32.mrf.mxu0
    %v401 = vadd.f32 0.0, %v400
    %v402 = vpop.f32.mrf.mxu0
    %v403 = vpop.f32.mrf.mxu0
    %v404 = vpop.f32.mrf.mxu0
    %405 = vdwg.mxu0
    %v406 = vpack.c.bf16 %v401, %v401
    %407 = vst [vmem:[#allocation2 + $0x10] sm:$0xf] %v406
    %s408 = scalar_lea.vmem %s0, 40
    %v409 = vld [vmem:[%s408] sm:$0xff]
    %410 = vset.pattern.permute.xlu0 0
    %411 = vperm.xlu0 %410, %v409
    %v412 = vpop.permute.xlu0 %411
    %vm413 = vcmp.eq.s32.totalorder %v89, %v412
    %v414 = vsel %vm413, 1, 0
    %v415 = vcvt.s32.f32 %v414
    %v416 = vpack.c.bf16 %v415, %v415
    %417 = vmatprep.subr.bf16.mxu0 0
    %418 = vmatpush1.bf16.msra.mxu0 %v153
    %419 = vmatprep.subr.bf16.mxu0 0
    %420 = vmatpush1.bf16.msra.mxu0 %v152
    %421 = vmatprep.subr.bf16.mxu0 0
    %422 = vmatpush1.bf16.msra.mxu0 %v151
    %423 = vmatprep.subr.bf16.mxu0 0
    %424 = vmatpush1.bf16.msra.mxu0 %v150
    %425 = vmatprep.subr.bf16.mxu0 0
    %426 = vmatpush1.bf16.msra.mxu0 %v149
    %427 = vmatprep.subr.bf16.mxu0 0
    %428 = vmatpush1.bf16.msra.mxu0 %v148
    %429 = vmatprep.subr.bf16.mxu0 0
    %430 = vmatpush1.bf16.msra.mxu0 %v147
    %431 = vmatprep.subr.bf16.mxu0 0
    %432 = vmatpush1.bf16.msra.mxu0 %v146
    %433 = vmatprep.subr.bf16.mxu0 0
    %434 = vmatpush2.bf16.msra.mxu0 0
    %435 = vmatprep.subr.bf16.mxu0 0
    %436 = vmatpush2.bf16.msra.mxu0 0
    %437 = vmatprep.subr.bf16.mxu0 0
    %438 = vmatpush2.bf16.msra.mxu0 0
    %439 = vmatprep.subr.bf16.mxu0 0
    %440 = vmatpush2.bf16.msra.mxu0 0
    %441 = vmatprep.subr.bf16.mxu0 0
    %442 = vmatpush2.bf16.msra.mxu0 0
    %443 = vmatprep.subr.bf16.mxu0 0
    %444 = vmatpush2.bf16.msra.mxu0 0
    %445 = vmatprep.subr.bf16.mxu0 0
    %446 = vmatpush2.bf16.msra.mxu0 0
    %447 = vmatprep.subr.bf16.mxu0 0
    %448 = vmatpush2.bf16.msra.mxu0 0
    %449 = vmatprep.mubr.bf16.mxu0 0
    %450 = vmatmul.mubr.bf16.gmra.mxu0 %v416
    %v451 = vpop.f32.mrf.mxu0
    %v452 = vadd.f32 0.0, %v451
    %v453 = vpop.f32.mrf.mxu0
    %v454 = vpop.f32.mrf.mxu0
    %v455 = vpop.f32.mrf.mxu0
    %456 = vdwg.mxu0
    %v457 = vpack.c.bf16 %v452, %v452
    %458 = vst [vmem:[#allocation2 + $0x14] sm:$0xf] %v457
    %s459 = scalar_lea.vmem %s0, 48
    %v460 = vld [vmem:[%s459] sm:$0xff]
    %461 = vset.pattern.permute.xlu0 0
    %462 = vperm.xlu0 %461, %v460
    %v463 = vpop.permute.xlu0 %462
    %vm464 = vcmp.eq.s32.totalorder %v89, %v463
    %v465 = vsel %vm464, 1, 0
    %v466 = vcvt.s32.f32 %v465
    %v467 = vpack.c.bf16 %v466, %v466
    %468 = vmatprep.subr.bf16.mxu0 0
    %469 = vmatpush1.bf16.msra.mxu0 %v153
    %470 = vmatprep.subr.bf16.mxu0 0
    %471 = vmatpush1.bf16.msra.mxu0 %v152
    %472 = vmatprep.subr.bf16.mxu0 0
    %473 = vmatpush1.bf16.msra.mxu0 %v151
    %474 = vmatprep.subr.bf16.mxu0 0
    %475 = vmatpush1.bf16.msra.mxu0 %v150
    %476 = vmatprep.subr.bf16.mxu0 0
    %477 = vmatpush1.bf16.msra.mxu0 %v149
    %478 = vmatprep.subr.bf16.mxu0 0
    %479 = vmatpush1.bf16.msra.mxu0 %v148
    %480 = vmatprep.subr.bf16.mxu0 0
    %481 = vmatpush1.bf16.msra.mxu0 %v147
    %482 = vmatprep.subr.bf16.mxu0 0
    %483 = vmatpush1.bf16.msra.mxu0 %v146
    %484 = vmatprep.subr.bf16.mxu0 0
    %485 = vmatpush2.bf16.msra.mxu0 0
    %486 = vmatprep.subr.bf16.mxu0 0
    %487 = vmatpush2.bf16.msra.mxu0 0
    %488 = vmatprep.subr.bf16.mxu0 0
    %489 = vmatpush2.bf16.msra.mxu0 0
    %490 = vmatprep.subr.bf16.mxu0 0
    %491 = vmatpush2.bf16.msra.mxu0 0
    %492 = vmatprep.subr.bf16.mxu0 0
    %493 = vmatpush2.bf16.msra.mxu0 0
    %494 = vmatprep.subr.bf16.mxu0 0
    %495 = vmatpush2.bf16.msra.mxu0 0
    %496 = vmatprep.subr.bf16.mxu0 0
    %497 = vmatpush2.bf16.msra.mxu0 0
    %498 = vmatprep.subr.bf16.mxu0 0
    %499 = vmatpush2.bf16.msra.mxu0 0
    %500 = vmatprep.mubr.bf16.mxu0 0
    %501 = vmatmul.mubr.bf16.gmra.mxu0 %v467
    %v502 = vpop.f32.mrf.mxu0
    %v503 = vadd.f32 0.0, %v502
    %v504 = vpop.f32.mrf.mxu0
    %v505 = vpop.f32.mrf.mxu0
    %v506 = vpop.f32.mrf.mxu0
    %507 = vdwg.mxu0
    %v508 = vpack.c.bf16 %v503, %v503
    %509 = vst [vmem:[#allocation2 + $0x18] sm:$0xf] %v508
    %s510 = scalar_lea.vmem %s0, 56
    %v511 = vld [vmem:[%s510] sm:$0xff]
    %512 = vset.pattern.permute.xlu0 0
    %513 = vperm.xlu0 %512, %v511
    %v514 = vpop.permute.xlu0 %513
    %vm515 = vcmp.eq.s32.totalorder %v89, %v514
    %v516 = vsel %vm515, 1, 0
    %v517 = vcvt.s32.f32 %v516
    %v518 = vpack.c.bf16 %v517, %v517
    %519 = vmatprep.subr.bf16.mxu0 0
    %520 = vmatpush1.bf16.msra.mxu0 %v153
    %521 = vmatprep.subr.bf16.mxu0 0
    %522 = vmatpush1.bf16.msra.mxu0 %v152
    %523 = vmatprep.subr.bf16.mxu0 0
    %524 = vmatpush1.bf16.msra.mxu0 %v151
    %525 = vmatprep.subr.bf16.mxu0 0
    %526 = vmatpush1.bf16.msra.mxu0 %v150
    %527 = vmatprep.subr.bf16.mxu0 0
    %528 = vmatpush1.bf16.msra.mxu0 %v149
    %529 = vmatprep.subr.bf16.mxu0 0
    %530 = vmatpush1.bf16.msra.mxu0 %v148
    %531 = vmatprep.subr.bf16.mxu0 0
    %532 = vmatpush1.bf16.msra.mxu0 %v147
    %533 = vmatprep.subr.bf16.mxu0 0
    %534 = vmatpush1.bf16.msra.mxu0 %v146
    %535 = vmatprep.subr.bf16.mxu0 0
    %536 = vmatpush2.bf16.msra.mxu0 0
    %537 = vmatprep.subr.bf16.mxu0 0
    %538 = vmatpush2.bf16.msra.mxu0 0
    %539 = vmatprep.subr.bf16.mxu0 0
    %540 = vmatpush2.bf16.msra.mxu0 0
    %541 = vmatprep.subr.bf16.mxu0 0
    %542 = vmatpush2.bf16.msra.mxu0 0
    %543 = vmatprep.subr.bf16.mxu0 0
    %544 = vmatpush2.bf16.msra.mxu0 0
    %545 = vmatprep.subr.bf16.mxu0 0
    %546 = vmatpush2.bf16.msra.mxu0 0
    %547 = vmatprep.subr.bf16.mxu0 0
    %548 = vmatpush2.bf16.msra.mxu0 0
    %549 = vmatprep.subr.bf16.mxu0 0
    %550 = vmatpush2.bf16.msra.mxu0 0
    %551 = vmatprep.mubr.bf16.mxu0 0
    %552 = vmatmul.mubr.bf16.gmra.mxu0 %v518
    %v553 = vpop.f32.mrf.mxu0
    %v554 = vadd.f32 0.0, %v553
    %v555 = vpop.f32.mrf.mxu0
    %v556 = vpop.f32.mrf.mxu0
    %v557 = vpop.f32.mrf.mxu0
    %558 = vdwg.mxu0
    %v559 = vpack.c.bf16 %v554, %v554
    %560 = vst [vmem:[#allocation2 + $0x1c] sm:$0xf] %v559
    %v561 = vld [vmem:[#allocation2] sm:$0xf]
    %v562 = vld [vmem:[#allocation2 + $0x4] sm:$0xf]
    %v563 = vld [vmem:[#allocation2 + $0x8] sm:$0xf]
    %v564 = vld [vmem:[#allocation2 + $0xc] sm:$0xf]
    %v565 = vld [vmem:[#allocation2 + $0x10] sm:$0xf]
    %v566 = vld [vmem:[#allocation2 + $0x14] sm:$0xf]
    %v567 = vld [vmem:[#allocation2 + $0x18] sm:$0xf]
    %v568 = vld [vmem:[#allocation2 + $0x1c] sm:$0xf]
    %v569 = vld [vmem:[#allocation4] sm:$0xff]
    %v570 = vld [vmem:[#allocation4 + $0x8] sm:$0xf]
    %v571 = vld [vmem:[#allocation4 + $0xc] sm:$0xff]
    %v572 = vld [vmem:[#allocation4 + $0x14] sm:$0xf]
    %v573 = vld [vmem:[#allocation4 + $0x18] sm:$0xff]
    %v574 = vld [vmem:[#allocation4 + $0x20] sm:$0xf]
    %v575 = vld [vmem:[#allocation4 + $0x24] sm:$0xff]
    %v576 = vld [vmem:[#allocation4 + $0x2c] sm:$0xf]
    %v577 = vld [vmem:[#allocation4 + $0x30] sm:$0xff]
    %v578 = vld [vmem:[#allocation4 + $0x38] sm:$0xf]
    %v579 = vld [vmem:[#allocation4 + $0x3c] sm:$0xff]
    %v580 = vld [vmem:[#allocation4 + $0x44] sm:$0xf]
    %v581 = vld [vmem:[#allocation4 + $0x48] sm:$0xff]
    %v582 = vld [vmem:[#allocation4 + $0x50] sm:$0xf]
    %v583 = vld [vmem:[#allocation4 + $0x54] sm:$0xff]
    %v584 = vld [vmem:[#allocation4 + $0x5c] sm:$0xf]
    %v585 = vld [vmem:[#allocation4 + $0x60] sm:$0xff]
    %v586 = vld [vmem:[#allocation4 + $0x68] sm:$0xf]
    %v587 = vld [vmem:[#allocation4 + $0x6c] sm:$0xff]
    %v588 = vld [vmem:[#allocation4 + $0x74] sm:$0xf]
    %v589 = vld [vmem:[#allocation4 + $0x78] sm:$0xff]
    %v590 = vld [vmem:[#allocation4 + $0x80] sm:$0xf]
    %v591 = vld [vmem:[#allocation4 + $0x84] sm:$0xff]
    %v592 = vld [vmem:[#allocation4 + $0x8c] sm:$0xf]
    %v593 = vld [vmem:[#allocation4 + $0x90] sm:$0xff]
    %v594 = vld [vmem:[#allocation4 + $0x98] sm:$0xf]
    %v595 = vld [vmem:[#allocation4 + $0x9c] sm:$0xff]
    %v596 = vld [vmem:[#allocation4 + $0xa4] sm:$0xf]
    %v597 = vld [vmem:[#allocation4 + $0xa8] sm:$0xff]
    %v598 = vld [vmem:[#allocation4 + $0xb0] sm:$0xf]
    %v599 = vld [vmem:[#allocation4 + $0xb4] sm:$0xff]
    %v600 = vld [vmem:[#allocation4 + $0xbc] sm:$0xf]
    %v601 = vld [vmem:[#allocation9] sm:$0x7]
    %v603 = vlaneseq
    %v604 = vshrl.u32 %v603, 7
    %v605 = vsub.s32 0, %v604
    %v606 = vrot.slane %v601, %v605
    %v607 = vlaneseq
    %v608 = vshrl.u32 %v607, 7
    %v609 = vsub.s32 1, %v608
    %v610 = vrot.slane %v601, %v609
    %v611 = vlaneseq
    %v612 = vshrl.u32 %v611, 7
    %v613 = vsub.s32 2, %v612
    %v614 = vrot.slane %v601, %v613
    %v626 = vunpack.c.l.b16 %v561
    %v627 = vunpack.c.l.b16 %v562
    %v628 = vunpack.c.l.b16 %v563
    %v629 = vunpack.c.l.b16 %v564
    %v630 = vunpack.c.l.b16 %v565
    %v631 = vunpack.c.l.b16 %v566
    %v632 = vunpack.c.l.b16 %v567
    %v633 = vunpack.c.l.b16 %v568
    %v634 = vpack.c.b16 %v627, %v626
    %v635 = vpack.c.b16 %v629, %v628
    %v636 = vpack.c.b16 %v631, %v630
    %v637 = vpack.c.b16 %v633, %v632
    %v674 = vunpack.c.l.b16 %v569
    %v675 = vunpack.c.h.b16 %v569
    %v676 = vunpack.c.l.b16 %v570
    %v677 = vunpack.c.l.b16 %v571
    %v678 = vunpack.c.h.b16 %v571
    %v679 = vunpack.c.l.b16 %v572
    %v680 = vunpack.c.l.b16 %v573
    %v681 = vunpack.c.h.b16 %v573
    %v682 = vunpack.c.l.b16 %v574
    %v683 = vunpack.c.l.b16 %v575
    %v684 = vunpack.c.h.b16 %v575
    %v685 = vunpack.c.l.b16 %v576
    %v686 = vunpack.c.l.b16 %v577
    %v687 = vunpack.c.h.b16 %v577
    %v688 = vunpack.c.l.b16 %v578
    %v689 = vunpack.c.l.b16 %v579
    %v690 = vunpack.c.h.b16 %v579
    %v691 = vunpack.c.l.b16 %v580
    %v692 = vunpack.c.l.b16 %v581
    %v693 = vunpack.c.h.b16 %v581
    %v694 = vunpack.c.l.b16 %v582
    %v695 = vunpack.c.l.b16 %v583
    %v696 = vunpack.c.h.b16 %v583
    %v697 = vunpack.c.l.b16 %v584
    %v698 = vunpack.c.l.b16 %v585
    %v699 = vunpack.c.h.b16 %v585
    %v700 = vunpack.c.l.b16 %v586
    %v701 = vunpack.c.l.b16 %v587
    %v702 = vunpack.c.h.b16 %v587
    %v703 = vunpack.c.l.b16 %v588
    %v704 = vunpack.c.l.b16 %v589
    %v705 = vunpack.c.h.b16 %v589
    %v706 = vunpack.c.l.b16 %v590
    %v707 = vunpack.c.l.b16 %v591
    %v708 = vunpack.c.h.b16 %v591
    %v709 = vunpack.c.l.b16 %v592
    %v710 = vunpack.c.l.b16 %v593
    %v711 = vunpack.c.h.b16 %v593
    %v712 = vunpack.c.l.b16 %v594
    %v713 = vunpack.c.l.b16 %v595
    %v714 = vunpack.c.h.b16 %v595
    %v715 = vunpack.c.l.b16 %v596
    %v716 = vunpack.c.l.b16 %v597
    %v717 = vunpack.c.h.b16 %v597
    %v718 = vunpack.c.l.b16 %v598
    %v719 = vunpack.c.l.b16 %v599
    %v720 = vunpack.c.h.b16 %v599
    %v721 = vunpack.c.l.b16 %v600
    %v722 = vpack.c.b16 %v677, %v674
    %v723 = vpack.c.b16 %v678, %v675
    %v724 = vpack.c.b16 %v679, %v676
    %v725 = vpack.c.b16 %v683, %v680
    %v726 = vpack.c.b16 %v684, %v681
    %v727 = vpack.c.b16 %v685, %v682
    %v728 = vpack.c.b16 %v689, %v686
    %v729 = vpack.c.b16 %v690, %v687
    %v730 = vpack.c.b16 %v691, %v688
    %v731 = vpack.c.b16 %v695, %v692
    %v732 = vpack.c.b16 %v696, %v693
    %v733 = vpack.c.b16 %v697, %v694
    %v734 = vpack.c.b16 %v701, %v698
    %v735 = vpack.c.b16 %v702, %v699
    %v736 = vpack.c.b16 %v703, %v700
    %v737 = vpack.c.b16 %v707, %v704
    %v738 = vpack.c.b16 %v708, %v705
    %v739 = vpack.c.b16 %v709, %v706
    %v740 = vpack.c.b16 %v713, %v710
    %v741 = vpack.c.b16 %v714, %v711
    %v742 = vpack.c.b16 %v715, %v712
    %v743 = vpack.c.b16 %v719, %v716
    %v744 = vpack.c.b16 %v720, %v717
    %v745 = vpack.c.b16 %v721, %v718
    %770 = vmatprep.subr.bf16.mxu0 %v744
    %771 = vmatpush1.bf16.msra.mxu0 %v743
    %772 = vmatprep.subr.bf16.mxu0 %v741
    %773 = vmatpush1.bf16.msra.mxu0 %v740
    %774 = vmatprep.subr.bf16.mxu0 %v738
    %775 = vmatpush1.bf16.msra.mxu0 %v737
    %776 = vmatprep.subr.bf16.mxu0 %v735
    %777 = vmatpush1.bf16.msra.mxu0 %v734
    %778 = vmatprep.subr.bf16.mxu0 %v732
    %779 = vmatpush1.bf16.msra.mxu0 %v731
    %780 = vmatprep.subr.bf16.mxu0 %v729
    %781 = vmatpush1.bf16.msra.mxu0 %v728
    %782 = vmatprep.subr.bf16.mxu0 %v726
    %783 = vmatpush1.bf16.msra.mxu0 %v725
    %784 = vmatprep.subr.bf16.mxu0 %v723
    %785 = vmatpush1.bf16.msra.mxu0 %v722
    %786 = vmatprep.subr.bf16.mxu0 0
    %787 = vmatpush2.bf16.msra.mxu0 0
    %788 = vmatprep.subr.bf16.mxu0 0
    %789 = vmatpush2.bf16.msra.mxu0 0
    %790 = vmatprep.subr.bf16.mxu0 0
    %791 = vmatpush2.bf16.msra.mxu0 0
    %792 = vmatprep.subr.bf16.mxu0 0
    %793 = vmatpush2.bf16.msra.mxu0 0
    %794 = vmatprep.subr.bf16.mxu0 0
    %795 = vmatpush2.bf16.msra.mxu0 0
    %796 = vmatprep.subr.bf16.mxu0 0
    %797 = vmatpush2.bf16.msra.mxu0 0
    %798 = vmatprep.subr.bf16.mxu0 0
    %799 = vmatpush2.bf16.msra.mxu0 0
    %800 = vmatprep.subr.bf16.mxu0 0
    %801 = vmatpush2.bf16.msra.mxu0 0
    %802 = vmatprep.mubr.bf16.mxu0 0
    %803 = vmatmul.mubr.bf16.gmra.mxu0 %v634
    %v804 = vpop.f32.mrf.mxu0
    %v805 = vadd.f32 %v606, %v804
    %v806 = vpop.f32.mrf.mxu0
    %v807 = vadd.f32 %v610, %v806
    %v808 = vpop.f32.mrf.mxu0
    %v809 = vadd.f32 %v606, %v808
    %v810 = vpop.f32.mrf.mxu0
    %v811 = vadd.f32 %v610, %v810
    %812 = vmatprep.mubr.bf16.mxu0 0
    %813 = vmatmul.mubr.bf16.gmra.mxu0 %v635
    %v814 = vpop.f32.mrf.mxu0
    %v815 = vadd.f32 %v606, %v814
    %v816 = vpop.f32.mrf.mxu0
    %v817 = vadd.f32 %v610, %v816
    %v818 = vpop.f32.mrf.mxu0
    %v819 = vadd.f32 %v606, %v818
    %v820 = vpop.f32.mrf.mxu0
    %v821 = vadd.f32 %v610, %v820
    %822 = vmatprep.mubr.bf16.mxu0 0
    %823 = vmatmul.mubr.bf16.gmra.mxu0 %v636
    %v824 = vpop.f32.mrf.mxu0
    %v825 = vadd.f32 %v606, %v824
    %v826 = vpop.f32.mrf.mxu0
    %v827 = vadd.f32 %v610, %v826
    %v828 = vpop.f32.mrf.mxu0
    %v829 = vadd.f32 %v606, %v828
    %v830 = vpop.f32.mrf.mxu0
    %v831 = vadd.f32 %v610, %v830
    %832 = vmatprep.mubr.bf16.mxu0 0
    %833 = vmatmul.mubr.bf16.gmra.mxu0 %v637
    %v834 = vpop.f32.mrf.mxu0
    %v835 = vadd.f32 %v606, %v834
    %v836 = vpop.f32.mrf.mxu0
    %v837 = vadd.f32 %v610, %v836
    %v838 = vpop.f32.mrf.mxu0
    %v839 = vadd.f32 %v606, %v838
    %v840 = vpop.f32.mrf.mxu0
    %v841 = vadd.f32 %v610, %v840
    %842 = vdwg.mxu0
    %843 = vmatprep.subr.bf16.mxu0 0
    %844 = vmatpush1.bf16.msra.mxu0 %v745
    %845 = vmatprep.subr.bf16.mxu0 0
    %846 = vmatpush1.bf16.msra.mxu0 %v742
    %847 = vmatprep.subr.bf16.mxu0 0
    %848 = vmatpush1.bf16.msra.mxu0 %v739
    %849 = vmatprep.subr.bf16.mxu0 0
    %850 = vmatpush1.bf16.msra.mxu0 %v736
    %851 = vmatprep.subr.bf16.mxu0 0
    %852 = vmatpush1.bf16.msra.mxu0 %v733
    %853 = vmatprep.subr.bf16.mxu0 0
    %854 = vmatpush1.bf16.msra.mxu0 %v730
    %855 = vmatprep.subr.bf16.mxu0 0
    %856 = vmatpush1.bf16.msra.mxu0 %v727
    %857 = vmatprep.subr.bf16.mxu0 0
    %858 = vmatpush1.bf16.msra.mxu0 %v724
    %859 = vmatprep.subr.bf16.mxu0 0
    %860 = vmatpush2.bf16.msra.mxu0 0
    %861 = vmatprep.subr.bf16.mxu0 0
    %862 = vmatpush2.bf16.msra.mxu0 0
    %863 = vmatprep.subr.bf16.mxu0 0
    %864 = vmatpush2.bf16.msra.mxu0 0
    %865 = vmatprep.subr.bf16.mxu0 0
    %866 = vmatpush2.bf16.msra.mxu0 0
    %867 = vmatprep.subr.bf16.mxu0 0
    %868 = vmatpush2.bf16.msra.mxu0 0
    %869 = vmatprep.subr.bf16.mxu0 0
    %870 = vmatpush2.bf16.msra.mxu0 0
    %871 = vmatprep.subr.bf16.mxu0 0
    %872 = vmatpush2.bf16.msra.mxu0 0
    %873 = vmatprep.subr.bf16.mxu0 0
    %874 = vmatpush2.bf16.msra.mxu0 0
    %875 = vmatprep.mubr.bf16.mxu0 0
    %876 = vmatmul.mubr.bf16.gmra.mxu0 %v634
    %v877 = vpop.f32.mrf.mxu0
    %v878 = vadd.f32 %v614, %v877
    %v879 = vpop.f32.mrf.mxu0
    %v880 = vpop.f32.mrf.mxu0
    %v881 = vadd.f32 %v614, %v880
    %v882 = vpop.f32.mrf.mxu0
    %883 = vmatprep.mubr.bf16.mxu0 0
    %884 = vmatmul.mubr.bf16.gmra.mxu0 %v635
    %v885 = vpop.f32.mrf.mxu0
    %v886 = vadd.f32 %v614, %v885
    %v887 = vpop.f32.mrf.mxu0
    %v888 = vpop.f32.mrf.mxu0
    %v889 = vadd.f32 %v614, %v888
    %v890 = vpop.f32.mrf.mxu0
    %891 = vmatprep.mubr.bf16.mxu0 0
    %892 = vmatmul.mubr.bf16.gmra.mxu0 %v636
    %v893 = vpop.f32.mrf.mxu0
    %v894 = vadd.f32 %v614, %v893
    %v895 = vpop.f32.mrf.mxu0
    %v896 = vpop.f32.mrf.mxu0
    %v897 = vadd.f32 %v614, %v896
    %v898 = vpop.f32.mrf.mxu0
    %899 = vmatprep.mubr.bf16.mxu0 0
    %900 = vmatmul.mubr.bf16.gmra.mxu0 %v637
    %v901 = vpop.f32.mrf.mxu0
    %v902 = vadd.f32 %v614, %v901
    %v903 = vpop.f32.mrf.mxu0
    %v904 = vpop.f32.mrf.mxu0
    %v905 = vadd.f32 %v614, %v904
    %v906 = vpop.f32.mrf.mxu0
    %907 = vdwg.mxu0
    %908 = vst [vmem:[#allocation3] sm:$0xff] %v805
    %909 = vst [vmem:[#allocation3 + $0x8] sm:$0xff] %v807
    %910 = vst [vmem:[#allocation3 + $0x10] sm:$0xff] %v878
    %911 = vst [vmem:[#allocation3 + $0x18] sm:$0xff] %v809
    %912 = vst [vmem:[#allocation3 + $0x20] sm:$0xff] %v811
    %913 = vst [vmem:[#allocation3 + $0x28] sm:$0xff] %v881
    %914 = vst [vmem:[#allocation3 + $0x30] sm:$0xff] %v815
    %915 = vst [vmem:[#allocation3 + $0x38] sm:$0xff] %v817
    %916 = vst [vmem:[#allocation3 + $0x40] sm:$0xff] %v886
    %917 = vst [vmem:[#allocation3 + $0x48] sm:$0xff] %v819
    %918 = vst [vmem:[#allocation3 + $0x50] sm:$0xff] %v821
    %919 = vst [vmem:[#allocation3 + $0x58] sm:$0xff] %v889
    %920 = vst [vmem:[#allocation3 + $0x60] sm:$0xff] %v825
    %921 = vst [vmem:[#allocation3 + $0x68] sm:$0xff] %v827
    %922 = vst [vmem:[#allocation3 + $0x70] sm:$0xff] %v894
    %923 = vst [vmem:[#allocation3 + $0x78] sm:$0xff] %v829
    %924 = vst [vmem:[#allocation3 + $0x80] sm:$0xff] %v831
    %925 = vst [vmem:[#allocation3 + $0x88] sm:$0xff] %v897
    %926 = vst [vmem:[#allocation3 + $0x90] sm:$0xff] %v835
    %927 = vst [vmem:[#allocation3 + $0x98] sm:$0xff] %v837
    %928 = vst [vmem:[#allocation3 + $0xa0] sm:$0xff] %v902
    %929 = vst [vmem:[#allocation3 + $0xa8] sm:$0xff] %v839
    %930 = vst [vmem:[#allocation3 + $0xb0] sm:$0xff] %v841
    %931 = vst [vmem:[#allocation3 + $0xb8] sm:$0xff] %v905
    %v932 = vld [vmem:[#allocation7] sm:$0xff]
    %v933 = vld [vmem:[#allocation7 + $0x8] sm:$0xf]
    %v934 = vld [vmem:[#allocation7 + $0xc] sm:$0xff]
    %v935 = vld [vmem:[#allocation7 + $0x14] sm:$0xf]
    %v936 = vld [vmem:[#allocation7 + $0x18] sm:$0xff]
    %v937 = vld [vmem:[#allocation7 + $0x20] sm:$0xf]
    %v938 = vld [vmem:[#allocation7 + $0x24] sm:$0xff]
    %v939 = vld [vmem:[#allocation7 + $0x2c] sm:$0xf]
    %v940 = vld [vmem:[#allocation7 + $0x30] sm:$0xff]
    %v941 = vld [vmem:[#allocation7 + $0x38] sm:$0xf]
    %v942 = vld [vmem:[#allocation7 + $0x3c] sm:$0xff]
    %v943 = vld [vmem:[#allocation7 + $0x44] sm:$0xf]
    %v944 = vld [vmem:[#allocation7 + $0x48] sm:$0xff]
    %v945 = vld [vmem:[#allocation7 + $0x50] sm:$0xf]
    %v946 = vld [vmem:[#allocation7 + $0x54] sm:$0xff]
    %v947 = vld [vmem:[#allocation7 + $0x5c] sm:$0xf]
    %v948 = vld [vmem:[#allocation7 + $0x60] sm:$0xff]
    %v949 = vld [vmem:[#allocation7 + $0x68] sm:$0xf]
    %v950 = vld [vmem:[#allocation7 + $0x6c] sm:$0xff]
    %v951 = vld [vmem:[#allocation7 + $0x74] sm:$0xf]
    %v952 = vld [vmem:[#allocation7 + $0x78] sm:$0xff]
    %v953 = vld [vmem:[#allocation7 + $0x80] sm:$0xf]
    %v954 = vld [vmem:[#allocation7 + $0x84] sm:$0xff]
    %v955 = vld [vmem:[#allocation7 + $0x8c] sm:$0xf]
    %v956 = vld [vmem:[#allocation7 + $0x90] sm:$0xff]
    %v957 = vld [vmem:[#allocation7 + $0x98] sm:$0xf]
    %v958 = vld [vmem:[#allocation7 + $0x9c] sm:$0xff]
    %v959 = vld [vmem:[#allocation7 + $0xa4] sm:$0xf]
    %v960 = vld [vmem:[#allocation7 + $0xa8] sm:$0xff]
    %v961 = vld [vmem:[#allocation7 + $0xb0] sm:$0xf]
    %v962 = vld [vmem:[#allocation7 + $0xb4] sm:$0xff]
    %v963 = vld [vmem:[#allocation7 + $0xbc] sm:$0xf]
    %v964 = vld [vmem:[%s6] sm:$0x1]
    %s965 = smul.u32 0, 3
    %s966 = smul.addr %s965, 8
    %s967 = scalar_lea.vmem [#allocation3], %s966
    %v968 = vld [vmem:[%s967] sm:$0xff]
    %v969 = vld [vmem:[%s967 + $0x8] sm:$0xff]
    %v970 = vld [vmem:[%s967 + $0x10] sm:$0xff]
    %v1003 = vunpack.c.l.b16 %v932
    %v1004 = vunpack.c.h.b16 %v932
    %v1005 = vunpack.c.l.b16 %v933
    %v1006 = vunpack.c.l.b16 %v934
    %v1007 = vunpack.c.h.b16 %v934
    %v1008 = vunpack.c.l.b16 %v935
    %v1009 = vunpack.c.l.b16 %v936
    %v1010 = vunpack.c.h.b16 %v936
    %v1011 = vunpack.c.l.b16 %v937
    %v1012 = vunpack.c.l.b16 %v938
    %v1013 = vunpack.c.h.b16 %v938
    %v1014 = vunpack.c.l.b16 %v939
    %v1015 = vunpack.c.l.b16 %v940
    %v1016 = vunpack.c.h.b16 %v940
    %v1017 = vunpack.c.l.b16 %v941
    %v1018 = vunpack.c.l.b16 %v942
    %v1019 = vunpack.c.h.b16 %v942
    %v1020 = vunpack.c.l.b16 %v943
    %v1021 = vunpack.c.l.b16 %v944
    %v1022 = vunpack.c.h.b16 %v944
    %v1023 = vunpack.c.l.b16 %v945
    %v1024 = vunpack.c.l.b16 %v946
    %v1025 = vunpack.c.h.b16 %v946
    %v1026 = vunpack.c.l.b16 %v947
    %v1027 = vunpack.c.l.b16 %v948
    %v1028 = vunpack.c.h.b16 %v948
    %v1029 = vunpack.c.l.b16 %v949
    %v1030 = vunpack.c.l.b16 %v950
    %v1031 = vunpack.c.h.b16 %v950
    %v1032 = vunpack.c.l.b16 %v951
    %v1033 = vunpack.c.l.b16 %v952
    %v1034 = vunpack.c.h.b16 %v952
    %v1035 = vunpack.c.l.b16 %v953
    %v1036 = vunpack.c.l.b16 %v954
    %v1037 = vunpack.c.h.b16 %v954
    %v1038 = vunpack.c.l.b16 %v955
    %v1039 = vunpack.c.l.b16 %v956
    %v1040 = vunpack.c.h.b16 %v956
    %v1041 = vunpack.c.l.b16 %v957
    %v1042 = vunpack.c.l.b16 %v958
    %v1043 = vunpack.c.h.b16 %v958
    %v1044 = vunpack.c.l.b16 %v959
    %v1045 = vunpack.c.l.b16 %v960
    %v1046 = vunpack.c.h.b16 %v960
    %v1047 = vunpack.c.l.b16 %v961
    %v1048 = vunpack.c.l.b16 %v962
    %v1049 = vunpack.c.h.b16 %v962
    %v1050 = vunpack.c.l.b16 %v963
    %v1051 = vpack.c.b16 %v1006, %v1003
    %v1052 = vpack.c.b16 %v1007, %v1004
    %v1053 = vpack.c.b16 %v1008, %v1005
    %v1054 = vpack.c.b16 %v1012, %v1009
    %v1055 = vpack.c.b16 %v1013, %v1010
    %v1056 = vpack.c.b16 %v1014, %v1011
    %v1057 = vpack.c.b16 %v1018, %v1015
    %v1058 = vpack.c.b16 %v1019, %v1016
    %v1059 = vpack.c.b16 %v1020, %v1017
    %v1060 = vpack.c.b16 %v1024, %v1021
    %v1061 = vpack.c.b16 %v1025, %v1022
    %v1062 = vpack.c.b16 %v1026, %v1023
    %v1063 = vpack.c.b16 %v1030, %v1027
    %v1064 = vpack.c.b16 %v1031, %v1028
    %v1065 = vpack.c.b16 %v1032, %v1029
    %v1066 = vpack.c.b16 %v1036, %v1033
    %v1067 = vpack.c.b16 %v1037, %v1034
    %v1068 = vpack.c.b16 %v1038, %v1035
    %v1069 = vpack.c.b16 %v1042, %v1039
    %v1070 = vpack.c.b16 %v1043, %v1040
    %v1071 = vpack.c.b16 %v1044, %v1041
    %v1072 = vpack.c.b16 %v1048, %v1045
    %v1073 = vpack.c.b16 %v1049, %v1046
    %v1074 = vpack.c.b16 %v1050, %v1047
    %1099 = vmatprep.subr.bf16.mxu0 %v1073
    %1100 = vmatpush1.bf16.msra.mxu0 %v1072
    %1101 = vmatprep.subr.bf16.mxu0 %v1070
    %1102 = vmatpush1.bf16.msra.mxu0 %v1069
    %1103 = vmatprep.subr.bf16.mxu0 %v1067
    %1104 = vmatpush1.bf16.msra.mxu0 %v1066
    %1105 = vmatprep.subr.bf16.mxu0 %v1064
    %1106 = vmatpush1.bf16.msra.mxu0 %v1063
    %1107 = vmatprep.subr.bf16.mxu0 %v1061
    %1108 = vmatpush1.bf16.msra.mxu0 %v1060
    %1109 = vmatprep.subr.bf16.mxu0 %v1058
    %1110 = vmatpush1.bf16.msra.mxu0 %v1057
    %1111 = vmatprep.subr.bf16.mxu0 %v1055
    %1112 = vmatpush1.bf16.msra.mxu0 %v1054
    %1113 = vmatprep.subr.bf16.mxu0 %v1052
    %1114 = vmatpush1.bf16.msra.mxu0 %v1051
    %1115 = vmatprep.subr.bf16.mxu0 0
    %1116 = vmatpush2.bf16.msra.mxu0 0
    %1117 = vmatprep.subr.bf16.mxu0 0
    %1118 = vmatpush2.bf16.msra.mxu0 0
    %1119 = vmatprep.subr.bf16.mxu0 0
    %1120 = vmatpush2.bf16.msra.mxu0 0
    %1121 = vmatprep.subr.bf16.mxu0 0
    %1122 = vmatpush2.bf16.msra.mxu0 0
    %1123 = vmatprep.subr.bf16.mxu0 0
    %1124 = vmatpush2.bf16.msra.mxu0 0
    %1125 = vmatprep.subr.bf16.mxu0 0
    %1126 = vmatpush2.bf16.msra.mxu0 0
    %1127 = vmatprep.subr.bf16.mxu0 0
    %1128 = vmatpush2.bf16.msra.mxu0 0
    %1129 = vmatprep.subr.bf16.mxu0 0
    %1130 = vmatpush2.bf16.msra.mxu0 0
    %1131 = vmatprep.mubr.bf16.mxu0 0
    %1132 = vmatmul.mubr.bf16.gmra.mxu0 0
    %v1133 = vpop.f32.mrf.mxu0
    %v1134 = vadd.f32 0.0, %v1133
    %v1135 = vpop.f32.mrf.mxu0
    %v1136 = vadd.f32 0.0, %v1135
    %v1137 = vpop.f32.mrf.mxu0
    %v1138 = vpop.f32.mrf.mxu0
    %1139 = vdwg.mxu0
    %1140 = vmatprep.subr.bf16.mxu0 0
    %1141 = vmatpush1.bf16.msra.mxu0 %v1074
    %1142 = vmatprep.subr.bf16.mxu0 0
    %1143 = vmatpush1.bf16.msra.mxu0 %v1071
    %1144 = vmatprep.subr.bf16.mxu0 0
    %1145 = vmatpush1.bf16.msra.mxu0 %v1068
    %1146 = vmatprep.subr.bf16.mxu0 0
    %1147 = vmatpush1.bf16.msra.mxu0 %v1065
    %1148 = vmatprep.subr.bf16.mxu0 0
    %1149 = vmatpush1.bf16.msra.mxu0 %v1062
    %1150 = vmatprep.subr.bf16.mxu0 0
    %1151 = vmatpush1.bf16.msra.mxu0 %v1059
    %1152 = vmatprep.subr.bf16.mxu0 0
    %1153 = vmatpush1.bf16.msra.mxu0 %v1056
    %1154 = vmatprep.subr.bf16.mxu0 0
    %1155 = vmatpush1.bf16.msra.mxu0 %v1053
    %1156 = vmatprep.subr.bf16.mxu0 0
    %1157 = vmatpush2.bf16.msra.mxu0 0
    %1158 = vmatprep.subr.bf16.mxu0 0
    %1159 = vmatpush2.bf16.msra.mxu0 0
    %1160 = vmatprep.subr.bf16.mxu0 0
    %1161 = vmatpush2.bf16.msra.mxu0 0
    %1162 = vmatprep.subr.bf16.mxu0 0
    %1163 = vmatpush2.bf16.msra.mxu0 0
    %1164 = vmatprep.subr.bf16.mxu0 0
    %1165 = vmatpush2.bf16.msra.mxu0 0
    %1166 = vmatprep.subr.bf16.mxu0 0
    %1167 = vmatpush2.bf16.msra.mxu0 0
    %1168 = vmatprep.subr.bf16.mxu0 0
    %1169 = vmatpush2.bf16.msra.mxu0 0
    %1170 = vmatprep.subr.bf16.mxu0 0
    %1171 = vmatpush2.bf16.msra.mxu0 0
    %1172 = vmatprep.mubr.bf16.mxu0 0
    %1173 = vmatmul.mubr.bf16.gmra.mxu0 0
    %v1174 = vpop.f32.mrf.mxu0
    %v1175 = vadd.f32 0.0, %v1174
    %v1176 = vpop.f32.mrf.mxu0
    %v1177 = vpop.f32.mrf.mxu0
    %v1178 = vpop.f32.mrf.mxu0
    %1179 = vdwg.mxu0
    %v1180 = vadd.f32 %v968, %v1134
    %v1181 = vxor.u32 %v1180, 2147483648
    %v1182 = vmul.f32 %v1181, 1.442695
    %v1183 = vpow.pop %v1182
    %v1184 = vadd.f32 %v1183, 1.0
    %v1185 = vrcp.pop %v1184
    %v1186 = vmul.f32 1.0, %v1185
    %v1187 = vadd.f32 %v969, %v1136
    %v1188 = vxor.u32 %v1187, 2147483648
    %v1189 = vmul.f32 %v1188, 1.442695
    %v1190 = vpow.pop %v1189
    %v1191 = vadd.f32 %v1190, 1.0
    %v1192 = vrcp.pop %v1191
    %v1193 = vmul.f32 1.0, %v1192
    %v1195 = vlaneseq
    %v1196 = vshrl.u32 %v1195, 7
    %v1197 = vsub.s32 0, %v1196
    %v1198 = vrot.slane %v964, %v1197
    %v1200 = vadd.f32 %v1175, %v1198
    %v1201 = vmul.f32 %v1186, %v1200
    %v1202 = vadd.f32 %v970, %v1201
    %v1203 = vtanh.pop %v1202
    %v1204 = vsub.f32 0.0, %v1203
    %v1205 = vmul.f32 %v1193, %v1204
    %v1206 = vadd.f32 %v1203, %v1205
    %v1207 = vpack.c.bf16 %v1206, %v1206
    %1208 = vst [vmem:[#allocation2] sm:$0xf] %v1207
    %s1209 = smul.u32 1, 3
    %s1210 = smul.addr %s1209, 8
    %s1211 = scalar_lea.vmem [#allocation3], %s1210
    %v1212 = vld [vmem:[%s1211] sm:$0xff]
    %v1213 = vld [vmem:[%s1211 + $0x8] sm:$0xff]
    %v1214 = vld [vmem:[%s1211 + $0x10] sm:$0xff]
    %1215 = vmatprep.subr.bf16.mxu0 %v1073
    %1216 = vmatpush1.bf16.msra.mxu0 %v1072
    %1217 = vmatprep.subr.bf16.mxu0 %v1070
    %1218 = vmatpush1.bf16.msra.mxu0 %v1069
    %1219 = vmatprep.subr.bf16.mxu0 %v1067
    %1220 = vmatpush1.bf16.msra.mxu0 %v1066
    %1221 = vmatprep.subr.bf16.mxu0 %v1064
    %1222 = vmatpush1.bf16.msra.mxu0 %v1063
    %1223 = vmatprep.subr.bf16.mxu0 %v1061
    %1224 = vmatpush1.bf16.msra.mxu0 %v1060
    %1225 = vmatprep.subr.bf16.mxu0 %v1058
    %1226 = vmatpush1.bf16.msra.mxu0 %v1057
    %1227 = vmatprep.subr.bf16.mxu0 %v1055
    %1228 = vmatpush1.bf16.msra.mxu0 %v1054
    %1229 = vmatprep.subr.bf16.mxu0 %v1052
    %1230 = vmatpush1.bf16.msra.mxu0 %v1051
    %1231 = vmatprep.subr.bf16.mxu0 0
    %1232 = vmatpush2.bf16.msra.mxu0 0
    %1233 = vmatprep.subr.bf16.mxu0 0
    %1234 = vmatpush2.bf16.msra.mxu0 0
    %1235 = vmatprep.subr.bf16.mxu0 0
    %1236 = vmatpush2.bf16.msra.mxu0 0
    %1237 = vmatprep.subr.bf16.mxu0 0
    %1238 = vmatpush2.bf16.msra.mxu0 0
    %1239 = vmatprep.subr.bf16.mxu0 0
    %1240 = vmatpush2.bf16.msra.mxu0 0
    %1241 = vmatprep.subr.bf16.mxu0 0
    %1242 = vmatpush2.bf16.msra.mxu0 0
    %1243 = vmatprep.subr.bf16.mxu0 0
    %1244 = vmatpush2.bf16.msra.mxu0 0
    %1245 = vmatprep.subr.bf16.mxu0 0
    %1246 = vmatpush2.bf16.msra.mxu0 0
    %1247 = vmatprep.mubr.bf16.mxu0 0
    %1248 = vmatmul.mubr.bf16.gmra.mxu0 %v1207
    %v1249 = vpop.f32.mrf.mxu0
    %v1250 = vadd.f32 0.0, %v1249
    %v1251 = vpop.f32.mrf.mxu0
    %v1252 = vadd.f32 0.0, %v1251
    %v1253 = vpop.f32.mrf.mxu0
    %v1254 = vpop.f32.mrf.mxu0
    %1255 = vdwg.mxu0
    %1256 = vmatprep.subr.bf16.mxu0 0
    %1257 = vmatpush1.bf16.msra.mxu0 %v1074
    %1258 = vmatprep.subr.bf16.mxu0 0
    %1259 = vmatpush1.bf16.msra.mxu0 %v1071
    %1260 = vmatprep.subr.bf16.mxu0 0
    %1261 = vmatpush1.bf16.msra.mxu0 %v1068
    %1262 = vmatprep.subr.bf16.mxu0 0
    %1263 = vmatpush1.bf16.msra.mxu0 %v1065
    %1264 = vmatprep.subr.bf16.mxu0 0
    %1265 = vmatpush1.bf16.msra.mxu0 %v1062
    %1266 = vmatprep.subr.bf16.mxu0 0
    %1267 = vmatpush1.bf16.msra.mxu0 %v1059
    %1268 = vmatprep.subr.bf16.mxu0 0
    %1269 = vmatpush1.bf16.msra.mxu0 %v1056
    %1270 = vmatprep.subr.bf16.mxu0 0
    %1271 = vmatpush1.bf16.msra.mxu0 %v1053
    %1272 = vmatprep.subr.bf16.mxu0 0
    %1273 = vmatpush2.bf16.msra.mxu0 0
    %1274 = vmatprep.subr.bf16.mxu0 0
    %1275 = vmatpush2.bf16.msra.mxu0 0
    %1276 = vmatprep.subr.bf16.mxu0 0
    %1277 = vmatpush2.bf16.msra.mxu0 0
    %1278 = vmatprep.subr.bf16.mxu0 0
    %1279 = vmatpush2.bf16.msra.mxu0 0
    %1280 = vmatprep.subr.bf16.mxu0 0
    %1281 = vmatpush2.bf16.msra.mxu0 0
    %1282 = vmatprep.subr.bf16.mxu0 0
    %1283 = vmatpush2.bf16.msra.mxu0 0
    %1284 = vmatprep.subr.bf16.mxu0 0
    %1285 = vmatpush2.bf16.msra.mxu0 0
    %1286 = vmatprep.subr.bf16.mxu0 0
    %1287 = vmatpush2.bf16.msra.mxu0 0
    %1288 = vmatprep.mubr.bf16.mxu0 0
    %1289 = vmatmul.mubr.bf16.gmra.mxu0 %v1207
    %v1290 = vpop.f32.mrf.mxu0
    %v1291 = vadd.f32 0.0, %v1290
    %v1292 = vpop.f32.mrf.mxu0
    %v1293 = vpop.f32.mrf.mxu0
    %v1294 = vpop.f32.mrf.mxu0
    %1295 = vdwg.mxu0
    %v1296 = vadd.f32 %v1212, %v1250
    %v1297 = vxor.u32 %v1296, 2147483648
    %v1298 = vmul.f32 %v1297, 1.442695
    %v1299 = vpow.pop %v1298
    %v1300 = vadd.f32 %v1299, 1.0
    %v1301 = vrcp.pop %v1300
    %v1302 = vmul.f32 1.0, %v1301
    %v1303 = vadd.f32 %v1213, %v1252
    %v1304 = vxor.u32 %v1303, 2147483648
    %v1305 = vmul.f32 %v1304, 1.442695
    %v1306 = vpow.pop %v1305
    %v1307 = vadd.f32 %v1306, 1.0
    %v1308 = vrcp.pop %v1307
    %v1309 = vmul.f32 1.0, %v1308
    %v1310 = vadd.f32 %v1291, %v1198
    %v1311 = vmul.f32 %v1302, %v1310
    %v1312 = vadd.f32 %v1214, %v1311
    %v1313 = vtanh.pop %v1312
    %v1314 = vsub.f32 %v1206, %v1313
    %v1315 = vmul.f32 %v1309, %v1314
    %v1316 = vadd.f32 %v1313, %v1315
    %v1317 = vpack.c.bf16 %v1316, %v1316
    %s1318 = scalar_lea.vmem [#allocation2], 4
    %1319 = vst [vmem:[%s1318] sm:$0xf] %v1317
    %s1320 = smul.u32 2, 3
    %s1321 = smul.addr %s1320, 8
    %s1322 = scalar_lea.vmem [#allocation3], %s1321
    %v1323 = vld [vmem:[%s1322] sm:$0xff]
    %v1324 = vld [vmem:[%s1322 + $0x8] sm:$0xff]
    %v1325 = vld [vmem:[%s1322 + $0x10] sm:$0xff]
    %1326 = vmatprep.subr.bf16.mxu0 %v1073
    %1327 = vmatpush1.bf16.msra.mxu0 %v1072
    %1328 = vmatprep.subr.bf16.mxu0 %v1070
    %1329 = vmatpush1.bf16.msra.mxu0 %v1069
    %1330 = vmatprep.subr.bf16.mxu0 %v1067
    %1331 = vmatpush1.bf16.msra.mxu0 %v1066
    %1332 = vmatprep.subr.bf16.mxu0 %v1064
    %1333 = vmatpush1.bf16.msra.mxu0 %v1063
    %1334 = vmatprep.subr.bf16.mxu0 %v1061
    %1335 = vmatpush1.bf16.msra.mxu0 %v1060
    %1336 = vmatprep.subr.bf16.mxu0 %v1058
    %1337 = vmatpush1.bf16.msra.mxu0 %v1057
    %1338 = vmatprep.subr.bf16.mxu0 %v1055
    %1339 = vmatpush1.bf16.msra.mxu0 %v1054
    %1340 = vmatprep.subr.bf16.mxu0 %v1052
    %1341 = vmatpush1.bf16.msra.mxu0 %v1051
    %1342 = vmatprep.subr.bf16.mxu0 0
    %1343 = vmatpush2.bf16.msra.mxu0 0
    %1344 = vmatprep.subr.bf16.mxu0 0
    %1345 = vmatpush2.bf16.msra.mxu0 0
    %1346 = vmatprep.subr.bf16.mxu0 0
    %1347 = vmatpush2.bf16.msra.mxu0 0
    %1348 = vmatprep.subr.bf16.mxu0 0
    %1349 = vmatpush2.bf16.msra.mxu0 0
    %1350 = vmatprep.subr.bf16.mxu0 0
    %1351 = vmatpush2.bf16.msra.mxu0 0
    %1352 = vmatprep.subr.bf16.mxu0 0
    %1353 = vmatpush2.bf16.msra.mxu0 0
    %1354 = vmatprep.subr.bf16.mxu0 0
    %1355 = vmatpush2.bf16.msra.mxu0 0
    %1356 = vmatprep.subr.bf16.mxu0 0
    %1357 = vmatpush2.bf16.msra.mxu0 0
    %1358 = vmatprep.mubr.bf16.mxu0 0
    %1359 = vmatmul.mubr.bf16.gmra.mxu0 %v1317
    %v1360 = vpop.f32.mrf.mxu0
    %v1361 = vadd.f32 0.0, %v1360
    %v1362 = vpop.f32.mrf.mxu0
    %v1363 = vadd.f32 0.0, %v1362
    %v1364 = vpop.f32.mrf.mxu0
    %v1365 = vpop.f32.mrf.mxu0
    %1366 = vdwg.mxu0
    %1367 = vmatprep.subr.bf16.mxu0 0
    %1368 = vmatpush1.bf16.msra.mxu0 %v1074
    %1369 = vmatprep.subr.bf16.mxu0 0
    %1370 = vmatpush1.bf16.msra.mxu0 %v1071
    %1371 = vmatprep.subr.bf16.mxu0 0
    %1372 = vmatpush1.bf16.msra.mxu0 %v1068
    %1373 = vmatprep.subr.bf16.mxu0 0
    %1374 = vmatpush1.bf16.msra.mxu0 %v1065
    %1375 = vmatprep.subr.bf16.mxu0 0
    %1376 = vmatpush1.bf16.msra.mxu0 %v1062
    %1377 = vmatprep.subr.bf16.mxu0 0
    %1378 = vmatpush1.bf16.msra.mxu0 %v1059
    %1379 = vmatprep.subr.bf16.mxu0 0
    %1380 = vmatpush1.bf16.msra.mxu0 %v1056
    %1381 = vmatprep.subr.bf16.mxu0 0
    %1382 = vmatpush1.bf16.msra.mxu0 %v1053
    %1383 = vmatprep.subr.bf16.mxu0 0
    %1384 = vmatpush2.bf16.msra.mxu0 0
    %1385 = vmatprep.subr.bf16.mxu0 0
    %1386 = vmatpush2.bf16.msra.mxu0 0
    %1387 = vmatprep.subr.bf16.mxu0 0
    %1388 = vmatpush2.bf16.msra.mxu0 0
    %1389 = vmatprep.subr.bf16.mxu0 0
    %1390 = vmatpush2.bf16.msra.mxu0 0
    %1391 = vmatprep.subr.bf16.mxu0 0
    %1392 = vmatpush2.bf16.msra.mxu0 0
    %1393 = vmatprep.subr.bf16.mxu0 0
    %1394 = vmatpush2.bf16.msra.mxu0 0
    %1395 = vmatprep.subr.bf16.mxu0 0
    %1396 = vmatpush2.bf16.msra.mxu0 0
    %1397 = vmatprep.subr.bf16.mxu0 0
    %1398 = vmatpush2.bf16.msra.mxu0 0
    %1399 = vmatprep.mubr.bf16.mxu0 0
    %1400 = vmatmul.mubr.bf16.gmra.mxu0 %v1317
    %v1401 = vpop.f32.mrf.mxu0
    %v1402 = vadd.f32 0.0, %v1401
    %v1403 = vpop.f32.mrf.mxu0
    %v1404 = vpop.f32.mrf.mxu0
    %v1405 = vpop.f32.mrf.mxu0
    %1406 = vdwg.mxu0
    %v1407 = vadd.f32 %v1323, %v1361
    %v1408 = vxor.u32 %v1407, 2147483648
    %v1409 = vmul.f32 %v1408, 1.442695
    %v1410 = vpow.pop %v1409
    %v1411 = vadd.f32 %v1410, 1.0
    %v1412 = vrcp.pop %v1411
    %v1413 = vmul.f32 1.0, %v1412
    %v1414 = vadd.f32 %v1324, %v1363
    %v1415 = vxor.u32 %v1414, 2147483648
    %v1416 = vmul.f32 %v1415, 1.442695
    %v1417 = vpow.pop %v1416
    %v1418 = vadd.f32 %v1417, 1.0
    %v1419 = vrcp.pop %v1418
    %v1420 = vmul.f32 1.0, %v1419
    %v1421 = vadd.f32 %v1402, %v1198
    %v1422 = vmul.f32 %v1413, %v1421
    %v1423 = vadd.f32 %v1325, %v1422
    %v1424 = vtanh.pop %v1423
    %v1425 = vsub.f32 %v1316, %v1424
    %v1426 = vmul.f32 %v1420, %v1425
    %v1427 = vadd.f32 %v1424, %v1426
    %v1428 = vpack.c.bf16 %v1427, %v1427
    %s1429 = scalar_lea.vmem [#allocation2], 8
    %1430 = vst [vmem:[%s1429] sm:$0xf] %v1428
    %s1431 = smul.u32 3, 3
    %s1432 = smul.addr %s1431, 8
    %s1433 = scalar_lea.vmem [#allocation3], %s1432
    %v1434 = vld [vmem:[%s1433] sm:$0xff]
    %v1435 = vld [vmem:[%s1433 + $0x8] sm:$0xff]
    %v1436 = vld [vmem:[%s1433 + $0x10] sm:$0xff]
    %1437 = vmatprep.subr.bf16.mxu0 %v1073
    %1438 = vmatpush1.bf16.msra.mxu0 %v1072
    %1439 = vmatprep.subr.bf16.mxu0 %v1070
    %1440 = vmatpush1.bf16.msra.mxu0 %v1069
    %1441 = vmatprep.subr.bf16.mxu0 %v1067
    %1442 = vmatpush1.bf16.msra.mxu0 %v1066
    %1443 = vmatprep.subr.bf16.mxu0 %v1064
    %1444 = vmatpush1.bf16.msra.mxu0 %v1063
    %1445 = vmatprep.subr.bf16.mxu0 %v1061
    %1446 = vmatpush1.bf16.msra.mxu0 %v1060
    %1447 = vmatprep.subr.bf16.mxu0 %v1058
    %1448 = vmatpush1.bf16.msra.mxu0 %v1057
    %1449 = vmatprep.subr.bf16.mxu0 %v1055
    %1450 = vmatpush1.bf16.msra.mxu0 %v1054
    %1451 = vmatprep.subr.bf16.mxu0 %v1052
    %1452 = vmatpush1.bf16.msra.mxu0 %v1051
    %1453 = vmatprep.subr.bf16.mxu0 0
    %1454 = vmatpush2.bf16.msra.mxu0 0
    %1455 = vmatprep.subr.bf16.mxu0 0
    %1456 = vmatpush2.bf16.msra.mxu0 0
    %1457 = vmatprep.subr.bf16.mxu0 0
    %1458 = vmatpush2.bf16.msra.mxu0 0
    %1459 = vmatprep.subr.bf16.mxu0 0
    %1460 = vmatpush2.bf16.msra.mxu0 0
    %1461 = vmatprep.subr.bf16.mxu0 0
    %1462 = vmatpush2.bf16.msra.mxu0 0
    %1463 = vmatprep.subr.bf16.mxu0 0
    %1464 = vmatpush2.bf16.msra.mxu0 0
    %1465 = vmatprep.subr.bf16.mxu0 0
    %1466 = vmatpush2.bf16.msra.mxu0 0
    %1467 = vmatprep.subr.bf16.mxu0 0
    %1468 = vmatpush2.bf16.msra.mxu0 0
    %1469 = vmatprep.mubr.bf16.mxu0 0
    %1470 = vmatmul.mubr.bf16.gmra.mxu0 %v1428
    %v1471 = vpop.f32.mrf.mxu0
    %v1472 = vadd.f32 0.0, %v1471
    %v1473 = vpop.f32.mrf.mxu0
    %v1474 = vadd.f32 0.0, %v1473
    %v1475 = vpop.f32.mrf.mxu0
    %v1476 = vpop.f32.mrf.mxu0
    %1477 = vdwg.mxu0
    %1478 = vmatprep.subr.bf16.mxu0 0
    %1479 = vmatpush1.bf16.msra.mxu0 %v1074
    %1480 = vmatprep.subr.bf16.mxu0 0
    %1481 = vmatpush1.bf16.msra.mxu0 %v1071
    %1482 = vmatprep.subr.bf16.mxu0 0
    %1483 = vmatpush1.bf16.msra.mxu0 %v1068
    %1484 = vmatprep.subr.bf16.mxu0 0
    %1485 = vmatpush1.bf16.msra.mxu0 %v1065
    %1486 = vmatprep.subr.bf16.mxu0 0
    %1487 = vmatpush1.bf16.msra.mxu0 %v1062
    %1488 = vmatprep.subr.bf16.mxu0 0
    %1489 = vmatpush1.bf16.msra.mxu0 %v1059
    %1490 = vmatprep.subr.bf16.mxu0 0
    %1491 = vmatpush1.bf16.msra.mxu0 %v1056
    %1492 = vmatprep.subr.bf16.mxu0 0
    %1493 = vmatpush1.bf16.msra.mxu0 %v1053
    %1494 = vmatprep.subr.bf16.mxu0 0
    %1495 = vmatpush2.bf16.msra.mxu0 0
    %1496 = vmatprep.subr.bf16.mxu0 0
    %1497 = vmatpush2.bf16.msra.mxu0 0
    %1498 = vmatprep.subr.bf16.mxu0 0
    %1499 = vmatpush2.bf16.msra.mxu0 0
    %1500 = vmatprep.subr.bf16.mxu0 0
    %1501 = vmatpush2.bf16.msra.mxu0 0
    %1502 = vmatprep.subr.bf16.mxu0 0
    %1503 = vmatpush2.bf16.msra.mxu0 0
    %1504 = vmatprep.subr.bf16.mxu0 0
    %1505 = vmatpush2.bf16.msra.mxu0 0
    %1506 = vmatprep.subr.bf16.mxu0 0
    %1507 = vmatpush2.bf16.msra.mxu0 0
    %1508 = vmatprep.subr.bf16.mxu0 0
    %1509 = vmatpush2.bf16.msra.mxu0 0
    %1510 = vmatprep.mubr.bf16.mxu0 0
    %1511 = vmatmul.mubr.bf16.gmra.mxu0 %v1428
    %v1512 = vpop.f32.mrf.mxu0
    %v1513 = vadd.f32 0.0, %v1512
    %v1514 = vpop.f32.mrf.mxu0
    %v1515 = vpop.f32.mrf.mxu0
    %v1516 = vpop.f32.mrf.mxu0
    %1517 = vdwg.mxu0
    %v1518 = vadd.f32 %v1434, %v1472
    %v1519 = vxor.u32 %v1518, 2147483648
    %v1520 = vmul.f32 %v1519, 1.442695
    %v1521 = vpow.pop %v1520
    %v1522 = vadd.f32 %v1521, 1.0
    %v1523 = vrcp.pop %v1522
    %v1524 = vmul.f32 1.0, %v1523
    %v1525 = vadd.f32 %v1435, %v1474
    %v1526 = vxor.u32 %v1525, 2147483648
    %v1527 = vmul.f32 %v1526, 1.442695
    %v1528 = vpow.pop %v1527
    %v1529 = vadd.f32 %v1528, 1.0
    %v1530 = vrcp.pop %v1529
    %v1531 = vmul.f32 1.0, %v1530
    %v1532 = vadd.f32 %v1513, %v1198
    %v1533 = vmul.f32 %v1524, %v1532
    %v1534 = vadd.f32 %v1436, %v1533
    %v1535 = vtanh.pop %v1534
    %v1536 = vsub.f32 %v1427, %v1535
    %v1537 = vmul.f32 %v1531, %v1536
    %v1538 = vadd.f32 %v1535, %v1537
    %v1539 = vpack.c.bf16 %v1538, %v1538
    %s1540 = scalar_lea.vmem [#allocation2], 12
    %1541 = vst [vmem:[%s1540] sm:$0xf] %v1539
    %s1542 = smul.u32 4, 3
    %s1543 = smul.addr %s1542, 8
    %s1544 = scalar_lea.vmem [#allocation3], %s1543
    %v1545 = vld [vmem:[%s1544] sm:$0xff]
    %v1546 = vld [vmem:[%s1544 + $0x8] sm:$0xff]
    %v1547 = vld [vmem:[%s1544 + $0x10] sm:$0xff]
    %1548 = vmatprep.subr.bf16.mxu0 %v1073
    %1549 = vmatpush1.bf16.msra.mxu0 %v1072
    %1550 = vmatprep.subr.bf16.mxu0 %v1070
    %1551 = vmatpush1.bf16.msra.mxu0 %v1069
    %1552 = vmatprep.subr.bf16.mxu0 %v1067
    %1553 = vmatpush1.bf16.msra.mxu0 %v1066
    %1554 = vmatprep.subr.bf16.mxu0 %v1064
    %1555 = vmatpush1.bf16.msra.mxu0 %v1063
    %1556 = vmatprep.subr.bf16.mxu0 %v1061
    %1557 = vmatpush1.bf16.msra.mxu0 %v1060
    %1558 = vmatprep.subr.bf16.mxu0 %v1058
    %1559 = vmatpush1.bf16.msra.mxu0 %v1057
    %1560 = vmatprep.subr.bf16.mxu0 %v1055
    %1561 = vmatpush1.bf16.msra.mxu0 %v1054
    %1562 = vmatprep.subr.bf16.mxu0 %v1052
    %1563 = vmatpush1.bf16.msra.mxu0 %v1051
    %1564 = vmatprep.subr.bf16.mxu0 0
    %1565 = vmatpush2.bf16.msra.mxu0 0
    %1566 = vmatprep.subr.bf16.mxu0 0
    %1567 = vmatpush2.bf16.msra.mxu0 0
    %1568 = vmatprep.subr.bf16.mxu0 0
    %1569 = vmatpush2.bf16.msra.mxu0 0
    %1570 = vmatprep.subr.bf16.mxu0 0
    %1571 = vmatpush2.bf16.msra.mxu0 0
    %1572 = vmatprep.subr.bf16.mxu0 0
    %1573 = vmatpush2.bf16.msra.mxu0 0
    %1574 = vmatprep.subr.bf16.mxu0 0
    %1575 = vmatpush2.bf16.msra.mxu0 0
    %1576 = vmatprep.subr.bf16.mxu0 0
    %1577 = vmatpush2.bf16.msra.mxu0 0
    %1578 = vmatprep.subr.bf16.mxu0 0
    %1579 = vmatpush2.bf16.msra.mxu0 0
    %1580 = vmatprep.mubr.bf16.mxu0 0
    %1581 = vmatmul.mubr.bf16.gmra.mxu0 %v1539
    %v1582 = vpop.f32.mrf.mxu0
    %v1583 = vadd.f32 0.0, %v1582
    %v1584 = vpop.f32.mrf.mxu0
    %v1585 = vadd.f32 0.0, %v1584
    %v1586 = vpop.f32.mrf.mxu0
    %v1587 = vpop.f32.mrf.mxu0
    %1588 = vdwg.mxu0
    %1589 = vmatprep.subr.bf16.mxu0 0
    %1590 = vmatpush1.bf16.msra.mxu0 %v1074
    %1591 = vmatprep.subr.bf16.mxu0 0
    %1592 = vmatpush1.bf16.msra.mxu0 %v1071
    %1593 = vmatprep.subr.bf16.mxu0 0
    %1594 = vmatpush1.bf16.msra.mxu0 %v1068
    %1595 = vmatprep.subr.bf16.mxu0 0
    %1596 = vmatpush1.bf16.msra.mxu0 %v1065
    %1597 = vmatprep.subr.bf16.mxu0 0
    %1598 = vmatpush1.bf16.msra.mxu0 %v1062
    %1599 = vmatprep.subr.bf16.mxu0 0
    %1600 = vmatpush1.bf16.msra.mxu0 %v1059
    %1601 = vmatprep.subr.bf16.mxu0 0
    %1602 = vmatpush1.bf16.msra.mxu0 %v1056
    %1603 = vmatprep.subr.bf16.mxu0 0
    %1604 = vmatpush1.bf16.msra.mxu0 %v1053
    %1605 = vmatprep.subr.bf16.mxu0 0
    %1606 = vmatpush2.bf16.msra.mxu0 0
    %1607 = vmatprep.subr.bf16.mxu0 0
    %1608 = vmatpush2.bf16.msra.mxu0 0
    %1609 = vmatprep.subr.bf16.mxu0 0
    %1610 = vmatpush2.bf16.msra.mxu0 0
    %1611 = vmatprep.subr.bf16.mxu0 0
    %1612 = vmatpush2.bf16.msra.mxu0 0
    %1613 = vmatprep.subr.bf16.mxu0 0
    %1614 = vmatpush2.bf16.msra.mxu0 0
    %1615 = vmatprep.subr.bf16.mxu0 0
    %1616 = vmatpush2.bf16.msra.mxu0 0
    %1617 = vmatprep.subr.bf16.mxu0 0
    %1618 = vmatpush2.bf16.msra.mxu0 0
    %1619 = vmatprep.subr.bf16.mxu0 0
    %1620 = vmatpush2.bf16.msra.mxu0 0
    %1621 = vmatprep.mubr.bf16.mxu0 0
    %1622 = vmatmul.mubr.bf16.gmra.mxu0 %v1539
    %v1623 = vpop.f32.mrf.mxu0
    %v1624 = vadd.f32 0.0, %v1623
    %v1625 = vpop.f32.mrf.mxu0
    %v1626 = vpop.f32.mrf.mxu0
    %v1627 = vpop.f32.mrf.mxu0
    %1628 = vdwg.mxu0
    %v1629 = vadd.f32 %v1545, %v1583
    %v1630 = vxor.u32 %v1629, 2147483648
    %v1631 = vmul.f32 %v1630, 1.442695
    %v1632 = vpow.pop %v1631
    %v1633 = vadd.f32 %v1632, 1.0
    %v1634 = vrcp.pop %v1633
    %v1635 = vmul.f32 1.0, %v1634
    %v1636 = vadd.f32 %v1546, %v1585
    %v1637 = vxor.u32 %v1636, 2147483648
    %v1638 = vmul.f32 %v1637, 1.442695
    %v1639 = vpow.pop %v1638
    %v1640 = vadd.f32 %v1639, 1.0
    %v1641 = vrcp.pop %v1640
    %v1642 = vmul.f32 1.0, %v1641
    %v1643 = vadd.f32 %v1624, %v1198
    %v1644 = vmul.f32 %v1635, %v1643
    %v1645 = vadd.f32 %v1547, %v1644
    %v1646 = vtanh.pop %v1645
    %v1647 = vsub.f32 %v1538, %v1646
    %v1648 = vmul.f32 %v1642, %v1647
    %v1649 = vadd.f32 %v1646, %v1648
    %v1650 = vpack.c.bf16 %v1649, %v1649
    %s1651 = scalar_lea.vmem [#allocation2], 16
    %1652 = vst [vmem:[%s1651] sm:$0xf] %v1650
    %s1653 = smul.u32 5, 3
    %s1654 = smul.addr %s1653, 8
    %s1655 = scalar_lea.vmem [#allocation3], %s1654
    %v1656 = vld [vmem:[%s1655] sm:$0xff]
    %v1657 = vld [vmem:[%s1655 + $0x8] sm:$0xff]
    %v1658 = vld [vmem:[%s1655 + $0x10] sm:$0xff]
    %1659 = vmatprep.subr.bf16.mxu0 %v1073
    %1660 = vmatpush1.bf16.msra.mxu0 %v1072
    %1661 = vmatprep.subr.bf16.mxu0 %v1070
    %1662 = vmatpush1.bf16.msra.mxu0 %v1069
    %1663 = vmatprep.subr.bf16.mxu0 %v1067
    %1664 = vmatpush1.bf16.msra.mxu0 %v1066
    %1665 = vmatprep.subr.bf16.mxu0 %v1064
    %1666 = vmatpush1.bf16.msra.mxu0 %v1063
    %1667 = vmatprep.subr.bf16.mxu0 %v1061
    %1668 = vmatpush1.bf16.msra.mxu0 %v1060
    %1669 = vmatprep.subr.bf16.mxu0 %v1058
    %1670 = vmatpush1.bf16.msra.mxu0 %v1057
    %1671 = vmatprep.subr.bf16.mxu0 %v1055
    %1672 = vmatpush1.bf16.msra.mxu0 %v1054
    %1673 = vmatprep.subr.bf16.mxu0 %v1052
    %1674 = vmatpush1.bf16.msra.mxu0 %v1051
    %1675 = vmatprep.subr.bf16.mxu0 0
    %1676 = vmatpush2.bf16.msra.mxu0 0
    %1677 = vmatprep.subr.bf16.mxu0 0
    %1678 = vmatpush2.bf16.msra.mxu0 0
    %1679 = vmatprep.subr.bf16.mxu0 0
    %1680 = vmatpush2.bf16.msra.mxu0 0
    %1681 = vmatprep.subr.bf16.mxu0 0
    %1682 = vmatpush2.bf16.msra.mxu0 0
    %1683 = vmatprep.subr.bf16.mxu0 0
    %1684 = vmatpush2.bf16.msra.mxu0 0
    %1685 = vmatprep.subr.bf16.mxu0 0
    %1686 = vmatpush2.bf16.msra.mxu0 0
    %1687 = vmatprep.subr.bf16.mxu0 0
    %1688 = vmatpush2.bf16.msra.mxu0 0
    %1689 = vmatprep.subr.bf16.mxu0 0
    %1690 = vmatpush2.bf16.msra.mxu0 0
    %1691 = vmatprep.mubr.bf16.mxu0 0
    %1692 = vmatmul.mubr.bf16.gmra.mxu0 %v1650
    %v1693 = vpop.f32.mrf.mxu0
    %v1694 = vadd.f32 0.0, %v1693
    %v1695 = vpop.f32.mrf.mxu0
    %v1696 = vadd.f32 0.0, %v1695
    %v1697 = vpop.f32.mrf.mxu0
    %v1698 = vpop.f32.mrf.mxu0
    %1699 = vdwg.mxu0
    %1700 = vmatprep.subr.bf16.mxu0 0
    %1701 = vmatpush1.bf16.msra.mxu0 %v1074
    %1702 = vmatprep.subr.bf16.mxu0 0
    %1703 = vmatpush1.bf16.msra.mxu0 %v1071
    %1704 = vmatprep.subr.bf16.mxu0 0
    %1705 = vmatpush1.bf16.msra.mxu0 %v1068
    %1706 = vmatprep.subr.bf16.mxu0 0
    %1707 = vmatpush1.bf16.msra.mxu0 %v1065
    %1708 = vmatprep.subr.bf16.mxu0 0
    %1709 = vmatpush1.bf16.msra.mxu0 %v1062
    %1710 = vmatprep.subr.bf16.mxu0 0
    %1711 = vmatpush1.bf16.msra.mxu0 %v1059
    %1712 = vmatprep.subr.bf16.mxu0 0
    %1713 = vmatpush1.bf16.msra.mxu0 %v1056
    %1714 = vmatprep.subr.bf16.mxu0 0
    %1715 = vmatpush1.bf16.msra.mxu0 %v1053
    %1716 = vmatprep.subr.bf16.mxu0 0
    %1717 = vmatpush2.bf16.msra.mxu0 0
    %1718 = vmatprep.subr.bf16.mxu0 0
    %1719 = vmatpush2.bf16.msra.mxu0 0
    %1720 = vmatprep.subr.bf16.mxu0 0
    %1721 = vmatpush2.bf16.msra.mxu0 0
    %1722 = vmatprep.subr.bf16.mxu0 0
    %1723 = vmatpush2.bf16.msra.mxu0 0
    %1724 = vmatprep.subr.bf16.mxu0 0
    %1725 = vmatpush2.bf16.msra.mxu0 0
    %1726 = vmatprep.subr.bf16.mxu0 0
    %1727 = vmatpush2.bf16.msra.mxu0 0
    %1728 = vmatprep.subr.bf16.mxu0 0
    %1729 = vmatpush2.bf16.msra.mxu0 0
    %1730 = vmatprep.subr.bf16.mxu0 0
    %1731 = vmatpush2.bf16.msra.mxu0 0
    %1732 = vmatprep.mubr.bf16.mxu0 0
    %1733 = vmatmul.mubr.bf16.gmra.mxu0 %v1650
    %v1734 = vpop.f32.mrf.mxu0
    %v1735 = vadd.f32 0.0, %v1734
    %v1736 = vpop.f32.mrf.mxu0
    %v1737 = vpop.f32.mrf.mxu0
    %v1738 = vpop.f32.mrf.mxu0
    %1739 = vdwg.mxu0
    %v1740 = vadd.f32 %v1656, %v1694
    %v1741 = vxor.u32 %v1740, 2147483648
    %v1742 = vmul.f32 %v1741, 1.442695
    %v1743 = vpow.pop %v1742
    %v1744 = vadd.f32 %v1743, 1.0
    %v1745 = vrcp.pop %v1744
    %v1746 = vmul.f32 1.0, %v1745
    %v1747 = vadd.f32 %v1657, %v1696
    %v1748 = vxor.u32 %v1747, 2147483648
    %v1749 = vmul.f32 %v1748, 1.442695
    %v1750 = vpow.pop %v1749
    %v1751 = vadd.f32 %v1750, 1.0
    %v1752 = vrcp.pop %v1751
    %v1753 = vmul.f32 1.0, %v1752
    %v1754 = vadd.f32 %v1735, %v1198
    %v1755 = vmul.f32 %v1746, %v1754
    %v1756 = vadd.f32 %v1658, %v1755
    %v1757 = vtanh.pop %v1756
    %v1758 = vsub.f32 %v1649, %v1757
    %v1759 = vmul.f32 %v1753, %v1758
    %v1760 = vadd.f32 %v1757, %v1759
    %v1761 = vpack.c.bf16 %v1760, %v1760
    %s1762 = scalar_lea.vmem [#allocation2], 20
    %1763 = vst [vmem:[%s1762] sm:$0xf] %v1761
    %s1764 = smul.u32 6, 3
    %s1765 = smul.addr %s1764, 8
    %s1766 = scalar_lea.vmem [#allocation3], %s1765
    %v1767 = vld [vmem:[%s1766] sm:$0xff]
    %v1768 = vld [vmem:[%s1766 + $0x8] sm:$0xff]
    %v1769 = vld [vmem:[%s1766 + $0x10] sm:$0xff]
    %1770 = vmatprep.subr.bf16.mxu0 %v1073
    %1771 = vmatpush1.bf16.msra.mxu0 %v1072
    %1772 = vmatprep.subr.bf16.mxu0 %v1070
    %1773 = vmatpush1.bf16.msra.mxu0 %v1069
    %1774 = vmatprep.subr.bf16.mxu0 %v1067
    %1775 = vmatpush1.bf16.msra.mxu0 %v1066
    %1776 = vmatprep.subr.bf16.mxu0 %v1064
    %1777 = vmatpush1.bf16.msra.mxu0 %v1063
    %1778 = vmatprep.subr.bf16.mxu0 %v1061
    %1779 = vmatpush1.bf16.msra.mxu0 %v1060
    %1780 = vmatprep.subr.bf16.mxu0 %v1058
    %1781 = vmatpush1.bf16.msra.mxu0 %v1057
    %1782 = vmatprep.subr.bf16.mxu0 %v1055
    %1783 = vmatpush1.bf16.msra.mxu0 %v1054
    %1784 = vmatprep.subr.bf16.mxu0 %v1052
    %1785 = vmatpush1.bf16.msra.mxu0 %v1051
    %1786 = vmatprep.subr.bf16.mxu0 0
    %1787 = vmatpush2.bf16.msra.mxu0 0
    %1788 = vmatprep.subr.bf16.mxu0 0
    %1789 = vmatpush2.bf16.msra.mxu0 0
    %1790 = vmatprep.subr.bf16.mxu0 0
    %1791 = vmatpush2.bf16.msra.mxu0 0
    %1792 = vmatprep.subr.bf16.mxu0 0
    %1793 = vmatpush2.bf16.msra.mxu0 0
    %1794 = vmatprep.subr.bf16.mxu0 0
    %1795 = vmatpush2.bf16.msra.mxu0 0
    %1796 = vmatprep.subr.bf16.mxu0 0
    %1797 = vmatpush2.bf16.msra.mxu0 0
    %1798 = vmatprep.subr.bf16.mxu0 0
    %1799 = vmatpush2.bf16.msra.mxu0 0
    %1800 = vmatprep.subr.bf16.mxu0 0
    %1801 = vmatpush2.bf16.msra.mxu0 0
    %1802 = vmatprep.mubr.bf16.mxu0 0
    %1803 = vmatmul.mubr.bf16.gmra.mxu0 %v1761
    %v1804 = vpop.f32.mrf.mxu0
    %v1805 = vadd.f32 0.0, %v1804
    %v1806 = vpop.f32.mrf.mxu0
    %v1807 = vadd.f32 0.0, %v1806
    %v1808 = vpop.f32.mrf.mxu0
    %v1809 = vpop.f32.mrf.mxu0
    %1810 = vdwg.mxu0
    %1811 = vmatprep.subr.bf16.mxu0 0
    %1812 = vmatpush1.bf16.msra.mxu0 %v1074
    %1813 = vmatprep.subr.bf16.mxu0 0
    %1814 = vmatpush1.bf16.msra.mxu0 %v1071
    %1815 = vmatprep.subr.bf16.mxu0 0
    %1816 = vmatpush1.bf16.msra.mxu0 %v1068
    %1817 = vmatprep.subr.bf16.mxu0 0
    %1818 = vmatpush1.bf16.msra.mxu0 %v1065
    %1819 = vmatprep.subr.bf16.mxu0 0
    %1820 = vmatpush1.bf16.msra.mxu0 %v1062
    %1821 = vmatprep.subr.bf16.mxu0 0
    %1822 = vmatpush1.bf16.msra.mxu0 %v1059
    %1823 = vmatprep.subr.bf16.mxu0 0
    %1824 = vmatpush1.bf16.msra.mxu0 %v1056
    %1825 = vmatprep.subr.bf16.mxu0 0
    %1826 = vmatpush1.bf16.msra.mxu0 %v1053
    %1827 = vmatprep.subr.bf16.mxu0 0
    %1828 = vmatpush2.bf16.msra.mxu0 0
    %1829 = vmatprep.subr.bf16.mxu0 0
    %1830 = vmatpush2.bf16.msra.mxu0 0
    %1831 = vmatprep.subr.bf16.mxu0 0
    %1832 = vmatpush2.bf16.msra.mxu0 0
    %1833 = vmatprep.subr.bf16.mxu0 0
    %1834 = vmatpush2.bf16.msra.mxu0 0
    %1835 = vmatprep.subr.bf16.mxu0 0
    %1836 = vmatpush2.bf16.msra.mxu0 0
    %1837 = vmatprep.subr.bf16.mxu0 0
    %1838 = vmatpush2.bf16.msra.mxu0 0
    %1839 = vmatprep.subr.bf16.mxu0 0
    %1840 = vmatpush2.bf16.msra.mxu0 0
    %1841 = vmatprep.subr.bf16.mxu0 0
    %1842 = vmatpush2.bf16.msra.mxu0 0
    %1843 = vmatprep.mubr.bf16.mxu0 0
    %1844 = vmatmul.mubr.bf16.gmra.mxu0 %v1761
    %v1845 = vpop.f32.mrf.mxu0
    %v1846 = vadd.f32 0.0, %v1845
    %v1847 = vpop.f32.mrf.mxu0
    %v1848 = vpop.f32.mrf.mxu0
    %v1849 = vpop.f32.mrf.mxu0
    %1850 = vdwg.mxu0
    %v1851 = vadd.f32 %v1767, %v1805
    %v1852 = vxor.u32 %v1851, 2147483648
    %v1853 = vmul.f32 %v1852, 1.442695
    %v1854 = vpow.pop %v1853
    %v1855 = vadd.f32 %v1854, 1.0
    %v1856 = vrcp.pop %v1855
    %v1857 = vmul.f32 1.0, %v1856
    %v1858 = vadd.f32 %v1768, %v1807
    %v1859 = vxor.u32 %v1858, 2147483648
    %v1860 = vmul.f32 %v1859, 1.442695
    %v1861 = vpow.pop %v1860
    %v1862 = vadd.f32 %v1861, 1.0
    %v1863 = vrcp.pop %v1862
    %v1864 = vmul.f32 1.0, %v1863
    %v1865 = vadd.f32 %v1846, %v1198
    %v1866 = vmul.f32 %v1857, %v1865
    %v1867 = vadd.f32 %v1769, %v1866
    %v1868 = vtanh.pop %v1867
    %v1869 = vsub.f32 %v1760, %v1868
    %v1870 = vmul.f32 %v1864, %v1869
    %v1871 = vadd.f32 %v1868, %v1870
    %v1872 = vpack.c.bf16 %v1871, %v1871
    %s1873 = scalar_lea.vmem [#allocation2], 24
    %1874 = vst [vmem:[%s1873] sm:$0xf] %v1872
    %s1875 = smul.u32 7, 3
    %s1876 = smul.addr %s1875, 8
    %s1877 = scalar_lea.vmem [#allocation3], %s1876
    %v1878 = vld [vmem:[%s1877] sm:$0xff]
    %v1879 = vld [vmem:[%s1877 + $0x8] sm:$0xff]
    %v1880 = vld [vmem:[%s1877 + $0x10] sm:$0xff]
    %1881 = vmatprep.subr.bf16.mxu0 %v1073
    %1882 = vmatpush1.bf16.msra.mxu0 %v1072
    %1883 = vmatprep.subr.bf16.mxu0 %v1070
    %1884 = vmatpush1.bf16.msra.mxu0 %v1069
    %1885 = vmatprep.subr.bf16.mxu0 %v1067
    %1886 = vmatpush1.bf16.msra.mxu0 %v1066
    %1887 = vmatprep.subr.bf16.mxu0 %v1064
    %1888 = vmatpush1.bf16.msra.mxu0 %v1063
    %1889 = vmatprep.subr.bf16.mxu0 %v1061
    %1890 = vmatpush1.bf16.msra.mxu0 %v1060
    %1891 = vmatprep.subr.bf16.mxu0 %v1058
    %1892 = vmatpush1.bf16.msra.mxu0 %v1057
    %1893 = vmatprep.subr.bf16.mxu0 %v1055
    %1894 = vmatpush1.bf16.msra.mxu0 %v1054
    %1895 = vmatprep.subr.bf16.mxu0 %v1052
    %1896 = vmatpush1.bf16.msra.mxu0 %v1051
    %1897 = vmatprep.subr.bf16.mxu0 0
    %1898 = vmatpush2.bf16.msra.mxu0 0
    %1899 = vmatprep.subr.bf16.mxu0 0
    %1900 = vmatpush2.bf16.msra.mxu0 0
    %1901 = vmatprep.subr.bf16.mxu0 0
    %1902 = vmatpush2.bf16.msra.mxu0 0
    %1903 = vmatprep.subr.bf16.mxu0 0
    %1904 = vmatpush2.bf16.msra.mxu0 0
    %1905 = vmatprep.subr.bf16.mxu0 0
    %1906 = vmatpush2.bf16.msra.mxu0 0
    %1907 = vmatprep.subr.bf16.mxu0 0
    %1908 = vmatpush2.bf16.msra.mxu0 0
    %1909 = vmatprep.subr.bf16.mxu0 0
    %1910 = vmatpush2.bf16.msra.mxu0 0
    %1911 = vmatprep.subr.bf16.mxu0 0
    %1912 = vmatpush2.bf16.msra.mxu0 0
    %1913 = vmatprep.mubr.bf16.mxu0 0
    %1914 = vmatmul.mubr.bf16.gmra.mxu0 %v1872
    %v1915 = vpop.f32.mrf.mxu0
    %v1916 = vadd.f32 0.0, %v1915
    %v1917 = vpop.f32.mrf.mxu0
    %v1918 = vadd.f32 0.0, %v1917
    %v1919 = vpop.f32.mrf.mxu0
    %v1920 = vpop.f32.mrf.mxu0
    %1921 = vdwg.mxu0
    %1922 = vmatprep.subr.bf16.mxu0 0
    %1923 = vmatpush1.bf16.msra.mxu0 %v1074
    %1924 = vmatprep.subr.bf16.mxu0 0
    %1925 = vmatpush1.bf16.msra.mxu0 %v1071
    %1926 = vmatprep.subr.bf16.mxu0 0
    %1927 = vmatpush1.bf16.msra.mxu0 %v1068
    %1928 = vmatprep.subr.bf16.mxu0 0
    %1929 = vmatpush1.bf16.msra.mxu0 %v1065
    %1930 = vmatprep.subr.bf16.mxu0 0
    %1931 = vmatpush1.bf16.msra.mxu0 %v1062
    %1932 = vmatprep.subr.bf16.mxu0 0
    %1933 = vmatpush1.bf16.msra.mxu0 %v1059
    %1934 = vmatprep.subr.bf16.mxu0 0
    %1935 = vmatpush1.bf16.msra.mxu0 %v1056
    %1936 = vmatprep.subr.bf16.mxu0 0
    %1937 = vmatpush1.bf16.msra.mxu0 %v1053
    %1938 = vmatprep.subr.bf16.mxu0 0
    %1939 = vmatpush2.bf16.msra.mxu0 0
    %1940 = vmatprep.subr.bf16.mxu0 0
    %1941 = vmatpush2.bf16.msra.mxu0 0
    %1942 = vmatprep.subr.bf16.mxu0 0
    %1943 = vmatpush2.bf16.msra.mxu0 0
    %1944 = vmatprep.subr.bf16.mxu0 0
    %1945 = vmatpush2.bf16.msra.mxu0 0
    %1946 = vmatprep.subr.bf16.mxu0 0
    %1947 = vmatpush2.bf16.msra.mxu0 0
    %1948 = vmatprep.subr.bf16.mxu0 0
    %1949 = vmatpush2.bf16.msra.mxu0 0
    %1950 = vmatprep.subr.bf16.mxu0 0
    %1951 = vmatpush2.bf16.msra.mxu0 0
    %1952 = vmatprep.subr.bf16.mxu0 0
    %1953 = vmatpush2.bf16.msra.mxu0 0
    %1954 = vmatprep.mubr.bf16.mxu0 0
    %1955 = vmatmul.mubr.bf16.gmra.mxu0 %v1872
    %v1956 = vpop.f32.mrf.mxu0
    %v1957 = vadd.f32 0.0, %v1956
    %v1958 = vpop.f32.mrf.mxu0
    %v1959 = vpop.f32.mrf.mxu0
    %v1960 = vpop.f32.mrf.mxu0
    %1961 = vdwg.mxu0
    %v1962 = vadd.f32 %v1878, %v1916
    %v1963 = vxor.u32 %v1962, 2147483648
    %v1964 = vmul.f32 %v1963, 1.442695
    %v1965 = vpow.pop %v1964
    %v1966 = vadd.f32 %v1965, 1.0
    %v1967 = vrcp.pop %v1966
    %v1968 = vmul.f32 1.0, %v1967
    %v1969 = vadd.f32 %v1879, %v1918
    %v1970 = vxor.u32 %v1969, 2147483648
    %v1971 = vmul.f32 %v1970, 1.442695
    %v1972 = vpow.pop %v1971
    %v1973 = vadd.f32 %v1972, 1.0
    %v1974 = vrcp.pop %v1973
    %v1975 = vmul.f32 1.0, %v1974
    %v1976 = vadd.f32 %v1957, %v1198
    %v1977 = vmul.f32 %v1968, %v1976
    %v1978 = vadd.f32 %v1880, %v1977
    %v1979 = vtanh.pop %v1978
    %v1980 = vsub.f32 %v1871, %v1979
    %v1981 = vmul.f32 %v1975, %v1980
    %v1982 = vadd.f32 %v1979, %v1981
    %v1983 = vpack.c.bf16 %v1982, %v1982
    %s1984 = scalar_lea.vmem [#allocation2], 28
    %1985 = vst [vmem:[%s1984] sm:$0xf] %v1983
    %v1986 = vld [vmem:[#allocation2] sm:$0xf]
    %v1987 = vld [vmem:[#allocation2 + $0x4] sm:$0xf]
    %v1988 = vld [vmem:[#allocation2 + $0x8] sm:$0xf]
    %v1989 = vld [vmem:[#allocation2 + $0xc] sm:$0xf]
    %v1990 = vld [vmem:[#allocation2 + $0x10] sm:$0xf]
    %v1991 = vld [vmem:[#allocation2 + $0x14] sm:$0xf]
    %v1992 = vld [vmem:[#allocation2 + $0x18] sm:$0xf]
    %v1993 = vld [vmem:[#allocation2 + $0x1c] sm:$0xf]
    %s1994 = scalar_lea.vmem [#allocation4], 192
    %v1995 = vld [vmem:[%s1994] sm:$0xff]
    %v1996 = vld [vmem:[%s1994 + $0x8] sm:$0xf]
    %v1997 = vld [vmem:[%s1994 + $0xc] sm:$0xff]
    %v1998 = vld [vmem:[%s1994 + $0x14] sm:$0xf]
    %v1999 = vld [vmem:[%s1994 + $0x18] sm:$0xff]
    %v2000 = vld [vmem:[%s1994 + $0x20] sm:$0xf]
    %v2001 = vld [vmem:[%s1994 + $0x24] sm:$0xff]
    %v2002 = vld [vmem:[%s1994 + $0x2c] sm:$0xf]
    %v2003 = vld [vmem:[%s1994 + $0x30] sm:$0xff]
    %v2004 = vld [vmem:[%s1994 + $0x38] sm:$0xf]
    %v2005 = vld [vmem:[%s1994 + $0x3c] sm:$0xff]
    %v2006 = vld [vmem:[%s1994 + $0x44] sm:$0xf]
    %v2007 = vld [vmem:[%s1994 + $0x48] sm:$0xff]
    %v2008 = vld [vmem:[%s1994 + $0x50] sm:$0xf]
    %v2009 = vld [vmem:[%s1994 + $0x54] sm:$0xff]
    %v2010 = vld [vmem:[%s1994 + $0x5c] sm:$0xf]
    %v2011 = vld [vmem:[%s1994 + $0x60] sm:$0xff]
    %v2012 = vld [vmem:[%s1994 + $0x68] sm:$0xf]
    %v2013 = vld [vmem:[%s1994 + $0x6c] sm:$0xff]
    %v2014 = vld [vmem:[%s1994 + $0x74] sm:$0xf]
    %v2015 = vld [vmem:[%s1994 + $0x78] sm:$0xff]
    %v2016 = vld [vmem:[%s1994 + $0x80] sm:$0xf]
    %v2017 = vld [vmem:[%s1994 + $0x84] sm:$0xff]
    %v2018 = vld [vmem:[%s1994 + $0x8c] sm:$0xf]
    %v2019 = vld [vmem:[%s1994 + $0x90] sm:$0xff]
    %v2020 = vld [vmem:[%s1994 + $0x98] sm:$0xf]
    %v2021 = vld [vmem:[%s1994 + $0x9c] sm:$0xff]
    %v2022 = vld [vmem:[%s1994 + $0xa4] sm:$0xf]
    %v2023 = vld [vmem:[%s1994 + $0xa8] sm:$0xff]
    %v2024 = vld [vmem:[%s1994 + $0xb0] sm:$0xf]
    %v2025 = vld [vmem:[%s1994 + $0xb4] sm:$0xff]
    %v2026 = vld [vmem:[%s1994 + $0xbc] sm:$0xf]
    %s2027 = scalar_lea.vmem [#allocation9], 3
    %v2028 = vld [vmem:[%s2027] sm:$0x7]
    %v2030 = vlaneseq
    %v2031 = vshrl.u32 %v2030, 7
    %v2032 = vsub.s32 0, %v2031
    %v2033 = vrot.slane %v2028, %v2032
    %v2034 = vlaneseq
    %v2035 = vshrl.u32 %v2034, 7
    %v2036 = vsub.s32 1, %v2035
    %v2037 = vrot.slane %v2028, %v2036
    %v2038 = vlaneseq
    %v2039 = vshrl.u32 %v2038, 7
    %v2040 = vsub.s32 2, %v2039
    %v2041 = vrot.slane %v2028, %v2040
    %v2053 = vunpack.c.l.b16 %v1986
    %v2054 = vunpack.c.l.b16 %v1987
    %v2055 = vunpack.c.l.b16 %v1988
    %v2056 = vunpack.c.l.b16 %v1989
    %v2057 = vunpack.c.l.b16 %v1990
    %v2058 = vunpack.c.l.b16 %v1991
    %v2059 = vunpack.c.l.b16 %v1992
    %v2060 = vunpack.c.l.b16 %v1993
    %v2061 = vpack.c.b16 %v2054, %v2053
    %v2062 = vpack.c.b16 %v2056, %v2055
    %v2063 = vpack.c.b16 %v2058, %v2057
    %v2064 = vpack.c.b16 %v2060, %v2059
    %v2101 = vunpack.c.l.b16 %v1995
    %v2102 = vunpack.c.h.b16 %v1995
    %v2103 = vunpack.c.l.b16 %v1996
    %v2104 = vunpack.c.l.b16 %v1997
    %v2105 = vunpack.c.h.b16 %v1997
    %v2106 = vunpack.c.l.b16 %v1998
    %v2107 = vunpack.c.l.b16 %v1999
    %v2108 = vunpack.c.h.b16 %v1999
    %v2109 = vunpack.c.l.b16 %v2000
    %v2110 = vunpack.c.l.b16 %v2001
    %v2111 = vunpack.c.h.b16 %v2001
    %v2112 = vunpack.c.l.b16 %v2002
    %v2113 = vunpack.c.l.b16 %v2003
    %v2114 = vunpack.c.h.b16 %v2003
    %v2115 = vunpack.c.l.b16 %v2004
    %v2116 = vunpack.c.l.b16 %v2005
    %v2117 = vunpack.c.h.b16 %v2005
    %v2118 = vunpack.c.l.b16 %v2006
    %v2119 = vunpack.c.l.b16 %v2007
    %v2120 = vunpack.c.h.b16 %v2007
    %v2121 = vunpack.c.l.b16 %v2008
    %v2122 = vunpack.c.l.b16 %v2009
    %v2123 = vunpack.c.h.b16 %v2009
    %v2124 = vunpack.c.l.b16 %v2010
    %v2125 = vunpack.c.l.b16 %v2011
    %v2126 = vunpack.c.h.b16 %v2011
    %v2127 = vunpack.c.l.b16 %v2012
    %v2128 = vunpack.c.l.b16 %v2013
    %v2129 = vunpack.c.h.b16 %v2013
    %v2130 = vunpack.c.l.b16 %v2014
    %v2131 = vunpack.c.l.b16 %v2015
    %v2132 = vunpack.c.h.b16 %v2015
    %v2133 = vunpack.c.l.b16 %v2016
    %v2134 = vunpack.c.l.b16 %v2017
    %v2135 = vunpack.c.h.b16 %v2017
    %v2136 = vunpack.c.l.b16 %v2018
    %v2137 = vunpack.c.l.b16 %v2019
    %v2138 = vunpack.c.h.b16 %v2019
    %v2139 = vunpack.c.l.b16 %v2020
    %v2140 = vunpack.c.l.b16 %v2021
    %v2141 = vunpack.c.h.b16 %v2021
    %v2142 = vunpack.c.l.b16 %v2022
    %v2143 = vunpack.c.l.b16 %v2023
    %v2144 = vunpack.c.h.b16 %v2023
    %v2145 = vunpack.c.l.b16 %v2024
    %v2146 = vunpack.c.l.b16 %v2025
    %v2147 = vunpack.c.h.b16 %v2025
    %v2148 = vunpack.c.l.b16 %v2026
    %v2149 = vpack.c.b16 %v2104, %v2101
    %v2150 = vpack.c.b16 %v2105, %v2102
    %v2151 = vpack.c.b16 %v2106, %v2103
    %v2152 = vpack.c.b16 %v2110, %v2107
    %v2153 = vpack.c.b16 %v2111, %v2108
    %v2154 = vpack.c.b16 %v2112, %v2109
    %v2155 = vpack.c.b16 %v2116, %v2113
    %v2156 = vpack.c.b16 %v2117, %v2114
    %v2157 = vpack.c.b16 %v2118, %v2115
    %v2158 = vpack.c.b16 %v2122, %v2119
    %v2159 = vpack.c.b16 %v2123, %v2120
    %v2160 = vpack.c.b16 %v2124, %v2121
    %v2161 = vpack.c.b16 %v2128, %v2125
    %v2162 = vpack.c.b16 %v2129, %v2126
    %v2163 = vpack.c.b16 %v2130, %v2127
    %v2164 = vpack.c.b16 %v2134, %v2131
    %v2165 = vpack.c.b16 %v2135, %v2132
    %v2166 = vpack.c.b16 %v2136, %v2133
    %v2167 = vpack.c.b16 %v2140, %v2137
    %v2168 = vpack.c.b16 %v2141, %v2138
    %v2169 = vpack.c.b16 %v2142, %v2139
    %v2170 = vpack.c.b16 %v2146, %v2143
    %v2171 = vpack.c.b16 %v2147, %v2144
    %v2172 = vpack.c.b16 %v2148, %v2145
    %2197 = vmatprep.subr.bf16.mxu0 %v2171
    %2198 = vmatpush1.bf16.msra.mxu0 %v2170
    %2199 = vmatprep.subr.bf16.mxu0 %v2168
    %2200 = vmatpush1.bf16.msra.mxu0 %v2167
    %2201 = vmatprep.subr.bf16.mxu0 %v2165
    %2202 = vmatpush1.bf16.msra.mxu0 %v2164
    %2203 = vmatprep.subr.bf16.mxu0 %v2162
    %2204 = vmatpush1.bf16.msra.mxu0 %v2161
    %2205 = vmatprep.subr.bf16.mxu0 %v2159
    %2206 = vmatpush1.bf16.msra.mxu0 %v2158
    %2207 = vmatprep.subr.bf16.mxu0 %v2156
    %2208 = vmatpush1.bf16.msra.mxu0 %v2155
    %2209 = vmatprep.subr.bf16.mxu0 %v2153
    %2210 = vmatpush1.bf16.msra.mxu0 %v2152
    %2211 = vmatprep.subr.bf16.mxu0 %v2150
    %2212 = vmatpush1.bf16.msra.mxu0 %v2149
    %2213 = vmatprep.subr.bf16.mxu0 0
    %2214 = vmatpush2.bf16.msra.mxu0 0
    %2215 = vmatprep.subr.bf16.mxu0 0
    %2216 = vmatpush2.bf16.msra.mxu0 0
    %2217 = vmatprep.subr.bf16.mxu0 0
    %2218 = vmatpush2.bf16.msra.mxu0 0
    %2219 = vmatprep.subr.bf16.mxu0 0
    %2220 = vmatpush2.bf16.msra.mxu0 0
    %2221 = vmatprep.subr.bf16.mxu0 0
    %2222 = vmatpush2.bf16.msra.mxu0 0
    %2223 = vmatprep.subr.bf16.mxu0 0
    %2224 = vmatpush2.bf16.msra.mxu0 0
    %2225 = vmatprep.subr.bf16.mxu0 0
    %2226 = vmatpush2.bf16.msra.mxu0 0
    %2227 = vmatprep.subr.bf16.mxu0 0
    %2228 = vmatpush2.bf16.msra.mxu0 0
    %2229 = vmatprep.mubr.bf16.mxu0 0
    %2230 = vmatmul.mubr.bf16.gmra.mxu0 %v2061
    %v2231 = vpop.f32.mrf.mxu0
    %v2232 = vadd.f32 %v2033, %v2231
    %v2233 = vpop.f32.mrf.mxu0
    %v2234 = vadd.f32 %v2037, %v2233
    %v2235 = vpop.f32.mrf.mxu0
    %v2236 = vadd.f32 %v2033, %v2235
    %v2237 = vpop.f32.mrf.mxu0
    %v2238 = vadd.f32 %v2037, %v2237
    %2239 = vmatprep.mubr.bf16.mxu0 0
    %2240 = vmatmul.mubr.bf16.gmra.mxu0 %v2062
    %v2241 = vpop.f32.mrf.mxu0
    %v2242 = vadd.f32 %v2033, %v2241
    %v2243 = vpop.f32.mrf.mxu0
    %v2244 = vadd.f32 %v2037, %v2243
    %v2245 = vpop.f32.mrf.mxu0
    %v2246 = vadd.f32 %v2033, %v2245
    %v2247 = vpop.f32.mrf.mxu0
    %v2248 = vadd.f32 %v2037, %v2247
    %2249 = vmatprep.mubr.bf16.mxu0 0
    %2250 = vmatmul.mubr.bf16.gmra.mxu0 %v2063
    %v2251 = vpop.f32.mrf.mxu0
    %v2252 = vadd.f32 %v2033, %v2251
    %v2253 = vpop.f32.mrf.mxu0
    %v2254 = vadd.f32 %v2037, %v2253
    %v2255 = vpop.f32.mrf.mxu0
    %v2256 = vadd.f32 %v2033, %v2255
    %v2257 = vpop.f32.mrf.mxu0
    %v2258 = vadd.f32 %v2037, %v2257
    %2259 = vmatprep.mubr.bf16.mxu0 0
    %2260 = vmatmul.mubr.bf16.gmra.mxu0 %v2064
    %v2261 = vpop.f32.mrf.mxu0
    %v2262 = vadd.f32 %v2033, %v2261
    %v2263 = vpop.f32.mrf.mxu0
    %v2264 = vadd.f32 %v2037, %v2263
    %v2265 = vpop.f32.mrf.mxu0
    %v2266 = vadd.f32 %v2033, %v2265
    %v2267 = vpop.f32.mrf.mxu0
    %v2268 = vadd.f32 %v2037, %v2267
    %2269 = vdwg.mxu0
    %2270 = vmatprep.subr.bf16.mxu0 0
    %2271 = vmatpush1.bf16.msra.mxu0 %v2172
    %2272 = vmatprep.subr.bf16.mxu0 0
    %2273 = vmatpush1.bf16.msra.mxu0 %v2169
    %2274 = vmatprep.subr.bf16.mxu0 0
    %2275 = vmatpush1.bf16.msra.mxu0 %v2166
    %2276 = vmatprep.subr.bf16.mxu0 0
    %2277 = vmatpush1.bf16.msra.mxu0 %v2163
    %2278 = vmatprep.subr.bf16.mxu0 0
    %2279 = vmatpush1.bf16.msra.mxu0 %v2160
    %2280 = vmatprep.subr.bf16.mxu0 0
    %2281 = vmatpush1.bf16.msra.mxu0 %v2157
    %2282 = vmatprep.subr.bf16.mxu0 0
    %2283 = vmatpush1.bf16.msra.mxu0 %v2154
    %2284 = vmatprep.subr.bf16.mxu0 0
    %2285 = vmatpush1.bf16.msra.mxu0 %v2151
    %2286 = vmatprep.subr.bf16.mxu0 0
    %2287 = vmatpush2.bf16.msra.mxu0 0
    %2288 = vmatprep.subr.bf16.mxu0 0
    %2289 = vmatpush2.bf16.msra.mxu0 0
    %2290 = vmatprep.subr.bf16.mxu0 0
    %2291 = vmatpush2.bf16.msra.mxu0 0
    %2292 = vmatprep.subr.bf16.mxu0 0
    %2293 = vmatpush2.bf16.msra.mxu0 0
    %2294 = vmatprep.subr.bf16.mxu0 0
    %2295 = vmatpush2.bf16.msra.mxu0 0
    %2296 = vmatprep.subr.bf16.mxu0 0
    %2297 = vmatpush2.bf16.msra.mxu0 0
    %2298 = vmatprep.subr.bf16.mxu0 0
    %2299 = vmatpush2.bf16.msra.mxu0 0
    %2300 = vmatprep.subr.bf16.mxu0 0
    %2301 = vmatpush2.bf16.msra.mxu0 0
    %2302 = vmatprep.mubr.bf16.mxu0 0
    %2303 = vmatmul.mubr.bf16.gmra.mxu0 %v2061
    %v2304 = vpop.f32.mrf.mxu0
    %v2305 = vadd.f32 %v2041, %v2304
    %v2306 = vpop.f32.mrf.mxu0
    %v2307 = vpop.f32.mrf.mxu0
    %v2308 = vadd.f32 %v2041, %v2307
    %v2309 = vpop.f32.mrf.mxu0
    %2310 = vmatprep.mubr.bf16.mxu0 0
    %2311 = vmatmul.mubr.bf16.gmra.mxu0 %v2062
    %v2312 = vpop.f32.mrf.mxu0
    %v2313 = vadd.f32 %v2041, %v2312
    %v2314 = vpop.f32.mrf.mxu0
    %v2315 = vpop.f32.mrf.mxu0
    %v2316 = vadd.f32 %v2041, %v2315
    %v2317 = vpop.f32.mrf.mxu0
    %2318 = vmatprep.mubr.bf16.mxu0 0
    %2319 = vmatmul.mubr.bf16.gmra.mxu0 %v2063
    %v2320 = vpop.f32.mrf.mxu0
    %v2321 = vadd.f32 %v2041, %v2320
    %v2322 = vpop.f32.mrf.mxu0
    %v2323 = vpop.f32.mrf.mxu0
    %v2324 = vadd.f32 %v2041, %v2323
    %v2325 = vpop.f32.mrf.mxu0
    %2326 = vmatprep.mubr.bf16.mxu0 0
    %2327 = vmatmul.mubr.bf16.gmra.mxu0 %v2064
    %v2328 = vpop.f32.mrf.mxu0
    %v2329 = vadd.f32 %v2041, %v2328
    %v2330 = vpop.f32.mrf.mxu0
    %v2331 = vpop.f32.mrf.mxu0
    %v2332 = vadd.f32 %v2041, %v2331
    %v2333 = vpop.f32.mrf.mxu0
    %2334 = vdwg.mxu0
    %2335 = vst [vmem:[#allocation3] sm:$0xff] %v2232
    %2336 = vst [vmem:[#allocation3 + $0x8] sm:$0xff] %v2234
    %2337 = vst [vmem:[#allocation3 + $0x10] sm:$0xff] %v2305
    %2338 = vst [vmem:[#allocation3 + $0x18] sm:$0xff] %v2236
    %2339 = vst [vmem:[#allocation3 + $0x20] sm:$0xff] %v2238
    %2340 = vst [vmem:[#allocation3 + $0x28] sm:$0xff] %v2308
    %2341 = vst [vmem:[#allocation3 + $0x30] sm:$0xff] %v2242
    %2342 = vst [vmem:[#allocation3 + $0x38] sm:$0xff] %v2244
    %2343 = vst [vmem:[#allocation3 + $0x40] sm:$0xff] %v2313
    %2344 = vst [vmem:[#allocation3 + $0x48] sm:$0xff] %v2246
    %2345 = vst [vmem:[#allocation3 + $0x50] sm:$0xff] %v2248
    %2346 = vst [vmem:[#allocation3 + $0x58] sm:$0xff] %v2316
    %2347 = vst [vmem:[#allocation3 + $0x60] sm:$0xff] %v2252
    %2348 = vst [vmem:[#allocation3 + $0x68] sm:$0xff] %v2254
    %2349 = vst [vmem:[#allocation3 + $0x70] sm:$0xff] %v2321
    %2350 = vst [vmem:[#allocation3 + $0x78] sm:$0xff] %v2256
    %2351 = vst [vmem:[#allocation3 + $0x80] sm:$0xff] %v2258
    %2352 = vst [vmem:[#allocation3 + $0x88] sm:$0xff] %v2324
    %2353 = vst [vmem:[#allocation3 + $0x90] sm:$0xff] %v2262
    %2354 = vst [vmem:[#allocation3 + $0x98] sm:$0xff] %v2264
    %2355 = vst [vmem:[#allocation3 + $0xa0] sm:$0xff] %v2329
    %2356 = vst [vmem:[#allocation3 + $0xa8] sm:$0xff] %v2266
    %2357 = vst [vmem:[#allocation3 + $0xb0] sm:$0xff] %v2268
    %2358 = vst [vmem:[#allocation3 + $0xb8] sm:$0xff] %v2332
    %s2359 = scalar_lea.vmem [#allocation7], 192
    %v2360 = vld [vmem:[%s2359] sm:$0xff]
    %v2361 = vld [vmem:[%s2359 + $0x8] sm:$0xf]
    %v2362 = vld [vmem:[%s2359 + $0xc] sm:$0xff]
    %v2363 = vld [vmem:[%s2359 + $0x14] sm:$0xf]
    %v2364 = vld [vmem:[%s2359 + $0x18] sm:$0xff]
    %v2365 = vld [vmem:[%s2359 + $0x20] sm:$0xf]
    %v2366 = vld [vmem:[%s2359 + $0x24] sm:$0xff]
    %v2367 = vld [vmem:[%s2359 + $0x2c] sm:$0xf]
    %v2368 = vld [vmem:[%s2359 + $0x30] sm:$0xff]
    %v2369 = vld [vmem:[%s2359 + $0x38] sm:$0xf]
    %v2370 = vld [vmem:[%s2359 + $0x3c] sm:$0xff]
    %v2371 = vld [vmem:[%s2359 + $0x44] sm:$0xf]
    %v2372 = vld [vmem:[%s2359 + $0x48] sm:$0xff]
    %v2373 = vld [vmem:[%s2359 + $0x50] sm:$0xf]
    %v2374 = vld [vmem:[%s2359 + $0x54] sm:$0xff]
    %v2375 = vld [vmem:[%s2359 + $0x5c] sm:$0xf]
    %v2376 = vld [vmem:[%s2359 + $0x60] sm:$0xff]
    %v2377 = vld [vmem:[%s2359 + $0x68] sm:$0xf]
    %v2378 = vld [vmem:[%s2359 + $0x6c] sm:$0xff]
    %v2379 = vld [vmem:[%s2359 + $0x74] sm:$0xf]
    %v2380 = vld [vmem:[%s2359 + $0x78] sm:$0xff]
    %v2381 = vld [vmem:[%s2359 + $0x80] sm:$0xf]
    %v2382 = vld [vmem:[%s2359 + $0x84] sm:$0xff]
    %v2383 = vld [vmem:[%s2359 + $0x8c] sm:$0xf]
    %v2384 = vld [vmem:[%s2359 + $0x90] sm:$0xff]
    %v2385 = vld [vmem:[%s2359 + $0x98] sm:$0xf]
    %v2386 = vld [vmem:[%s2359 + $0x9c] sm:$0xff]
    %v2387 = vld [vmem:[%s2359 + $0xa4] sm:$0xf]
    %v2388 = vld [vmem:[%s2359 + $0xa8] sm:$0xff]
    %v2389 = vld [vmem:[%s2359 + $0xb0] sm:$0xf]
    %v2390 = vld [vmem:[%s2359 + $0xb4] sm:$0xff]
    %v2391 = vld [vmem:[%s2359 + $0xbc] sm:$0xf]
    %s2392 = scalar_lea.vmem %s6, 1
    %v2393 = vld [vmem:[%s2392] sm:$0x1]
    %v2394 = vld [vmem:[%s967] sm:$0xff]
    %v2395 = vld [vmem:[%s967 + $0x8] sm:$0xff]
    %v2396 = vld [vmem:[%s967 + $0x10] sm:$0xff]
    %v2429 = vunpack.c.l.b16 %v2360
    %v2430 = vunpack.c.h.b16 %v2360
    %v2431 = vunpack.c.l.b16 %v2361
    %v2432 = vunpack.c.l.b16 %v2362
    %v2433 = vunpack.c.h.b16 %v2362
    %v2434 = vunpack.c.l.b16 %v2363
    %v2435 = vunpack.c.l.b16 %v2364
    %v2436 = vunpack.c.h.b16 %v2364
    %v2437 = vunpack.c.l.b16 %v2365
    %v2438 = vunpack.c.l.b16 %v2366
    %v2439 = vunpack.c.h.b16 %v2366
    %v2440 = vunpack.c.l.b16 %v2367
    %v2441 = vunpack.c.l.b16 %v2368
    %v2442 = vunpack.c.h.b16 %v2368
    %v2443 = vunpack.c.l.b16 %v2369
    %v2444 = vunpack.c.l.b16 %v2370
    %v2445 = vunpack.c.h.b16 %v2370
    %v2446 = vunpack.c.l.b16 %v2371
    %v2447 = vunpack.c.l.b16 %v2372
    %v2448 = vunpack.c.h.b16 %v2372
    %v2449 = vunpack.c.l.b16 %v2373
    %v2450 = vunpack.c.l.b16 %v2374
    %v2451 = vunpack.c.h.b16 %v2374
    %v2452 = vunpack.c.l.b16 %v2375
    %v2453 = vunpack.c.l.b16 %v2376
    %v2454 = vunpack.c.h.b16 %v2376
    %v2455 = vunpack.c.l.b16 %v2377
    %v2456 = vunpack.c.l.b16 %v2378
    %v2457 = vunpack.c.h.b16 %v2378
    %v2458 = vunpack.c.l.b16 %v2379
    %v2459 = vunpack.c.l.b16 %v2380
    %v2460 = vunpack.c.h.b16 %v2380
    %v2461 = vunpack.c.l.b16 %v2381
    %v2462 = vunpack.c.l.b16 %v2382
    %v2463 = vunpack.c.h.b16 %v2382
    %v2464 = vunpack.c.l.b16 %v2383
    %v2465 = vunpack.c.l.b16 %v2384
    %v2466 = vunpack.c.h.b16 %v2384
    %v2467 = vunpack.c.l.b16 %v2385
    %v2468 = vunpack.c.l.b16 %v2386
    %v2469 = vunpack.c.h.b16 %v2386
    %v2470 = vunpack.c.l.b16 %v2387
    %v2471 = vunpack.c.l.b16 %v2388
    %v2472 = vunpack.c.h.b16 %v2388
    %v2473 = vunpack.c.l.b16 %v2389
    %v2474 = vunpack.c.l.b16 %v2390
    %v2475 = vunpack.c.h.b16 %v2390
    %v2476 = vunpack.c.l.b16 %v2391
    %v2477 = vpack.c.b16 %v2432, %v2429
    %v2478 = vpack.c.b16 %v2433, %v2430
    %v2479 = vpack.c.b16 %v2434, %v2431
    %v2480 = vpack.c.b16 %v2438, %v2435
    %v2481 = vpack.c.b16 %v2439, %v2436
    %v2482 = vpack.c.b16 %v2440, %v2437
    %v2483 = vpack.c.b16 %v2444, %v2441
    %v2484 = vpack.c.b16 %v2445, %v2442
    %v2485 = vpack.c.b16 %v2446, %v2443
    %v2486 = vpack.c.b16 %v2450, %v2447
    %v2487 = vpack.c.b16 %v2451, %v2448
    %v2488 = vpack.c.b16 %v2452, %v2449
    %v2489 = vpack.c.b16 %v2456, %v2453
    %v2490 = vpack.c.b16 %v2457, %v2454
    %v2491 = vpack.c.b16 %v2458, %v2455
    %v2492 = vpack.c.b16 %v2462, %v2459
    %v2493 = vpack.c.b16 %v2463, %v2460
    %v2494 = vpack.c.b16 %v2464, %v2461
    %v2495 = vpack.c.b16 %v2468, %v2465
    %v2496 = vpack.c.b16 %v2469, %v2466
    %v2497 = vpack.c.b16 %v2470, %v2467
    %v2498 = vpack.c.b16 %v2474, %v2471
    %v2499 = vpack.c.b16 %v2475, %v2472
    %v2500 = vpack.c.b16 %v2476, %v2473
    %2525 = vmatprep.subr.bf16.mxu0 %v2499
    %2526 = vmatpush1.bf16.msra.mxu0 %v2498
    %2527 = vmatprep.subr.bf16.mxu0 %v2496
    %2528 = vmatpush1.bf16.msra.mxu0 %v2495
    %2529 = vmatprep.subr.bf16.mxu0 %v2493
    %2530 = vmatpush1.bf16.msra.mxu0 %v2492
    %2531 = vmatprep.subr.bf16.mxu0 %v2490
    %2532 = vmatpush1.bf16.msra.mxu0 %v2489
    %2533 = vmatprep.subr.bf16.mxu0 %v2487
    %2534 = vmatpush1.bf16.msra.mxu0 %v2486
    %2535 = vmatprep.subr.bf16.mxu0 %v2484
    %2536 = vmatpush1.bf16.msra.mxu0 %v2483
    %2537 = vmatprep.subr.bf16.mxu0 %v2481
    %2538 = vmatpush1.bf16.msra.mxu0 %v2480
    %2539 = vmatprep.subr.bf16.mxu0 %v2478
    %2540 = vmatpush1.bf16.msra.mxu0 %v2477
    %2541 = vmatprep.subr.bf16.mxu0 0
    %2542 = vmatpush2.bf16.msra.mxu0 0
    %2543 = vmatprep.subr.bf16.mxu0 0
    %2544 = vmatpush2.bf16.msra.mxu0 0
    %2545 = vmatprep.subr.bf16.mxu0 0
    %2546 = vmatpush2.bf16.msra.mxu0 0
    %2547 = vmatprep.subr.bf16.mxu0 0
    %2548 = vmatpush2.bf16.msra.mxu0 0
    %2549 = vmatprep.subr.bf16.mxu0 0
    %2550 = vmatpush2.bf16.msra.mxu0 0
    %2551 = vmatprep.subr.bf16.mxu0 0
    %2552 = vmatpush2.bf16.msra.mxu0 0
    %2553 = vmatprep.subr.bf16.mxu0 0
    %2554 = vmatpush2.bf16.msra.mxu0 0
    %2555 = vmatprep.subr.bf16.mxu0 0
    %2556 = vmatpush2.bf16.msra.mxu0 0
    %2557 = vmatprep.mubr.bf16.mxu0 0
    %2558 = vmatmul.mubr.bf16.gmra.mxu0 0
    %v2559 = vpop.f32.mrf.mxu0
    %v2560 = vadd.f32 0.0, %v2559
    %v2561 = vpop.f32.mrf.mxu0
    %v2562 = vadd.f32 0.0, %v2561
    %v2563 = vpop.f32.mrf.mxu0
    %v2564 = vpop.f32.mrf.mxu0
    %2565 = vdwg.mxu0
    %2566 = vmatprep.subr.bf16.mxu0 0
    %2567 = vmatpush1.bf16.msra.mxu0 %v2500
    %2568 = vmatprep.subr.bf16.mxu0 0
    %2569 = vmatpush1.bf16.msra.mxu0 %v2497
    %2570 = vmatprep.subr.bf16.mxu0 0
    %2571 = vmatpush1.bf16.msra.mxu0 %v2494
    %2572 = vmatprep.subr.bf16.mxu0 0
    %2573 = vmatpush1.bf16.msra.mxu0 %v2491
    %2574 = vmatprep.subr.bf16.mxu0 0
    %2575 = vmatpush1.bf16.msra.mxu0 %v2488
    %2576 = vmatprep.subr.bf16.mxu0 0
    %2577 = vmatpush1.bf16.msra.mxu0 %v2485
    %2578 = vmatprep.subr.bf16.mxu0 0
    %2579 = vmatpush1.bf16.msra.mxu0 %v2482
    %2580 = vmatprep.subr.bf16.mxu0 0
    %2581 = vmatpush1.bf16.msra.mxu0 %v2479
    %2582 = vmatprep.subr.bf16.mxu0 0
    %2583 = vmatpush2.bf16.msra.mxu0 0
    %2584 = vmatprep.subr.bf16.mxu0 0
    %2585 = vmatpush2.bf16.msra.mxu0 0
    %2586 = vmatprep.subr.bf16.mxu0 0
    %2587 = vmatpush2.bf16.msra.mxu0 0
    %2588 = vmatprep.subr.bf16.mxu0 0
    %2589 = vmatpush2.bf16.msra.mxu0 0
    %2590 = vmatprep.subr.bf16.mxu0 0
    %2591 = vmatpush2.bf16.msra.mxu0 0
    %2592 = vmatprep.subr.bf16.mxu0 0
    %2593 = vmatpush2.bf16.msra.mxu0 0
    %2594 = vmatprep.subr.bf16.mxu0 0
    %2595 = vmatpush2.bf16.msra.mxu0 0
    %2596 = vmatprep.subr.bf16.mxu0 0
    %2597 = vmatpush2.bf16.msra.mxu0 0
    %2598 = vmatprep.mubr.bf16.mxu0 0
    %2599 = vmatmul.mubr.bf16.gmra.mxu0 0
    %v2600 = vpop.f32.mrf.mxu0
    %v2601 = vadd.f32 0.0, %v2600
    %v2602 = vpop.f32.mrf.mxu0
    %v2603 = vpop.f32.mrf.mxu0
    %v2604 = vpop.f32.mrf.mxu0
    %2605 = vdwg.mxu0
    %v2606 = vadd.f32 %v2394, %v2560
    %v2607 = vxor.u32 %v2606, 2147483648
    %v2608 = vmul.f32 %v2607, 1.442695
    %v2609 = vpow.pop %v2608
    %v2610 = vadd.f32 %v2609, 1.0
    %v2611 = vrcp.pop %v2610
    %v2612 = vmul.f32 1.0, %v2611
    %v2613 = vadd.f32 %v2395, %v2562
    %v2614 = vxor.u32 %v2613, 2147483648
    %v2615 = vmul.f32 %v2614, 1.442695
    %v2616 = vpow.pop %v2615
    %v2617 = vadd.f32 %v2616, 1.0
    %v2618 = vrcp.pop %v2617
    %v2619 = vmul.f32 1.0, %v2618
    %v2621 = vlaneseq
    %v2622 = vshrl.u32 %v2621, 7
    %v2623 = vsub.s32 0, %v2622
    %v2624 = vrot.slane %v2393, %v2623
    %v2626 = vadd.f32 %v2601, %v2624
    %v2627 = vmul.f32 %v2612, %v2626
    %v2628 = vadd.f32 %v2396, %v2627
    %v2629 = vtanh.pop %v2628
    %v2630 = vsub.f32 0.0, %v2629
    %v2631 = vmul.f32 %v2619, %v2630
    %v2632 = vadd.f32 %v2629, %v2631
    %vm2633 = vcmp.eq.s32.totalorder %v87, 0
    %v2634 = vsel %vm2633, 1, 0
    %2635 = vset.pattern.permute.xlu0 0
    %2636 = vperm.xlu0 %2635, %v2634
    %v2637 = vpop.permute.xlu0 %2636
    %vm2638 = vcmp.eq.s32.totalorder %v2637, 1
    %v2639 = vsel %vm2638, %v2632, 0.0
    %v2640 = vld [vmem:[%s1211] sm:$0xff]
    %v2641 = vld [vmem:[%s1211 + $0x8] sm:$0xff]
    %v2642 = vld [vmem:[%s1211 + $0x10] sm:$0xff]
    %v2643 = vpack.c.bf16 %v2632, %v2632
    %2644 = vmatprep.subr.bf16.mxu0 %v2499
    %2645 = vmatpush1.bf16.msra.mxu0 %v2498
    %2646 = vmatprep.subr.bf16.mxu0 %v2496
    %2647 = vmatpush1.bf16.msra.mxu0 %v2495
    %2648 = vmatprep.subr.bf16.mxu0 %v2493
    %2649 = vmatpush1.bf16.msra.mxu0 %v2492
    %2650 = vmatprep.subr.bf16.mxu0 %v2490
    %2651 = vmatpush1.bf16.msra.mxu0 %v2489
    %2652 = vmatprep.subr.bf16.mxu0 %v2487
    %2653 = vmatpush1.bf16.msra.mxu0 %v2486
    %2654 = vmatprep.subr.bf16.mxu0 %v2484
    %2655 = vmatpush1.bf16.msra.mxu0 %v2483
    %2656 = vmatprep.subr.bf16.mxu0 %v2481
    %2657 = vmatpush1.bf16.msra.mxu0 %v2480
    %2658 = vmatprep.subr.bf16.mxu0 %v2478
    %2659 = vmatpush1.bf16.msra.mxu0 %v2477
    %2660 = vmatprep.subr.bf16.mxu0 0
    %2661 = vmatpush2.bf16.msra.mxu0 0
    %2662 = vmatprep.subr.bf16.mxu0 0
    %2663 = vmatpush2.bf16.msra.mxu0 0
    %2664 = vmatprep.subr.bf16.mxu0 0
    %2665 = vmatpush2.bf16.msra.mxu0 0
    %2666 = vmatprep.subr.bf16.mxu0 0
    %2667 = vmatpush2.bf16.msra.mxu0 0
    %2668 = vmatprep.subr.bf16.mxu0 0
    %2669 = vmatpush2.bf16.msra.mxu0 0
    %2670 = vmatprep.subr.bf16.mxu0 0
    %2671 = vmatpush2.bf16.msra.mxu0 0
    %2672 = vmatprep.subr.bf16.mxu0 0
    %2673 = vmatpush2.bf16.msra.mxu0 0
    %2674 = vmatprep.subr.bf16.mxu0 0
    %2675 = vmatpush2.bf16.msra.mxu0 0
    %2676 = vmatprep.mubr.bf16.mxu0 0
    %2677 = vmatmul.mubr.bf16.gmra.mxu0 %v2643
    %v2678 = vpop.f32.mrf.mxu0
    %v2679 = vadd.f32 0.0, %v2678
    %v2680 = vpop.f32.mrf.mxu0
    %v2681 = vadd.f32 0.0, %v2680
    %v2682 = vpop.f32.mrf.mxu0
    %v2683 = vpop.f32.mrf.mxu0
    %2684 = vdwg.mxu0
    %2685 = vmatprep.subr.bf16.mxu0 0
    %2686 = vmatpush1.bf16.msra.mxu0 %v2500
    %2687 = vmatprep.subr.bf16.mxu0 0
    %2688 = vmatpush1.bf16.msra.mxu0 %v2497
    %2689 = vmatprep.subr.bf16.mxu0 0
    %2690 = vmatpush1.bf16.msra.mxu0 %v2494
    %2691 = vmatprep.subr.bf16.mxu0 0
    %2692 = vmatpush1.bf16.msra.mxu0 %v2491
    %2693 = vmatprep.subr.bf16.mxu0 0
    %2694 = vmatpush1.bf16.msra.mxu0 %v2488
    %2695 = vmatprep.subr.bf16.mxu0 0
    %2696 = vmatpush1.bf16.msra.mxu0 %v2485
    %2697 = vmatprep.subr.bf16.mxu0 0
    %2698 = vmatpush1.bf16.msra.mxu0 %v2482
    %2699 = vmatprep.subr.bf16.mxu0 0
    %2700 = vmatpush1.bf16.msra.mxu0 %v2479
    %2701 = vmatprep.subr.bf16.mxu0 0
    %2702 = vmatpush2.bf16.msra.mxu0 0
    %2703 = vmatprep.subr.bf16.mxu0 0
    %2704 = vmatpush2.bf16.msra.mxu0 0
    %2705 = vmatprep.subr.bf16.mxu0 0
    %2706 = vmatpush2.bf16.msra.mxu0 0
    %2707 = vmatprep.subr.bf16.mxu0 0
    %2708 = vmatpush2.bf16.msra.mxu0 0
    %2709 = vmatprep.subr.bf16.mxu0 0
    %2710 = vmatpush2.bf16.msra.mxu0 0
    %2711 = vmatprep.subr.bf16.mxu0 0
    %2712 = vmatpush2.bf16.msra.mxu0 0
    %2713 = vmatprep.subr.bf16.mxu0 0
    %2714 = vmatpush2.bf16.msra.mxu0 0
    %2715 = vmatprep.subr.bf16.mxu0 0
    %2716 = vmatpush2.bf16.msra.mxu0 0
    %2717 = vmatprep.mubr.bf16.mxu0 0
    %2718 = vmatmul.mubr.bf16.gmra.mxu0 %v2643
    %v2719 = vpop.f32.mrf.mxu0
    %v2720 = vadd.f32 0.0, %v2719
    %v2721 = vpop.f32.mrf.mxu0
    %v2722 = vpop.f32.mrf.mxu0
    %v2723 = vpop.f32.mrf.mxu0
    %2724 = vdwg.mxu0
    %v2725 = vadd.f32 %v2640, %v2679
    %v2726 = vxor.u32 %v2725, 2147483648
    %v2727 = vmul.f32 %v2726, 1.442695
    %v2728 = vpow.pop %v2727
    %v2729 = vadd.f32 %v2728, 1.0
    %v2730 = vrcp.pop %v2729
    %v2731 = vmul.f32 1.0, %v2730
    %v2732 = vadd.f32 %v2641, %v2681
    %v2733 = vxor.u32 %v2732, 2147483648
    %v2734 = vmul.f32 %v2733, 1.442695
    %v2735 = vpow.pop %v2734
    %v2736 = vadd.f32 %v2735, 1.0
    %v2737 = vrcp.pop %v2736
    %v2738 = vmul.f32 1.0, %v2737
    %v2739 = vadd.f32 %v2720, %v2624
    %v2740 = vmul.f32 %v2731, %v2739
    %v2741 = vadd.f32 %v2642, %v2740
    %v2742 = vtanh.pop %v2741
    %v2743 = vsub.f32 %v2632, %v2742
    %v2744 = vmul.f32 %v2738, %v2743
    %v2745 = vadd.f32 %v2742, %v2744
    %vm2746 = vcmp.eq.s32.totalorder %v87, 1
    %v2747 = vsel %vm2746, 1, 0
    %2748 = vset.pattern.permute.xlu0 0
    %2749 = vperm.xlu0 %2748, %v2747
    %v2750 = vpop.permute.xlu0 %2749
    %vm2751 = vcmp.eq.s32.totalorder %v2750, 1
    %v2752 = vsel %vm2751, %v2745, %v2639
    %v2753 = vld [vmem:[%s1322] sm:$0xff]
    %v2754 = vld [vmem:[%s1322 + $0x8] sm:$0xff]
    %v2755 = vld [vmem:[%s1322 + $0x10] sm:$0xff]
    %v2756 = vpack.c.bf16 %v2745, %v2745
    %2757 = vmatprep.subr.bf16.mxu0 %v2499
    %2758 = vmatpush1.bf16.msra.mxu0 %v2498
    %2759 = vmatprep.subr.bf16.mxu0 %v2496
    %2760 = vmatpush1.bf16.msra.mxu0 %v2495
    %2761 = vmatprep.subr.bf16.mxu0 %v2493
    %2762 = vmatpush1.bf16.msra.mxu0 %v2492
    %2763 = vmatprep.subr.bf16.mxu0 %v2490
    %2764 = vmatpush1.bf16.msra.mxu0 %v2489
    %2765 = vmatprep.subr.bf16.mxu0 %v2487
    %2766 = vmatpush1.bf16.msra.mxu0 %v2486
    %2767 = vmatprep.subr.bf16.mxu0 %v2484
    %2768 = vmatpush1.bf16.msra.mxu0 %v2483
    %2769 = vmatprep.subr.bf16.mxu0 %v2481
    %2770 = vmatpush1.bf16.msra.mxu0 %v2480
    %2771 = vmatprep.subr.bf16.mxu0 %v2478
    %2772 = vmatpush1.bf16.msra.mxu0 %v2477
    %2773 = vmatprep.subr.bf16.mxu0 0
    %2774 = vmatpush2.bf16.msra.mxu0 0
    %2775 = vmatprep.subr.bf16.mxu0 0
    %2776 = vmatpush2.bf16.msra.mxu0 0
    %2777 = vmatprep.subr.bf16.mxu0 0
    %2778 = vmatpush2.bf16.msra.mxu0 0
    %2779 = vmatprep.subr.bf16.mxu0 0
    %2780 = vmatpush2.bf16.msra.mxu0 0
    %2781 = vmatprep.subr.bf16.mxu0 0
    %2782 = vmatpush2.bf16.msra.mxu0 0
    %2783 = vmatprep.subr.bf16.mxu0 0
    %2784 = vmatpush2.bf16.msra.mxu0 0
    %2785 = vmatprep.subr.bf16.mxu0 0
    %2786 = vmatpush2.bf16.msra.mxu0 0
    %2787 = vmatprep.subr.bf16.mxu0 0
    %2788 = vmatpush2.bf16.msra.mxu0 0
    %2789 = vmatprep.mubr.bf16.mxu0 0
    %2790 = vmatmul.mubr.bf16.gmra.mxu0 %v2756
    %v2791 = vpop.f32.mrf.mxu0
    %v2792 = vadd.f32 0.0, %v2791
    %v2793 = vpop.f32.mrf.mxu0
    %v2794 = vadd.f32 0.0, %v2793
    %v2795 = vpop.f32.mrf.mxu0
    %v2796 = vpop.f32.mrf.mxu0
    %2797 = vdwg.mxu0
    %2798 = vmatprep.subr.bf16.mxu0 0
    %2799 = vmatpush1.bf16.msra.mxu0 %v2500
    %2800 = vmatprep.subr.bf16.mxu0 0
    %2801 = vmatpush1.bf16.msra.mxu0 %v2497
    %2802 = vmatprep.subr.bf16.mxu0 0
    %2803 = vmatpush1.bf16.msra.mxu0 %v2494
    %2804 = vmatprep.subr.bf16.mxu0 0
    %2805 = vmatpush1.bf16.msra.mxu0 %v2491
    %2806 = vmatprep.subr.bf16.mxu0 0
    %2807 = vmatpush1.bf16.msra.mxu0 %v2488
    %2808 = vmatprep.subr.bf16.mxu0 0
    %2809 = vmatpush1.bf16.msra.mxu0 %v2485
    %2810 = vmatprep.subr.bf16.mxu0 0
    %2811 = vmatpush1.bf16.msra.mxu0 %v2482
    %2812 = vmatprep.subr.bf16.mxu0 0
    %2813 = vmatpush1.bf16.msra.mxu0 %v2479
    %2814 = vmatprep.subr.bf16.mxu0 0
    %2815 = vmatpush2.bf16.msra.mxu0 0
    %2816 = vmatprep.subr.bf16.mxu0 0
    %2817 = vmatpush2.bf16.msra.mxu0 0
    %2818 = vmatprep.subr.bf16.mxu0 0
    %2819 = vmatpush2.bf16.msra.mxu0 0
    %2820 = vmatprep.subr.bf16.mxu0 0
    %2821 = vmatpush2.bf16.msra.mxu0 0
    %2822 = vmatprep.subr.bf16.mxu0 0
    %2823 = vmatpush2.bf16.msra.mxu0 0
    %2824 = vmatprep.subr.bf16.mxu0 0
    %2825 = vmatpush2.bf16.msra.mxu0 0
    %2826 = vmatprep.subr.bf16.mxu0 0
    %2827 = vmatpush2.bf16.msra.mxu0 0
    %2828 = vmatprep.subr.bf16.mxu0 0
    %2829 = vmatpush2.bf16.msra.mxu0 0
    %2830 = vmatprep.mubr.bf16.mxu0 0
    %2831 = vmatmul.mubr.bf16.gmra.mxu0 %v2756
    %v2832 = vpop.f32.mrf.mxu0
    %v2833 = vadd.f32 0.0, %v2832
    %v2834 = vpop.f32.mrf.mxu0
    %v2835 = vpop.f32.mrf.mxu0
    %v2836 = vpop.f32.mrf.mxu0
    %2837 = vdwg.mxu0
    %v2838 = vadd.f32 %v2753, %v2792
    %v2839 = vxor.u32 %v2838, 2147483648
    %v2840 = vmul.f32 %v2839, 1.442695
    %v2841 = vpow.pop %v2840
    %v2842 = vadd.f32 %v2841, 1.0
    %v2843 = vrcp.pop %v2842
    %v2844 = vmul.f32 1.0, %v2843
    %v2845 = vadd.f32 %v2754, %v2794
    %v2846 = vxor.u32 %v2845, 2147483648
    %v2847 = vmul.f32 %v2846, 1.442695
    %v2848 = vpow.pop %v2847
    %v2849 = vadd.f32 %v2848, 1.0
    %v2850 = vrcp.pop %v2849
    %v2851 = vmul.f32 1.0, %v2850
    %v2852 = vadd.f32 %v2833, %v2624
    %v2853 = vmul.f32 %v2844, %v2852
    %v2854 = vadd.f32 %v2755, %v2853
    %v2855 = vtanh.pop %v2854
    %v2856 = vsub.f32 %v2745, %v2855
    %v2857 = vmul.f32 %v2851, %v2856
    %v2858 = vadd.f32 %v2855, %v2857
    %vm2859 = vcmp.eq.s32.totalorder %v87, 2
    %v2860 = vsel %vm2859, 1, 0
    %2861 = vset.pattern.permute.xlu0 0
    %2862 = vperm.xlu0 %2861, %v2860
    %v2863 = vpop.permute.xlu0 %2862
    %vm2864 = vcmp.eq.s32.totalorder %v2863, 1
    %v2865 = vsel %vm2864, %v2858, %v2752
    %v2866 = vld [vmem:[%s1433] sm:$0xff]
    %v2867 = vld [vmem:[%s1433 + $0x8] sm:$0xff]
    %v2868 = vld [vmem:[%s1433 + $0x10] sm:$0xff]
    %v2869 = vpack.c.bf16 %v2858, %v2858
    %2870 = vmatprep.subr.bf16.mxu0 %v2499
    %2871 = vmatpush1.bf16.msra.mxu0 %v2498
    %2872 = vmatprep.subr.bf16.mxu0 %v2496
    %2873 = vmatpush1.bf16.msra.mxu0 %v2495
    %2874 = vmatprep.subr.bf16.mxu0 %v2493
    %2875 = vmatpush1.bf16.msra.mxu0 %v2492
    %2876 = vmatprep.subr.bf16.mxu0 %v2490
    %2877 = vmatpush1.bf16.msra.mxu0 %v2489
    %2878 = vmatprep.subr.bf16.mxu0 %v2487
    %2879 = vmatpush1.bf16.msra.mxu0 %v2486
    %2880 = vmatprep.subr.bf16.mxu0 %v2484
    %2881 = vmatpush1.bf16.msra.mxu0 %v2483
    %2882 = vmatprep.subr.bf16.mxu0 %v2481
    %2883 = vmatpush1.bf16.msra.mxu0 %v2480
    %2884 = vmatprep.subr.bf16.mxu0 %v2478
    %2885 = vmatpush1.bf16.msra.mxu0 %v2477
    %2886 = vmatprep.subr.bf16.mxu0 0
    %2887 = vmatpush2.bf16.msra.mxu0 0
    %2888 = vmatprep.subr.bf16.mxu0 0
    %2889 = vmatpush2.bf16.msra.mxu0 0
    %2890 = vmatprep.subr.bf16.mxu0 0
    %2891 = vmatpush2.bf16.msra.mxu0 0
    %2892 = vmatprep.subr.bf16.mxu0 0
    %2893 = vmatpush2.bf16.msra.mxu0 0
    %2894 = vmatprep.subr.bf16.mxu0 0
    %2895 = vmatpush2.bf16.msra.mxu0 0
    %2896 = vmatprep.subr.bf16.mxu0 0
    %2897 = vmatpush2.bf16.msra.mxu0 0
    %2898 = vmatprep.subr.bf16.mxu0 0
    %2899 = vmatpush2.bf16.msra.mxu0 0
    %2900 = vmatprep.subr.bf16.mxu0 0
    %2901 = vmatpush2.bf16.msra.mxu0 0
    %2902 = vmatprep.mubr.bf16.mxu0 0
    %2903 = vmatmul.mubr.bf16.gmra.mxu0 %v2869
    %v2904 = vpop.f32.mrf.mxu0
    %v2905 = vadd.f32 0.0, %v2904
    %v2906 = vpop.f32.mrf.mxu0
    %v2907 = vadd.f32 0.0, %v2906
    %v2908 = vpop.f32.mrf.mxu0
    %v2909 = vpop.f32.mrf.mxu0
    %2910 = vdwg.mxu0
    %2911 = vmatprep.subr.bf16.mxu0 0
    %2912 = vmatpush1.bf16.msra.mxu0 %v2500
    %2913 = vmatprep.subr.bf16.mxu0 0
    %2914 = vmatpush1.bf16.msra.mxu0 %v2497
    %2915 = vmatprep.subr.bf16.mxu0 0
    %2916 = vmatpush1.bf16.msra.mxu0 %v2494
    %2917 = vmatprep.subr.bf16.mxu0 0
    %2918 = vmatpush1.bf16.msra.mxu0 %v2491
    %2919 = vmatprep.subr.bf16.mxu0 0
    %2920 = vmatpush1.bf16.msra.mxu0 %v2488
    %2921 = vmatprep.subr.bf16.mxu0 0
    %2922 = vmatpush1.bf16.msra.mxu0 %v2485
    %2923 = vmatprep.subr.bf16.mxu0 0
    %2924 = vmatpush1.bf16.msra.mxu0 %v2482
    %2925 = vmatprep.subr.bf16.mxu0 0
    %2926 = vmatpush1.bf16.msra.mxu0 %v2479
    %2927 = vmatprep.subr.bf16.mxu0 0
    %2928 = vmatpush2.bf16.msra.mxu0 0
    %2929 = vmatprep.subr.bf16.mxu0 0
    %2930 = vmatpush2.bf16.msra.mxu0 0
    %2931 = vmatprep.subr.bf16.mxu0 0
    %2932 = vmatpush2.bf16.msra.mxu0 0
    %2933 = vmatprep.subr.bf16.mxu0 0
    %2934 = vmatpush2.bf16.msra.mxu0 0
    %2935 = vmatprep.subr.bf16.mxu0 0
    %2936 = vmatpush2.bf16.msra.mxu0 0
    %2937 = vmatprep.subr.bf16.mxu0 0
    %2938 = vmatpush2.bf16.msra.mxu0 0
    %2939 = vmatprep.subr.bf16.mxu0 0
    %2940 = vmatpush2.bf16.msra.mxu0 0
    %2941 = vmatprep.subr.bf16.mxu0 0
    %2942 = vmatpush2.bf16.msra.mxu0 0
    %2943 = vmatprep.mubr.bf16.mxu0 0
    %2944 = vmatmul.mubr.bf16.gmra.mxu0 %v2869
    %v2945 = vpop.f32.mrf.mxu0
    %v2946 = vadd.f32 0.0, %v2945
    %v2947 = vpop.f32.mrf.mxu0
    %v2948 = vpop.f32.mrf.mxu0
    %v2949 = vpop.f32.mrf.mxu0
    %2950 = vdwg.mxu0
    %v2951 = vadd.f32 %v2866, %v2905
    %v2952 = vxor.u32 %v2951, 2147483648
    %v2953 = vmul.f32 %v2952, 1.442695
    %v2954 = vpow.pop %v2953
    %v2955 = vadd.f32 %v2954, 1.0
    %v2956 = vrcp.pop %v2955
    %v2957 = vmul.f32 1.0, %v2956
    %v2958 = vadd.f32 %v2867, %v2907
    %v2959 = vxor.u32 %v2958, 2147483648
    %v2960 = vmul.f32 %v2959, 1.442695
    %v2961 = vpow.pop %v2960
    %v2962 = vadd.f32 %v2961, 1.0
    %v2963 = vrcp.pop %v2962
    %v2964 = vmul.f32 1.0, %v2963
    %v2965 = vadd.f32 %v2946, %v2624
    %v2966 = vmul.f32 %v2957, %v2965
    %v2967 = vadd.f32 %v2868, %v2966
    %v2968 = vtanh.pop %v2967
    %v2969 = vsub.f32 %v2858, %v2968
    %v2970 = vmul.f32 %v2964, %v2969
    %v2971 = vadd.f32 %v2968, %v2970
    %vm2972 = vcmp.eq.s32.totalorder %v87, 3
    %v2973 = vsel %vm2972, 1, 0
    %2974 = vset.pattern.permute.xlu0 0
    %2975 = vperm.xlu0 %2974, %v2973
    %v2976 = vpop.permute.xlu0 %2975
    %vm2977 = vcmp.eq.s32.totalorder %v2976, 1
    %v2978 = vsel %vm2977, %v2971, %v2865
    %v2979 = vld [vmem:[%s1544] sm:$0xff]
    %v2980 = vld [vmem:[%s1544 + $0x8] sm:$0xff]
    %v2981 = vld [vmem:[%s1544 + $0x10] sm:$0xff]
    %v2982 = vpack.c.bf16 %v2971, %v2971
    %2983 = vmatprep.subr.bf16.mxu0 %v2499
    %2984 = vmatpush1.bf16.msra.mxu0 %v2498
    %2985 = vmatprep.subr.bf16.mxu0 %v2496
    %2986 = vmatpush1.bf16.msra.mxu0 %v2495
    %2987 = vmatprep.subr.bf16.mxu0 %v2493
    %2988 = vmatpush1.bf16.msra.mxu0 %v2492
    %2989 = vmatprep.subr.bf16.mxu0 %v2490
    %2990 = vmatpush1.bf16.msra.mxu0 %v2489
    %2991 = vmatprep.subr.bf16.mxu0 %v2487
    %2992 = vmatpush1.bf16.msra.mxu0 %v2486
    %2993 = vmatprep.subr.bf16.mxu0 %v2484
    %2994 = vmatpush1.bf16.msra.mxu0 %v2483
    %2995 = vmatprep.subr.bf16.mxu0 %v2481
    %2996 = vmatpush1.bf16.msra.mxu0 %v2480
    %2997 = vmatprep.subr.bf16.mxu0 %v2478
    %2998 = vmatpush1.bf16.msra.mxu0 %v2477
    %2999 = vmatprep.subr.bf16.mxu0 0
    %3000 = vmatpush2.bf16.msra.mxu0 0
    %3001 = vmatprep.subr.bf16.mxu0 0
    %3002 = vmatpush2.bf16.msra.mxu0 0
    %3003 = vmatprep.subr.bf16.mxu0 0
    %3004 = vmatpush2.bf16.msra.mxu0 0
    %3005 = vmatprep.subr.bf16.mxu0 0
    %3006 = vmatpush2.bf16.msra.mxu0 0
    %3007 = vmatprep.subr.bf16.mxu0 0
    %3008 = vmatpush2.bf16.msra.mxu0 0
    %3009 = vmatprep.subr.bf16.mxu0 0
    %3010 = vmatpush2.bf16.msra.mxu0 0
    %3011 = vmatprep.subr.bf16.mxu0 0
    %3012 = vmatpush2.bf16.msra.mxu0 0
    %3013 = vmatprep.subr.bf16.mxu0 0
    %3014 = vmatpush2.bf16.msra.mxu0 0
    %3015 = vmatprep.mubr.bf16.mxu0 0
    %3016 = vmatmul.mubr.bf16.gmra.mxu0 %v2982
    %v3017 = vpop.f32.mrf.mxu0
    %v3018 = vadd.f32 0.0, %v3017
    %v3019 = vpop.f32.mrf.mxu0
    %v3020 = vadd.f32 0.0, %v3019
    %v3021 = vpop.f32.mrf.mxu0
    %v3022 = vpop.f32.mrf.mxu0
    %3023 = vdwg.mxu0
    %3024 = vmatprep.subr.bf16.mxu0 0
    %3025 = vmatpush1.bf16.msra.mxu0 %v2500
    %3026 = vmatprep.subr.bf16.mxu0 0
    %3027 = vmatpush1.bf16.msra.mxu0 %v2497
    %3028 = vmatprep.subr.bf16.mxu0 0
    %3029 = vmatpush1.bf16.msra.mxu0 %v2494
    %3030 = vmatprep.subr.bf16.mxu0 0
    %3031 = vmatpush1.bf16.msra.mxu0 %v2491
    %3032 = vmatprep.subr.bf16.mxu0 0
    %3033 = vmatpush1.bf16.msra.mxu0 %v2488
    %3034 = vmatprep.subr.bf16.mxu0 0
    %3035 = vmatpush1.bf16.msra.mxu0 %v2485
    %3036 = vmatprep.subr.bf16.mxu0 0
    %3037 = vmatpush1.bf16.msra.mxu0 %v2482
    %3038 = vmatprep.subr.bf16.mxu0 0
    %3039 = vmatpush1.bf16.msra.mxu0 %v2479
    %3040 = vmatprep.subr.bf16.mxu0 0
    %3041 = vmatpush2.bf16.msra.mxu0 0
    %3042 = vmatprep.subr.bf16.mxu0 0
    %3043 = vmatpush2.bf16.msra.mxu0 0
    %3044 = vmatprep.subr.bf16.mxu0 0
    %3045 = vmatpush2.bf16.msra.mxu0 0
    %3046 = vmatprep.subr.bf16.mxu0 0
    %3047 = vmatpush2.bf16.msra.mxu0 0
    %3048 = vmatprep.subr.bf16.mxu0 0
    %3049 = vmatpush2.bf16.msra.mxu0 0
    %3050 = vmatprep.subr.bf16.mxu0 0
    %3051 = vmatpush2.bf16.msra.mxu0 0
    %3052 = vmatprep.subr.bf16.mxu0 0
    %3053 = vmatpush2.bf16.msra.mxu0 0
    %3054 = vmatprep.subr.bf16.mxu0 0
    %3055 = vmatpush2.bf16.msra.mxu0 0
    %3056 = vmatprep.mubr.bf16.mxu0 0
    %3057 = vmatmul.mubr.bf16.gmra.mxu0 %v2982
    %v3058 = vpop.f32.mrf.mxu0
    %v3059 = vadd.f32 0.0, %v3058
    %v3060 = vpop.f32.mrf.mxu0
    %v3061 = vpop.f32.mrf.mxu0
    %v3062 = vpop.f32.mrf.mxu0
    %3063 = vdwg.mxu0
    %v3064 = vadd.f32 %v2979, %v3018
    %v3065 = vxor.u32 %v3064, 2147483648
    %v3066 = vmul.f32 %v3065, 1.442695
    %v3067 = vpow.pop %v3066
    %v3068 = vadd.f32 %v3067, 1.0
    %v3069 = vrcp.pop %v3068
    %v3070 = vmul.f32 1.0, %v3069
    %v3071 = vadd.f32 %v2980, %v3020
    %v3072 = vxor.u32 %v3071, 2147483648
    %v3073 = vmul.f32 %v3072, 1.442695
    %v3074 = vpow.pop %v3073
    %v3075 = vadd.f32 %v3074, 1.0
    %v3076 = vrcp.pop %v3075
    %v3077 = vmul.f32 1.0, %v3076
    %v3078 = vadd.f32 %v3059, %v2624
    %v3079 = vmul.f32 %v3070, %v3078
    %v3080 = vadd.f32 %v2981, %v3079
    %v3081 = vtanh.pop %v3080
    %v3082 = vsub.f32 %v2971, %v3081
    %v3083 = vmul.f32 %v3077, %v3082
    %v3084 = vadd.f32 %v3081, %v3083
    %vm3085 = vcmp.eq.s32.totalorder %v87, 4
    %v3086 = vsel %vm3085, 1, 0
    %3087 = vset.pattern.permute.xlu0 0
    %3088 = vperm.xlu0 %3087, %v3086
    %v3089 = vpop.permute.xlu0 %3088
    %vm3090 = vcmp.eq.s32.totalorder %v3089, 1
    %v3091 = vsel %vm3090, %v3084, %v2978
    %v3092 = vld [vmem:[%s1655] sm:$0xff]
    %v3093 = vld [vmem:[%s1655 + $0x8] sm:$0xff]
    %v3094 = vld [vmem:[%s1655 + $0x10] sm:$0xff]
    %v3095 = vpack.c.bf16 %v3084, %v3084
    %3096 = vmatprep.subr.bf16.mxu0 %v2499
    %3097 = vmatpush1.bf16.msra.mxu0 %v2498
    %3098 = vmatprep.subr.bf16.mxu0 %v2496
    %3099 = vmatpush1.bf16.msra.mxu0 %v2495
    %3100 = vmatprep.subr.bf16.mxu0 %v2493
    %3101 = vmatpush1.bf16.msra.mxu0 %v2492
    %3102 = vmatprep.subr.bf16.mxu0 %v2490
    %3103 = vmatpush1.bf16.msra.mxu0 %v2489
    %3104 = vmatprep.subr.bf16.mxu0 %v2487
    %3105 = vmatpush1.bf16.msra.mxu0 %v2486
    %3106 = vmatprep.subr.bf16.mxu0 %v2484
    %3107 = vmatpush1.bf16.msra.mxu0 %v2483
    %3108 = vmatprep.subr.bf16.mxu0 %v2481
    %3109 = vmatpush1.bf16.msra.mxu0 %v2480
    %3110 = vmatprep.subr.bf16.mxu0 %v2478
    %3111 = vmatpush1.bf16.msra.mxu0 %v2477
    %3112 = vmatprep.subr.bf16.mxu0 0
    %3113 = vmatpush2.bf16.msra.mxu0 0
    %3114 = vmatprep.subr.bf16.mxu0 0
    %3115 = vmatpush2.bf16.msra.mxu0 0
    %3116 = vmatprep.subr.bf16.mxu0 0
    %3117 = vmatpush2.bf16.msra.mxu0 0
    %3118 = vmatprep.subr.bf16.mxu0 0
    %3119 = vmatpush2.bf16.msra.mxu0 0
    %3120 = vmatprep.subr.bf16.mxu0 0
    %3121 = vmatpush2.bf16.msra.mxu0 0
    %3122 = vmatprep.subr.bf16.mxu0 0
    %3123 = vmatpush2.bf16.msra.mxu0 0
    %3124 = vmatprep.subr.bf16.mxu0 0
    %3125 = vmatpush2.bf16.msra.mxu0 0
    %3126 = vmatprep.subr.bf16.mxu0 0
    %3127 = vmatpush2.bf16.msra.mxu0 0
    %3128 = vmatprep.mubr.bf16.mxu0 0
    %3129 = vmatmul.mubr.bf16.gmra.mxu0 %v3095
    %v3130 = vpop.f32.mrf.mxu0
    %v3131 = vadd.f32 0.0, %v3130
    %v3132 = vpop.f32.mrf.mxu0
    %v3133 = vadd.f32 0.0, %v3132
    %v3134 = vpop.f32.mrf.mxu0
    %v3135 = vpop.f32.mrf.mxu0
    %3136 = vdwg.mxu0
    %3137 = vmatprep.subr.bf16.mxu0 0
    %3138 = vmatpush1.bf16.msra.mxu0 %v2500
    %3139 = vmatprep.subr.bf16.mxu0 0
    %3140 = vmatpush1.bf16.msra.mxu0 %v2497
    %3141 = vmatprep.subr.bf16.mxu0 0
    %3142 = vmatpush1.bf16.msra.mxu0 %v2494
    %3143 = vmatprep.subr.bf16.mxu0 0
    %3144 = vmatpush1.bf16.msra.mxu0 %v2491
    %3145 = vmatprep.subr.bf16.mxu0 0
    %3146 = vmatpush1.bf16.msra.mxu0 %v2488
    %3147 = vmatprep.subr.bf16.mxu0 0
    %3148 = vmatpush1.bf16.msra.mxu0 %v2485
    %3149 = vmatprep.subr.bf16.mxu0 0
    %3150 = vmatpush1.bf16.msra.mxu0 %v2482
    %3151 = vmatprep.subr.bf16.mxu0 0
    %3152 = vmatpush1.bf16.msra.mxu0 %v2479
    %3153 = vmatprep.subr.bf16.mxu0 0
    %3154 = vmatpush2.bf16.msra.mxu0 0
    %3155 = vmatprep.subr.bf16.mxu0 0
    %3156 = vmatpush2.bf16.msra.mxu0 0
    %3157 = vmatprep.subr.bf16.mxu0 0
    %3158 = vmatpush2.bf16.msra.mxu0 0
    %3159 = vmatprep.subr.bf16.mxu0 0
    %3160 = vmatpush2.bf16.msra.mxu0 0
    %3161 = vmatprep.subr.bf16.mxu0 0
    %3162 = vmatpush2.bf16.msra.mxu0 0
    %3163 = vmatprep.subr.bf16.mxu0 0
    %3164 = vmatpush2.bf16.msra.mxu0 0
    %3165 = vmatprep.subr.bf16.mxu0 0
    %3166 = vmatpush2.bf16.msra.mxu0 0
    %3167 = vmatprep.subr.bf16.mxu0 0
    %3168 = vmatpush2.bf16.msra.mxu0 0
    %3169 = vmatprep.mubr.bf16.mxu0 0
    %3170 = vmatmul.mubr.bf16.gmra.mxu0 %v3095
    %v3171 = vpop.f32.mrf.mxu0
    %v3172 = vadd.f32 0.0, %v3171
    %v3173 = vpop.f32.mrf.mxu0
    %v3174 = vpop.f32.mrf.mxu0
    %v3175 = vpop.f32.mrf.mxu0
    %3176 = vdwg.mxu0
    %v3177 = vadd.f32 %v3092, %v3131
    %v3178 = vxor.u32 %v3177, 2147483648
    %v3179 = vmul.f32 %v3178, 1.442695
    %v3180 = vpow.pop %v3179
    %v3181 = vadd.f32 %v3180, 1.0
    %v3182 = vrcp.pop %v3181
    %v3183 = vmul.f32 1.0, %v3182
    %v3184 = vadd.f32 %v3093, %v3133
    %v3185 = vxor.u32 %v3184, 2147483648
    %v3186 = vmul.f32 %v3185, 1.442695
    %v3187 = vpow.pop %v3186
    %v3188 = vadd.f32 %v3187, 1.0
    %v3189 = vrcp.pop %v3188
    %v3190 = vmul.f32 1.0, %v3189
    %v3191 = vadd.f32 %v3172, %v2624
    %v3192 = vmul.f32 %v3183, %v3191
    %v3193 = vadd.f32 %v3094, %v3192
    %v3194 = vtanh.pop %v3193
    %v3195 = vsub.f32 %v3084, %v3194
    %v3196 = vmul.f32 %v3190, %v3195
    %v3197 = vadd.f32 %v3194, %v3196
    %vm3198 = vcmp.eq.s32.totalorder %v87, 5
    %v3199 = vsel %vm3198, 1, 0
    %3200 = vset.pattern.permute.xlu0 0
    %3201 = vperm.xlu0 %3200, %v3199
    %v3202 = vpop.permute.xlu0 %3201
    %vm3203 = vcmp.eq.s32.totalorder %v3202, 1
    %v3204 = vsel %vm3203, %v3197, %v3091
    %v3205 = vld [vmem:[%s1766] sm:$0xff]
    %v3206 = vld [vmem:[%s1766 + $0x8] sm:$0xff]
    %v3207 = vld [vmem:[%s1766 + $0x10] sm:$0xff]
    %v3208 = vpack.c.bf16 %v3197, %v3197
    %3209 = vmatprep.subr.bf16.mxu0 %v2499
    %3210 = vmatpush1.bf16.msra.mxu0 %v2498
    %3211 = vmatprep.subr.bf16.mxu0 %v2496
    %3212 = vmatpush1.bf16.msra.mxu0 %v2495
    %3213 = vmatprep.subr.bf16.mxu0 %v2493
    %3214 = vmatpush1.bf16.msra.mxu0 %v2492
    %3215 = vmatprep.subr.bf16.mxu0 %v2490
    %3216 = vmatpush1.bf16.msra.mxu0 %v2489
    %3217 = vmatprep.subr.bf16.mxu0 %v2487
    %3218 = vmatpush1.bf16.msra.mxu0 %v2486
    %3219 = vmatprep.subr.bf16.mxu0 %v2484
    %3220 = vmatpush1.bf16.msra.mxu0 %v2483
    %3221 = vmatprep.subr.bf16.mxu0 %v2481
    %3222 = vmatpush1.bf16.msra.mxu0 %v2480
    %3223 = vmatprep.subr.bf16.mxu0 %v2478
    %3224 = vmatpush1.bf16.msra.mxu0 %v2477
    %3225 = vmatprep.subr.bf16.mxu0 0
    %3226 = vmatpush2.bf16.msra.mxu0 0
    %3227 = vmatprep.subr.bf16.mxu0 0
    %3228 = vmatpush2.bf16.msra.mxu0 0
    %3229 = vmatprep.subr.bf16.mxu0 0
    %3230 = vmatpush2.bf16.msra.mxu0 0
    %3231 = vmatprep.subr.bf16.mxu0 0
    %3232 = vmatpush2.bf16.msra.mxu0 0
    %3233 = vmatprep.subr.bf16.mxu0 0
    %3234 = vmatpush2.bf16.msra.mxu0 0
    %3235 = vmatprep.subr.bf16.mxu0 0
    %3236 = vmatpush2.bf16.msra.mxu0 0
    %3237 = vmatprep.subr.bf16.mxu0 0
    %3238 = vmatpush2.bf16.msra.mxu0 0
    %3239 = vmatprep.subr.bf16.mxu0 0
    %3240 = vmatpush2.bf16.msra.mxu0 0
    %3241 = vmatprep.mubr.bf16.mxu0 0
    %3242 = vmatmul.mubr.bf16.gmra.mxu0 %v3208
    %v3243 = vpop.f32.mrf.mxu0
    %v3244 = vadd.f32 0.0, %v3243
    %v3245 = vpop.f32.mrf.mxu0
    %v3246 = vadd.f32 0.0, %v3245
    %v3247 = vpop.f32.mrf.mxu0
    %v3248 = vpop.f32.mrf.mxu0
    %3249 = vdwg.mxu0
    %3250 = vmatprep.subr.bf16.mxu0 0
    %3251 = vmatpush1.bf16.msra.mxu0 %v2500
    %3252 = vmatprep.subr.bf16.mxu0 0
    %3253 = vmatpush1.bf16.msra.mxu0 %v2497
    %3254 = vmatprep.subr.bf16.mxu0 0
    %3255 = vmatpush1.bf16.msra.mxu0 %v2494
    %3256 = vmatprep.subr.bf16.mxu0 0
    %3257 = vmatpush1.bf16.msra.mxu0 %v2491
    %3258 = vmatprep.subr.bf16.mxu0 0
    %3259 = vmatpush1.bf16.msra.mxu0 %v2488
    %3260 = vmatprep.subr.bf16.mxu0 0
    %3261 = vmatpush1.bf16.msra.mxu0 %v2485
    %3262 = vmatprep.subr.bf16.mxu0 0
    %3263 = vmatpush1.bf16.msra.mxu0 %v2482
    %3264 = vmatprep.subr.bf16.mxu0 0
    %3265 = vmatpush1.bf16.msra.mxu0 %v2479
    %3266 = vmatprep.subr.bf16.mxu0 0
    %3267 = vmatpush2.bf16.msra.mxu0 0
    %3268 = vmatprep.subr.bf16.mxu0 0
    %3269 = vmatpush2.bf16.msra.mxu0 0
    %3270 = vmatprep.subr.bf16.mxu0 0
    %3271 = vmatpush2.bf16.msra.mxu0 0
    %3272 = vmatprep.subr.bf16.mxu0 0
    %3273 = vmatpush2.bf16.msra.mxu0 0
    %3274 = vmatprep.subr.bf16.mxu0 0
    %3275 = vmatpush2.bf16.msra.mxu0 0
    %3276 = vmatprep.subr.bf16.mxu0 0
    %3277 = vmatpush2.bf16.msra.mxu0 0
    %3278 = vmatprep.subr.bf16.mxu0 0
    %3279 = vmatpush2.bf16.msra.mxu0 0
    %3280 = vmatprep.subr.bf16.mxu0 0
    %3281 = vmatpush2.bf16.msra.mxu0 0
    %3282 = vmatprep.mubr.bf16.mxu0 0
    %3283 = vmatmul.mubr.bf16.gmra.mxu0 %v3208
    %v3284 = vpop.f32.mrf.mxu0
    %v3285 = vadd.f32 0.0, %v3284
    %v3286 = vpop.f32.mrf.mxu0
    %v3287 = vpop.f32.mrf.mxu0
    %v3288 = vpop.f32.mrf.mxu0
    %3289 = vdwg.mxu0
    %v3290 = vadd.f32 %v3205, %v3244
    %v3291 = vxor.u32 %v3290, 2147483648
    %v3292 = vmul.f32 %v3291, 1.442695
    %v3293 = vpow.pop %v3292
    %v3294 = vadd.f32 %v3293, 1.0
    %v3295 = vrcp.pop %v3294
    %v3296 = vmul.f32 1.0, %v3295
    %v3297 = vadd.f32 %v3206, %v3246
    %v3298 = vxor.u32 %v3297, 2147483648
    %v3299 = vmul.f32 %v3298, 1.442695
    %v3300 = vpow.pop %v3299
    %v3301 = vadd.f32 %v3300, 1.0
    %v3302 = vrcp.pop %v3301
    %v3303 = vmul.f32 1.0, %v3302
    %v3304 = vadd.f32 %v3285, %v2624
    %v3305 = vmul.f32 %v3296, %v3304
    %v3306 = vadd.f32 %v3207, %v3305
    %v3307 = vtanh.pop %v3306
    %v3308 = vsub.f32 %v3197, %v3307
    %v3309 = vmul.f32 %v3303, %v3308
    %v3310 = vadd.f32 %v3307, %v3309
    %vm3311 = vcmp.eq.s32.totalorder %v87, 6
    %v3312 = vsel %vm3311, 1, 0
    %3313 = vset.pattern.permute.xlu0 0
    %3314 = vperm.xlu0 %3313, %v3312
    %v3315 = vpop.permute.xlu0 %3314
    %vm3316 = vcmp.eq.s32.totalorder %v3315, 1
    %v3317 = vsel %vm3316, %v3310, %v3204
    %v3318 = vld [vmem:[%s1877] sm:$0xff]
    %v3319 = vld [vmem:[%s1877 + $0x8] sm:$0xff]
    %v3320 = vld [vmem:[%s1877 + $0x10] sm:$0xff]
    %v3321 = vpack.c.bf16 %v3310, %v3310
    %3322 = vmatprep.subr.bf16.mxu0 %v2499
    %3323 = vmatpush1.bf16.msra.mxu0 %v2498
    %3324 = vmatprep.subr.bf16.mxu0 %v2496
    %3325 = vmatpush1.bf16.msra.mxu0 %v2495
    %3326 = vmatprep.subr.bf16.mxu0 %v2493
    %3327 = vmatpush1.bf16.msra.mxu0 %v2492
    %3328 = vmatprep.subr.bf16.mxu0 %v2490
    %3329 = vmatpush1.bf16.msra.mxu0 %v2489
    %3330 = vmatprep.subr.bf16.mxu0 %v2487
    %3331 = vmatpush1.bf16.msra.mxu0 %v2486
    %3332 = vmatprep.subr.bf16.mxu0 %v2484
    %3333 = vmatpush1.bf16.msra.mxu0 %v2483
    %3334 = vmatprep.subr.bf16.mxu0 %v2481
    %3335 = vmatpush1.bf16.msra.mxu0 %v2480
    %3336 = vmatprep.subr.bf16.mxu0 %v2478
    %3337 = vmatpush1.bf16.msra.mxu0 %v2477
    %3338 = vmatprep.subr.bf16.mxu0 0
    %3339 = vmatpush2.bf16.msra.mxu0 0
    %3340 = vmatprep.subr.bf16.mxu0 0
    %3341 = vmatpush2.bf16.msra.mxu0 0
    %3342 = vmatprep.subr.bf16.mxu0 0
    %3343 = vmatpush2.bf16.msra.mxu0 0
    %3344 = vmatprep.subr.bf16.mxu0 0
    %3345 = vmatpush2.bf16.msra.mxu0 0
    %3346 = vmatprep.subr.bf16.mxu0 0
    %3347 = vmatpush2.bf16.msra.mxu0 0
    %3348 = vmatprep.subr.bf16.mxu0 0
    %3349 = vmatpush2.bf16.msra.mxu0 0
    %3350 = vmatprep.subr.bf16.mxu0 0
    %3351 = vmatpush2.bf16.msra.mxu0 0
    %3352 = vmatprep.subr.bf16.mxu0 0
    %3353 = vmatpush2.bf16.msra.mxu0 0
    %3354 = vmatprep.mubr.bf16.mxu0 0
    %3355 = vmatmul.mubr.bf16.gmra.mxu0 %v3321
    %v3356 = vpop.f32.mrf.mxu0
    %v3357 = vadd.f32 0.0, %v3356
    %v3358 = vpop.f32.mrf.mxu0
    %v3359 = vadd.f32 0.0, %v3358
    %v3360 = vpop.f32.mrf.mxu0
    %v3361 = vpop.f32.mrf.mxu0
    %3362 = vdwg.mxu0
    %3363 = vmatprep.subr.bf16.mxu0 0
    %3364 = vmatpush1.bf16.msra.mxu0 %v2500
    %3365 = vmatprep.subr.bf16.mxu0 0
    %3366 = vmatpush1.bf16.msra.mxu0 %v2497
    %3367 = vmatprep.subr.bf16.mxu0 0
    %3368 = vmatpush1.bf16.msra.mxu0 %v2494
    %3369 = vmatprep.subr.bf16.mxu0 0
    %3370 = vmatpush1.bf16.msra.mxu0 %v2491
    %3371 = vmatprep.subr.bf16.mxu0 0
    %3372 = vmatpush1.bf16.msra.mxu0 %v2488
    %3373 = vmatprep.subr.bf16.mxu0 0
    %3374 = vmatpush1.bf16.msra.mxu0 %v2485
    %3375 = vmatprep.subr.bf16.mxu0 0
    %3376 = vmatpush1.bf16.msra.mxu0 %v2482
    %3377 = vmatprep.subr.bf16.mxu0 0
    %3378 = vmatpush1.bf16.msra.mxu0 %v2479
    %3379 = vmatprep.subr.bf16.mxu0 0
    %3380 = vmatpush2.bf16.msra.mxu0 0
    %3381 = vmatprep.subr.bf16.mxu0 0
    %3382 = vmatpush2.bf16.msra.mxu0 0
    %3383 = vmatprep.subr.bf16.mxu0 0
    %3384 = vmatpush2.bf16.msra.mxu0 0
    %3385 = vmatprep.subr.bf16.mxu0 0
    %3386 = vmatpush2.bf16.msra.mxu0 0
    %3387 = vmatprep.subr.bf16.mxu0 0
    %3388 = vmatpush2.bf16.msra.mxu0 0
    %3389 = vmatprep.subr.bf16.mxu0 0
    %3390 = vmatpush2.bf16.msra.mxu0 0
    %3391 = vmatprep.subr.bf16.mxu0 0
    %3392 = vmatpush2.bf16.msra.mxu0 0
    %3393 = vmatprep.subr.bf16.mxu0 0
    %3394 = vmatpush2.bf16.msra.mxu0 0
    %3395 = vmatprep.mubr.bf16.mxu0 0
    %3396 = vmatmul.mubr.bf16.gmra.mxu0 %v3321
    %v3397 = vpop.f32.mrf.mxu0
    %v3398 = vadd.f32 0.0, %v3397
    %v3399 = vpop.f32.mrf.mxu0
    %v3400 = vpop.f32.mrf.mxu0
    %v3401 = vpop.f32.mrf.mxu0
    %3402 = vdwg.mxu0
    %v3403 = vadd.f32 %v3318, %v3357
    %v3404 = vxor.u32 %v3403, 2147483648
    %v3405 = vmul.f32 %v3404, 1.442695
    %v3406 = vpow.pop %v3405
    %v3407 = vadd.f32 %v3406, 1.0
    %v3408 = vrcp.pop %v3407
    %v3409 = vmul.f32 1.0, %v3408
    %v3410 = vadd.f32 %v3319, %v3359
    %v3411 = vxor.u32 %v3410, 2147483648
    %v3412 = vmul.f32 %v3411, 1.442695
    %v3413 = vpow.pop %v3412
    %v3414 = vadd.f32 %v3413, 1.0
    %v3415 = vrcp.pop %v3414
    %v3416 = vmul.f32 1.0, %v3415
    %v3417 = vadd.f32 %v3398, %v2624
    %v3418 = vmul.f32 %v3409, %v3417
    %v3419 = vadd.f32 %v3320, %v3418
    %v3420 = vtanh.pop %v3419
    %v3421 = vsub.f32 %v3310, %v3420
    %v3422 = vmul.f32 %v3416, %v3421
    %v3423 = vadd.f32 %v3420, %v3422
    %vm3424 = vcmp.eq.s32.totalorder %v87, 7
    %v3425 = vsel %vm3424, 1, 0
    %3426 = vset.pattern.permute.xlu0 0
    %3427 = vperm.xlu0 %3426, %v3425
    %v3428 = vpop.permute.xlu0 %3427
    %vm3429 = vcmp.eq.s32.totalorder %v3428, 1
    %v3430 = vsel %vm3429, %v3423, %v3317
    %v3431 = vpack.c.bf16 %v3430, %v3430
    %v3432 = vld [vmem:[%s7] sm:$0xf]
    %v3433 = vld [vmem:[%s7 + $0x4] sm:$0xf]
    %v3434 = vld [vmem:[%s7 + $0x8] sm:$0xf]
    %v3435 = vld [vmem:[%s7 + $0xc] sm:$0xf]
    %v3436 = vld [vmem:[%s7 + $0x10] sm:$0xf]
    %v3437 = vld [vmem:[%s7 + $0x14] sm:$0xf]
    %v3438 = vld [vmem:[%s7 + $0x18] sm:$0xf]
    %v3439 = vld [vmem:[%s7 + $0x1c] sm:$0xf]
    %v3440 = vld [vmem:[%s7 + $0x20] sm:$0xf]
    %v3441 = vld [vmem:[%s7 + $0x24] sm:$0xf]
    %v3442 = vld [vmem:[%s7 + $0x28] sm:$0xf]
    %v3443 = vld [vmem:[%s7 + $0x2c] sm:$0xf]
    %v3444 = vld [vmem:[%s7 + $0x30] sm:$0xf]
    %v3445 = vld [vmem:[%s7 + $0x34] sm:$0xf]
    %v3446 = vld [vmem:[%s7 + $0x38] sm:$0xf]
    %v3447 = vld [vmem:[%s7 + $0x3c] sm:$0xf]
    %v3448 = vld [vmem:[#allocation10] sm:$0x1]
    %v3450 = vlaneseq
    %v3451 = vshrl.u32 %v3450, 7
    %v3452 = vsub.s32 0, %v3451
    %v3453 = vrot.slane %v3448, %v3452
    %v3471 = vunpack.c.l.b16 %v3432
    %v3472 = vunpack.c.l.b16 %v3433
    %v3473 = vunpack.c.l.b16 %v3434
    %v3474 = vunpack.c.l.b16 %v3435
    %v3475 = vunpack.c.l.b16 %v3436
    %v3476 = vunpack.c.l.b16 %v3437
    %v3477 = vunpack.c.l.b16 %v3438
    %v3478 = vunpack.c.l.b16 %v3439
    %v3479 = vunpack.c.l.b16 %v3440
    %v3480 = vunpack.c.l.b16 %v3441
    %v3481 = vunpack.c.l.b16 %v3442
    %v3482 = vunpack.c.l.b16 %v3443
    %v3483 = vunpack.c.l.b16 %v3444
    %v3484 = vunpack.c.l.b16 %v3445
    %v3485 = vunpack.c.l.b16 %v3446
    %v3486 = vunpack.c.l.b16 %v3447
    %v3487 = vpack.c.b16 %v3472, %v3471
    %v3488 = vpack.c.b16 %v3474, %v3473
    %v3489 = vpack.c.b16 %v3476, %v3475
    %v3490 = vpack.c.b16 %v3478, %v3477
    %v3491 = vpack.c.b16 %v3480, %v3479
    %v3492 = vpack.c.b16 %v3482, %v3481
    %v3493 = vpack.c.b16 %v3484, %v3483
    %v3494 = vpack.c.b16 %v3486, %v3485
    %3503 = vmatprep.subr.bf16.mxu0 0
    %3504 = vmatpush1.bf16.msra.mxu0 %v3494
    %3505 = vmatprep.subr.bf16.mxu0 0
    %3506 = vmatpush1.bf16.msra.mxu0 %v3493
    %3507 = vmatprep.subr.bf16.mxu0 0
    %3508 = vmatpush1.bf16.msra.mxu0 %v3492
    %3509 = vmatprep.subr.bf16.mxu0 0
    %3510 = vmatpush1.bf16.msra.mxu0 %v3491
    %3511 = vmatprep.subr.bf16.mxu0 0
    %3512 = vmatpush1.bf16.msra.mxu0 %v3490
    %3513 = vmatprep.subr.bf16.mxu0 0
    %3514 = vmatpush1.bf16.msra.mxu0 %v3489
    %3515 = vmatprep.subr.bf16.mxu0 0
    %3516 = vmatpush1.bf16.msra.mxu0 %v3488
    %3517 = vmatprep.subr.bf16.mxu0 0
    %3518 = vmatpush1.bf16.msra.mxu0 %v3487
    %3519 = vmatprep.subr.bf16.mxu0 0
    %3520 = vmatpush2.bf16.msra.mxu0 0
    %3521 = vmatprep.subr.bf16.mxu0 0
    %3522 = vmatpush2.bf16.msra.mxu0 0
    %3523 = vmatprep.subr.bf16.mxu0 0
    %3524 = vmatpush2.bf16.msra.mxu0 0
    %3525 = vmatprep.subr.bf16.mxu0 0
    %3526 = vmatpush2.bf16.msra.mxu0 0
    %3527 = vmatprep.subr.bf16.mxu0 0
    %3528 = vmatpush2.bf16.msra.mxu0 0
    %3529 = vmatprep.subr.bf16.mxu0 0
    %3530 = vmatpush2.bf16.msra.mxu0 0
    %3531 = vmatprep.subr.bf16.mxu0 0
    %3532 = vmatpush2.bf16.msra.mxu0 0
    %3533 = vmatprep.subr.bf16.mxu0 0
    %3534 = vmatpush2.bf16.msra.mxu0 0
    %3535 = vmatprep.mubr.bf16.mxu0 0
    %3536 = vmatmul.mubr.bf16.gmra.mxu0 %v3431
    %v3537 = vpop.f32.mrf.mxu0
    %v3538 = vadd.f32 %v3453, %v3537
    %v3539 = vpop.f32.mrf.mxu0
    %v3540 = vpop.f32.mrf.mxu0
    %v3541 = vpop.f32.mrf.mxu0
    %3542 = vdwg.mxu0
    %3543 = vst [vmem:[#allocation12] sm:$0xff] %v3538
    // Predicated region
    $region54: #{seq2seq_cond_forward.1} parent=1 // pred_check
      _
    $region55: #{seq2seq_cond_forward.1} parent=1 // pred_check_branch
      %3545 = sbr.rel (0) target = $region57
    $region56: #{seq2seq_cond_forward.1} parent=1 // pred_region
      %s3547 = ssub.s32 128, 128
      %3548 = vsyncadd [#allocation6], %s3547
      %s3550 = sshll.u32 [#allocation12], 4
      %s3551 = int_to_ptr.vmem [resolvable:$true] %s3550
      %3553 = dma.vmem_to_hbm [thread:$0]  %s3551, 128, %s9, [#allocation6]
    $region57: #{seq2seq_cond_forward.1} parent=1 // pred_fallthru
      _
    // Predicated region
    $region58: #{seq2seq_cond_forward.1} parent=1 // pred_check
      _
    $region59: #{seq2seq_cond_forward.1} parent=1 // pred_check_branch
      %3555 = sbr.rel (0) target = $region61
    $region60: #{seq2seq_cond_forward.1} parent=1 // pred_region
      %3556 = dma.done [#allocation6], 128
    $region61: #{seq2seq_cond_forward.1} parent=1 // pred_fallthru
      _
    %3557 = vsyncpa [#allocation5], 1
    %3558 = vsyncpa [#allocation8], 1
    %3559 = vsyncpa [#allocation11], 1
    %3560 = vsyncpa [#allocation6], 1

</llo_original>
